<compile_context>
chip_gen: v7x
topology: tpu7x:2x2x1
jax: 0.10.0
libtpu: 0.0.40
codegen_flags: <defaults>
</compile_context>

<pallas_src>
import functools

import jax
import jax.numpy as jnp
from jax.experimental import pallas as pl
from jax.experimental.pallas import tpu as pltpu


def _sigmoid(x):
    # One EUP tanh instead of exp + f32 divide (the divide lowers to a
    # multi-op VPU reciprocal/Newton sequence).
    return 0.5 * jnp.tanh(0.5 * x) + 0.5


# ----------------------------- Pallas kernel --------------------------------

def convlstm_kernel(xh_ref, c_ref, w_ref, b_ref, c_out_ref, h_out_ref,
                    xp_ref, *, H, W, C):
    # Block shapes (one batch element per grid step):
    #   xh_ref   : (1, H, W, 2C) f32   cat(x, h) along channels
    #   c_ref    : (1, H, W, C)  f32
    #   w_ref    : (9, 2C, 4C)   bf16  tap-major HWIO weight (grid-invariant)
    #   b_ref    : (1, 4C)       f32   forget_bias already folded into f slot
    #   c_out_ref, h_out_ref : (1, H, W, C) f32
    #   xp_ref (scratch)     : (H+2, W+2, 2C) f32 zero-padded cat(x, h)
    C2, C4 = 2 * C, 4 * C

    # --- 1) SAME padding: zero only the 1-pixel border, then write interior.
    zrow = jnp.zeros((1, W + 2, C2), jnp.float32)
    zcol = jnp.zeros((H + 2, 1, C2), jnp.float32)
    xp_ref[0:1, :, :] = zrow
    xp_ref[H + 1:H + 2, :, :] = zrow
    xp_ref[:, 0:1, :] = zcol
    xp_ref[:, W + 1:W + 2, :] = zcol
    xp_ref[1:H + 1, 1:W + 1, :] = xh_ref[0]

    # --- 2) 3x3 conv as nine accumulating MXU dots (K = 2C each), bf16 in /
    #        f32 accumulate.  No im2col concat slab.  The (H,W,2C)->(H*W,2C)
    #        reshape only collapses major dims (channel minor untouched).
    acc = jnp.zeros((H * W, C4), jnp.float32)
    for t in range(9):
        dh, dw = divmod(t, 3)
        tap = xp_ref[dh:dh + H, dw:dw + W, :].reshape(H * W, C2)
        acc = acc + jnp.dot(tap.astype(jnp.bfloat16), w_ref[t],
                            preferred_element_type=jnp.float32)
    y = acc + b_ref[...]                                      # (H*W, 4C)

    # --- 3) gates.  PyTorch split order is (j, i, f, o) along channels.
    #        sigmoid runs once over the contiguous 3C-wide (i, f, o) block.
    j = y[:, :C]
    gates = _sigmoid(y[:, C:])                                # (H*W, 3C)
    i = gates[:, :C]
    f = gates[:, C:2 * C]          # forget_bias folded into bias in wrapper
    o = gates[:, 2 * C:]

    c_old = c_ref[0].reshape(H * W, C)
    c_new = c_old * f + i * jnp.maximum(j, 0.0)   # activation fixed to relu
    h_new = o * jnp.maximum(c_new, 0.0)

    # --- 4) two separate outputs; reshapes keep the channel minor dim intact
    #        (no lane<->sublane relayout), channel concat happens in wrapper.
    c_out_ref[0] = c_new.reshape(H, W, C)
    h_out_ref[0] = h_new.reshape(H, W, C)


# ------------------------------ wrapper --------------------------------------

def conv_lstm_pallas(x, state, w_hwio, b, forget_bias):
    """x: (N,H,W,C) NHWC; state: (N,H,W,2C) = cat(c,h).  Returns (h_new, state_new)."""
    N, H, W, C = x.shape
    C2, C4 = 2 * C, 4 * C
    c = state[..., :C]
    h = state[..., C:]

    xh = jnp.concatenate([x, h], axis=-1)                  # single input stream
    w_taps = w_hwio.reshape(9, C2, C4).astype(jnp.bfloat16)
    b_eff = b.at[2 * C:3 * C].add(forget_bias).reshape(1, C4)

    kernel = functools.partial(convlstm_kernel, H=H, W=W, C=C)

    c_out, h_out = pl.pallas_call(
        kernel,
        out_shape=(jax.ShapeDtypeStruct((N, H, W, C), jnp.float32),
                   jax.ShapeDtypeStruct((N, H, W, C), jnp.float32)),
        grid_spec=pltpu.PrefetchScalarGridSpec(
            num_scalar_prefetch=0,
            grid=(N,),
            in_specs=[
                pl.BlockSpec((1, H, W, C2), lambda n: (n, 0, 0, 0)),   # cat(x,h)
                pl.BlockSpec((1, H, W, C), lambda n: (n, 0, 0, 0)),    # c
                pl.BlockSpec((9, C2, C4), lambda n: (0, 0, 0)),        # weight
                pl.BlockSpec((1, C4), lambda n: (0, 0)),               # bias
            ],
            out_specs=(pl.BlockSpec((1, H, W, C), lambda n: (n, 0, 0, 0)),
                       pl.BlockSpec((1, H, W, C), lambda n: (n, 0, 0, 0))),
            scratch_shapes=[pltpu.VMEM((H + 2, W + 2, C2), jnp.float32)],
        ),
        compiler_params=pltpu.CompilerParams(
            dimension_semantics=("parallel",)),   # batch axis across TCs (v7x)
    )(xh, c, w_taps, b_eff)

    h_new = h_out
    state_new = jnp.concatenate([c_out, h_out], axis=-1)   # wrapper-side concat
    return h_new, state_new


# ------------------------------ reference ------------------------------------

def conv_lstm_ref(x, state, w_hwio, b, forget_bias):
    C = x.shape[-1]
    c = state[..., :C]
    h = state[..., C:]
    xh = jnp.concatenate([x, h], axis=-1)
    y = jax.lax.conv_general_dilated(
        xh, w_hwio, window_strides=(1, 1), padding="SAME",
        dimension_numbers=("NHWC", "HWIO", "NHWC")) + b.reshape(1, 1, 1, -1)
    j, i, f, o = jnp.split(y, 4, axis=-1)
    f = jax.nn.sigmoid(f + forget_bias)
    i = jax.nn.sigmoid(i)
    c_new = c * f + i * jax.nn.relu(j)
    o = jax.nn.sigmoid(o)
    h_new = o * jax.nn.relu(c_new)
    return h_new, jnp.concatenate([c_new, h_new], axis=-1)


# --------------------------------- main ---------------------------------------

if __name__ == "__main__":
    key = jax.random.PRNGKey(0)
    N, C, H, W = 2, 32, 16, 16            # small; module default is C=128
    forget_bias = 1.0

    kx, ks, kw, kb = jax.random.split(key, 4)
    # PyTorch-style NCHW inputs, transposed once to NHWC for the kernel.
    x_nchw = jax.random.normal(kx, (N, C, H, W), dtype=jnp.float32)
    state_nchw = jax.random.normal(ks, (N, 2 * C, H, W), dtype=jnp.float32)
    x = jnp.transpose(x_nchw, (0, 2, 3, 1))
    state = jnp.transpose(state_nchw, (0, 2, 3, 1))

    fan_in = 2 * C * 3 * 3
    bound = 1.0 / (fan_in ** 0.5)
    w_hwio = jax.random.uniform(kw, (3, 3, 2 * C, 4 * C), jnp.float32,
                                minval=-bound, maxval=bound)
    b = jax.random.uniform(kb, (4 * C,), jnp.float32,
                           minval=-bound, maxval=bound)

    h_out, state_out = jax.block_until_ready(
        conv_lstm_pallas(x, state, w_hwio, b, forget_bias))
    h_ref, state_ref = jax.block_until_ready(
        conv_lstm_ref(x, state, w_hwio, b, forget_bias))

    assert h_out.shape == (N, H, W, C), h_out.shape
    assert state_out.shape == (N, H, W, 2 * C), state_out.shape
    # bf16 MXU operands -> tolerance loosened vs. the f32 reference.
    assert jnp.allclose(state_out, state_ref, atol=2e-2, rtol=2e-2), \
        float(jnp.max(jnp.abs(state_out - state_ref)))
    assert jnp.allclose(h_out, h_ref, atol=2e-2, rtol=2e-2), \
        float(jnp.max(jnp.abs(h_out - h_ref)))
    print("KERNEL_OK")
</pallas_src>

<mosaic_0001>
module attributes {stable_mosaic.version = 11 : i64} {
  func.func @convlstm_kernel(%arg0: i32, %arg1: memref<1x16x16x64xf32, #tpu.memory_space<vmem>>, %arg2: memref<1x16x16x32xf32, #tpu.memory_space<vmem>>, %arg3: memref<9x64x128xbf16, #tpu.memory_space<vmem>>, %arg4: memref<1x128xf32, #tpu.memory_space<vmem>>, %arg5: memref<1x16x16x32xf32, #tpu.memory_space<vmem>>, %arg6: memref<1x16x16x32xf32, #tpu.memory_space<vmem>>, %arg7: memref<18x18x64xf32, #tpu.memory_space<vmem>>) attributes {dimension_semantics = [#tpu.dimension_semantics<parallel>], iteration_bounds = array<i64: 2>, scalar_prefetch = 0 : i64, scratch_operands = 1 : i64, tpu.core_type = #tpu.core_type<tc>, window_params = [{transform_indices = @transform_0, window_bounds = array<i64: 1, 16, 16, 64>}, {transform_indices = @transform_1, window_bounds = array<i64: 1, 16, 16, 32>}, {pipeline_mode = #tpu.pipeline_mode<synchronous>, transform_indices = @transform_2, window_bounds = array<i64: 9, 64, 128>}, {pipeline_mode = #tpu.pipeline_mode<synchronous>, transform_indices = @transform_3, window_bounds = array<i64: 1, 128>}, {transform_indices = @transform_4, window_bounds = array<i64: 1, 16, 16, 32>}, {transform_indices = @transform_5, window_bounds = array<i64: 1, 16, 16, 32>}]} {
    %cst = arith.constant 0.000000e+00 : f32
    %0 = vector.broadcast %cst : f32 to vector<1x18x64xf32>
    %cst_0 = arith.constant 0.000000e+00 : f32
    %1 = vector.broadcast %cst_0 : f32 to vector<18x1x64xf32>
    %c0 = arith.constant 0 : index
    %c0_1 = arith.constant 0 : index
    %c0_2 = arith.constant 0 : index
    %2 = vector.load %arg7[%c0, %c0_1, %c0_2] : memref<18x18x64xf32, #tpu.memory_space<vmem>>, vector<1x18x64xf32>
    tpu.vector_store %arg7[%c0, %c0_1, %c0_2], %0 {strides = array<i32>} : memref<18x18x64xf32, #tpu.memory_space<vmem>>, vector<1x18x64xf32>,
    %c17 = arith.constant 17 : index
    %c0_3 = arith.constant 0 : index
    %c0_4 = arith.constant 0 : index
    %3 = vector.load %arg7[%c17, %c0_3, %c0_4] : memref<18x18x64xf32, #tpu.memory_space<vmem>>, vector<1x18x64xf32>
    tpu.vector_store %arg7[%c17, %c0_3, %c0_4], %0 {strides = array<i32>} : memref<18x18x64xf32, #tpu.memory_space<vmem>>, vector<1x18x64xf32>,
    %c0_5 = arith.constant 0 : index
    %c0_6 = arith.constant 0 : index
    %c0_7 = arith.constant 0 : index
    %4 = vector.load %arg7[%c0_5, %c0_6, %c0_7] : memref<18x18x64xf32, #tpu.memory_space<vmem>>, vector<18x1x64xf32>
    tpu.vector_store %arg7[%c0_5, %c0_6, %c0_7], %1 {strides = array<i32>} : memref<18x18x64xf32, #tpu.memory_space<vmem>>, vector<18x1x64xf32>,
    %c0_8 = arith.constant 0 : index
    %c17_9 = arith.constant 17 : index
    %c0_10 = arith.constant 0 : index
    %5 = vector.load %arg7[%c0_8, %c17_9, %c0_10] : memref<18x18x64xf32, #tpu.memory_space<vmem>>, vector<18x1x64xf32>
    tpu.vector_store %arg7[%c0_8, %c17_9, %c0_10], %1 {strides = array<i32>} : memref<18x18x64xf32, #tpu.memory_space<vmem>>, vector<18x1x64xf32>,
    %c0_11 = arith.constant 0 : index
    %c0_12 = arith.constant 0 : index
    %c0_13 = arith.constant 0 : index
    %c0_14 = arith.constant 0 : index
    %6 = vector.load %arg1[%c0_11, %c0_12, %c0_13, %c0_14] : memref<1x16x16x64xf32, #tpu.memory_space<vmem>>, vector<1x16x16x64xf32>
    %7 = vector.shape_cast %6 : vector<1x16x16x64xf32> to vector<16x16x64xf32>
    %c1 = arith.constant 1 : index
    %c1_15 = arith.constant 1 : index
    %c0_16 = arith.constant 0 : index
    %8 = vector.load %arg7[%c1, %c1_15, %c0_16] : memref<18x18x64xf32, #tpu.memory_space<vmem>>, vector<16x16x64xf32>
    tpu.vector_store %arg7[%c1, %c1_15, %c0_16], %7 {strides = array<i32>} : memref<18x18x64xf32, #tpu.memory_space<vmem>>, vector<16x16x64xf32>,
    %cst_17 = arith.constant 0.000000e+00 : f32
    %9 = vector.broadcast %cst_17 : f32 to vector<256x128xf32>
    %c0_18 = arith.constant 0 : index
    %c0_19 = arith.constant 0 : index
    %c0_20 = arith.constant 0 : index
    %10 = vector.load %arg7[%c0_18, %c0_19, %c0_20] : memref<18x18x64xf32, #tpu.memory_space<vmem>>, vector<16x16x64xf32>
    %11 = vector.shape_cast %10 : vector<16x16x64xf32> to vector<256x64xf32>
    %12 = arith.truncf %11 : vector<256x64xf32> to vector<256x64xbf16>
    %c0_21 = arith.constant 0 : index
    %c0_22 = arith.constant 0 : index
    %c0_23 = arith.constant 0 : index
    %13 = vector.load %arg3[%c0_21, %c0_22, %c0_23] : memref<9x64x128xbf16, #tpu.memory_space<vmem>>, vector<1x64x128xbf16>
    %14 = vector.shape_cast %13 : vector<1x64x128xbf16> to vector<64x128xbf16>
    %cst_24 = arith.constant dense<0.000000e+00> : vector<256x128xf32>
    %15 = tpu.matmul %12, %14, %cst_24 {dimension_numbers = #tpu.dot_dimension_numbers<[1], [0], [0], [1], [0, 0, 1, 1], [], []>} : vector<256x64xbf16>, vector<64x128xbf16>, vector<256x128xf32> -> vector<256x128xf32>
    %16 = arith.addf %9, %15 : vector<256x128xf32>
    %c0_25 = arith.constant 0 : index
    %c1_26 = arith.constant 1 : index
    %c0_27 = arith.constant 0 : index
    %17 = vector.load %arg7[%c0_25, %c1_26, %c0_27] : memref<18x18x64xf32, #tpu.memory_space<vmem>>, vector<16x16x64xf32>
    %18 = vector.shape_cast %17 : vector<16x16x64xf32> to vector<256x64xf32>
    %19 = arith.truncf %18 : vector<256x64xf32> to vector<256x64xbf16>
    %c1_28 = arith.constant 1 : index
    %c0_29 = arith.constant 0 : index
    %c0_30 = arith.constant 0 : index
    %20 = vector.load %arg3[%c1_28, %c0_29, %c0_30] : memref<9x64x128xbf16, #tpu.memory_space<vmem>>, vector<1x64x128xbf16>
    %21 = vector.shape_cast %20 : vector<1x64x128xbf16> to vector<64x128xbf16>
    %cst_31 = arith.constant dense<0.000000e+00> : vector<256x128xf32>
    %22 = tpu.matmul %19, %21, %cst_31 {dimension_numbers = #tpu.dot_dimension_numbers<[1], [0], [0], [1], [0, 0, 1, 1], [], []>} : vector<256x64xbf16>, vector<64x128xbf16>, vector<256x128xf32> -> vector<256x128xf32>
    %23 = arith.addf %16, %22 : vector<256x128xf32>
    %c0_32 = arith.constant 0 : index
    %c2 = arith.constant 2 : index
    %c0_33 = arith.constant 0 : index
    %24 = vector.load %arg7[%c0_32, %c2, %c0_33] : memref<18x18x64xf32, #tpu.memory_space<vmem>>, vector<16x16x64xf32>
    %25 = vector.shape_cast %24 : vector<16x16x64xf32> to vector<256x64xf32>
    %26 = arith.truncf %25 : vector<256x64xf32> to vector<256x64xbf16>
    %c2_34 = arith.constant 2 : index
    %c0_35 = arith.constant 0 : index
    %c0_36 = arith.constant 0 : index
    %27 = vector.load %arg3[%c2_34, %c0_35, %c0_36] : memref<9x64x128xbf16, #tpu.memory_space<vmem>>, vector<1x64x128xbf16>
    %28 = vector.shape_cast %27 : vector<1x64x128xbf16> to vector<64x128xbf16>
    %cst_37 = arith.constant dense<0.000000e+00> : vector<256x128xf32>
    %29 = tpu.matmul %26, %28, %cst_37 {dimension_numbers = #tpu.dot_dimension_numbers<[1], [0], [0], [1], [0, 0, 1, 1], [], []>} : vector<256x64xbf16>, vector<64x128xbf16>, vector<256x128xf32> -> vector<256x128xf32>
    %30 = arith.addf %23, %29 : vector<256x128xf32>
    %c1_38 = arith.constant 1 : index
    %c0_39 = arith.constant 0 : index
    %c0_40 = arith.constant 0 : index
    %31 = vector.load %arg7[%c1_38, %c0_39, %c0_40] : memref<18x18x64xf32, #tpu.memory_space<vmem>>, vector<16x16x64xf32>
    %32 = vector.shape_cast %31 : vector<16x16x64xf32> to vector<256x64xf32>
    %33 = arith.truncf %32 : vector<256x64xf32> to vector<256x64xbf16>
    %c3 = arith.constant 3 : index
    %c0_41 = arith.constant 0 : index
    %c0_42 = arith.constant 0 : index
    %34 = vector.load %arg3[%c3, %c0_41, %c0_42] : memref<9x64x128xbf16, #tpu.memory_space<vmem>>, vector<1x64x128xbf16>
    %35 = vector.shape_cast %34 : vector<1x64x128xbf16> to vector<64x128xbf16>
    %cst_43 = arith.constant dense<0.000000e+00> : vector<256x128xf32>
    %36 = tpu.matmul %33, %35, %cst_43 {dimension_numbers = #tpu.dot_dimension_numbers<[1], [0], [0], [1], [0, 0, 1, 1], [], []>} : vector<256x64xbf16>, vector<64x128xbf16>, vector<256x128xf32> -> vector<256x128xf32>
    %37 = arith.addf %30, %36 : vector<256x128xf32>
    %c1_44 = arith.constant 1 : index
    %c1_45 = arith.constant 1 : index
    %c0_46 = arith.constant 0 : index
    %38 = vector.load %arg7[%c1_44, %c1_45, %c0_46] : memref<18x18x64xf32, #tpu.memory_space<vmem>>, vector<16x16x64xf32>
    %39 = vector.shape_cast %38 : vector<16x16x64xf32> to vector<256x64xf32>
    %40 = arith.truncf %39 : vector<256x64xf32> to vector<256x64xbf16>
    %c4 = arith.constant 4 : index
    %c0_47 = arith.constant 0 : index
    %c0_48 = arith.constant 0 : index
    %41 = vector.load %arg3[%c4, %c0_47, %c0_48] : memref<9x64x128xbf16, #tpu.memory_space<vmem>>, vector<1x64x128xbf16>
    %42 = vector.shape_cast %41 : vector<1x64x128xbf16> to vector<64x128xbf16>
    %cst_49 = arith.constant dense<0.000000e+00> : vector<256x128xf32>
    %43 = tpu.matmul %40, %42, %cst_49 {dimension_numbers = #tpu.dot_dimension_numbers<[1], [0], [0], [1], [0, 0, 1, 1], [], []>} : vector<256x64xbf16>, vector<64x128xbf16>, vector<256x128xf32> -> vector<256x128xf32>
    %44 = arith.addf %37, %43 : vector<256x128xf32>
    %c1_50 = arith.constant 1 : index
    %c2_51 = arith.constant 2 : index
    %c0_52 = arith.constant 0 : index
    %45 = vector.load %arg7[%c1_50, %c2_51, %c0_52] : memref<18x18x64xf32, #tpu.memory_space<vmem>>, vector<16x16x64xf32>
    %46 = vector.shape_cast %45 : vector<16x16x64xf32> to vector<256x64xf32>
    %47 = arith.truncf %46 : vector<256x64xf32> to vector<256x64xbf16>
    %c5 = arith.constant 5 : index
    %c0_53 = arith.constant 0 : index
    %c0_54 = arith.constant 0 : index
    %48 = vector.load %arg3[%c5, %c0_53, %c0_54] : memref<9x64x128xbf16, #tpu.memory_space<vmem>>, vector<1x64x128xbf16>
    %49 = vector.shape_cast %48 : vector<1x64x128xbf16> to vector<64x128xbf16>
    %cst_55 = arith.constant dense<0.000000e+00> : vector<256x128xf32>
    %50 = tpu.matmul %47, %49, %cst_55 {dimension_numbers = #tpu.dot_dimension_numbers<[1], [0], [0], [1], [0, 0, 1, 1], [], []>} : vector<256x64xbf16>, vector<64x128xbf16>, vector<256x128xf32> -> vector<256x128xf32>
    %51 = arith.addf %44, %50 : vector<256x128xf32>
    %c2_56 = arith.constant 2 : index
    %c0_57 = arith.constant 0 : index
    %c0_58 = arith.constant 0 : index
    %52 = vector.load %arg7[%c2_56, %c0_57, %c0_58] : memref<18x18x64xf32, #tpu.memory_space<vmem>>, vector<16x16x64xf32>
    %53 = vector.shape_cast %52 : vector<16x16x64xf32> to vector<256x64xf32>
    %54 = arith.truncf %53 : vector<256x64xf32> to vector<256x64xbf16>
    %c6 = arith.constant 6 : index
    %c0_59 = arith.constant 0 : index
    %c0_60 = arith.constant 0 : index
    %55 = vector.load %arg3[%c6, %c0_59, %c0_60] : memref<9x64x128xbf16, #tpu.memory_space<vmem>>, vector<1x64x128xbf16>
    %56 = vector.shape_cast %55 : vector<1x64x128xbf16> to vector<64x128xbf16>
    %cst_61 = arith.constant dense<0.000000e+00> : vector<256x128xf32>
    %57 = tpu.matmul %54, %56, %cst_61 {dimension_numbers = #tpu.dot_dimension_numbers<[1], [0], [0], [1], [0, 0, 1, 1], [], []>} : vector<256x64xbf16>, vector<64x128xbf16>, vector<256x128xf32> -> vector<256x128xf32>
    %58 = arith.addf %51, %57 : vector<256x128xf32>
    %c2_62 = arith.constant 2 : index
    %c1_63 = arith.constant 1 : index
    %c0_64 = arith.constant 0 : index
    %59 = vector.load %arg7[%c2_62, %c1_63, %c0_64] : memref<18x18x64xf32, #tpu.memory_space<vmem>>, vector<16x16x64xf32>
    %60 = vector.shape_cast %59 : vector<16x16x64xf32> to vector<256x64xf32>
    %61 = arith.truncf %60 : vector<256x64xf32> to vector<256x64xbf16>
    %c7 = arith.constant 7 : index
    %c0_65 = arith.constant 0 : index
    %c0_66 = arith.constant 0 : index
    %62 = vector.load %arg3[%c7, %c0_65, %c0_66] : memref<9x64x128xbf16, #tpu.memory_space<vmem>>, vector<1x64x128xbf16>
    %63 = vector.shape_cast %62 : vector<1x64x128xbf16> to vector<64x128xbf16>
    %cst_67 = arith.constant dense<0.000000e+00> : vector<256x128xf32>
    %64 = tpu.matmul %61, %63, %cst_67 {dimension_numbers = #tpu.dot_dimension_numbers<[1], [0], [0], [1], [0, 0, 1, 1], [], []>} : vector<256x64xbf16>, vector<64x128xbf16>, vector<256x128xf32> -> vector<256x128xf32>
    %65 = arith.addf %58, %64 : vector<256x128xf32>
    %c2_68 = arith.constant 2 : index
    %c2_69 = arith.constant 2 : index
    %c0_70 = arith.constant 0 : index
    %66 = vector.load %arg7[%c2_68, %c2_69, %c0_70] : memref<18x18x64xf32, #tpu.memory_space<vmem>>, vector<16x16x64xf32>
    %67 = vector.shape_cast %66 : vector<16x16x64xf32> to vector<256x64xf32>
    %68 = arith.truncf %67 : vector<256x64xf32> to vector<256x64xbf16>
    %c8 = arith.constant 8 : index
    %c0_71 = arith.constant 0 : index
    %c0_72 = arith.constant 0 : index
    %69 = vector.load %arg3[%c8, %c0_71, %c0_72] : memref<9x64x128xbf16, #tpu.memory_space<vmem>>, vector<1x64x128xbf16>
    %70 = vector.shape_cast %69 : vector<1x64x128xbf16> to vector<64x128xbf16>
    %cst_73 = arith.constant dense<0.000000e+00> : vector<256x128xf32>
    %71 = tpu.matmul %68, %70, %cst_73 {dimension_numbers = #tpu.dot_dimension_numbers<[1], [0], [0], [1], [0, 0, 1, 1], [], []>} : vector<256x64xbf16>, vector<64x128xbf16>, vector<256x128xf32> -> vector<256x128xf32>
    %72 = arith.addf %65, %71 : vector<256x128xf32>
    %c0_74 = arith.constant 0 : index
    %c0_75 = arith.constant 0 : index
    %73 = vector.load %arg4[%c0_74, %c0_75] : memref<1x128xf32, #tpu.memory_space<vmem>>, vector<1x128xf32>
    %74 = vector.broadcast %73 : vector<1x128xf32> to vector<256x128xf32>
    %75 = arith.addf %72, %74 : vector<256x128xf32>
    %76 = vector.extract_strided_slice %75 {offsets = [0, 0], sizes = [256, 32], strides = [1, 1]} : vector<256x128xf32> to vector<256x32xf32>
    %77 = vector.extract_strided_slice %75 {offsets = [0, 32], sizes = [256, 96], strides = [1, 1]} : vector<256x128xf32> to vector<256x96xf32>
    %cst_76 = arith.constant 5.000000e-01 : f32
    %78 = vector.broadcast %cst_76 : f32 to vector<256x96xf32>
    %79 = arith.mulf %78, %77 : vector<256x96xf32>
    %80 = math.tanh %79 : vector<256x96xf32>
    %cst_77 = arith.constant 5.000000e-01 : f32
    %81 = vector.broadcast %cst_77 : f32 to vector<256x96xf32>
    %82 = arith.mulf %81, %80 : vector<256x96xf32>
    %cst_78 = arith.constant 5.000000e-01 : f32
    %83 = vector.broadcast %cst_78 : f32 to vector<256x96xf32>
    %84 = arith.addf %82, %83 : vector<256x96xf32>
    %85 = vector.extract_strided_slice %84 {offsets = [0, 0], sizes = [256, 32], strides = [1, 1]} : vector<256x96xf32> to vector<256x32xf32>
    %86 = vector.extract_strided_slice %84 {offsets = [0, 32], sizes = [256, 32], strides = [1, 1]} : vector<256x96xf32> to vector<256x32xf32>
    %87 = vector.extract_strided_slice %84 {offsets = [0, 64], sizes = [256, 32], strides = [1, 1]} : vector<256x96xf32> to vector<256x32xf32>
    %c0_79 = arith.constant 0 : index
    %c0_80 = arith.constant 0 : index
    %c0_81 = arith.constant 0 : index
    %c0_82 = arith.constant 0 : index
    %88 = vector.load %arg2[%c0_79, %c0_80, %c0_81, %c0_82] : memref<1x16x16x32xf32, #tpu.memory_space<vmem>>, vector<1x16x16x32xf32>
    %89 = vector.shape_cast %88 : vector<1x16x16x32xf32> to vector<16x16x32xf32>
    %90 = vector.shape_cast %89 : vector<16x16x32xf32> to vector<256x32xf32>
    %91 = arith.mulf %90, %86 : vector<256x32xf32>
    %cst_83 = arith.constant 0.000000e+00 : f32
    %92 = vector.broadcast %cst_83 : f32 to vector<256x32xf32>
    %93 = arith.maximumf %76, %92 : vector<256x32xf32>
    %94 = arith.mulf %85, %93 : vector<256x32xf32>
    %95 = arith.addf %91, %94 : vector<256x32xf32>
    %cst_84 = arith.constant 0.000000e+00 : f32
    %96 = vector.broadcast %cst_84 : f32 to vector<256x32xf32>
    %97 = arith.maximumf %95, %96 : vector<256x32xf32>
    %98 = arith.mulf %87, %97 : vector<256x32xf32>
    %99 = vector.shape_cast %95 : vector<256x32xf32> to vector<16x16x32xf32>
    %c0_85 = arith.constant 0 : index
    %c0_86 = arith.constant 0 : index
    %c0_87 = arith.constant 0 : index
    %c0_88 = arith.constant 0 : index
    %100 = vector.load %arg5[%c0_85, %c0_86, %c0_87, %c0_88] : memref<1x16x16x32xf32, #tpu.memory_space<vmem>>, vector<1x16x16x32xf32>
    %101 = vector.shape_cast %100 : vector<1x16x16x32xf32> to vector<16x16x32xf32>
    %102 = vector.shape_cast %99 : vector<16x16x32xf32> to vector<1x16x16x32xf32>
    tpu.vector_store %arg5[%c0_85, %c0_86, %c0_87, %c0_88], %102 {strides = array<i32>} : memref<1x16x16x32xf32, #tpu.memory_space<vmem>>, vector<1x16x16x32xf32>,
    %103 = vector.shape_cast %98 : vector<256x32xf32> to vector<16x16x32xf32>
    %c0_89 = arith.constant 0 : index
    %c0_90 = arith.constant 0 : index
    %c0_91 = arith.constant 0 : index
    %c0_92 = arith.constant 0 : index
    %104 = vector.load %arg6[%c0_89, %c0_90, %c0_91, %c0_92] : memref<1x16x16x32xf32, #tpu.memory_space<vmem>>, vector<1x16x16x32xf32>
    %105 = vector.shape_cast %104 : vector<1x16x16x32xf32> to vector<16x16x32xf32>
    %106 = vector.shape_cast %103 : vector<16x16x32xf32> to vector<1x16x16x32xf32>
    tpu.vector_store %arg6[%c0_89, %c0_90, %c0_91, %c0_92], %106 {strides = array<i32>} : memref<1x16x16x32xf32, #tpu.memory_space<vmem>>, vector<1x16x16x32xf32>,
    return
  }
  func.func @transform_0(%arg0: i32) -> (i32, i32, i32, i32) {
    %c0_i32 = arith.constant 0 : i32
    %c0_i32_0 = arith.constant 0 : i32
    %c0_i32_1 = arith.constant 0 : i32
    %c0_i32_2 = arith.constant 0 : i32
    return %arg0, %c0_i32, %c0_i32_0, %c0_i32_1 : i32, i32, i32, i32
  }
  func.func @transform_1(%arg0: i32) -> (i32, i32, i32, i32) {
    %c0_i32 = arith.constant 0 : i32
    %c0_i32_0 = arith.constant 0 : i32
    %c0_i32_1 = arith.constant 0 : i32
    %c0_i32_2 = arith.constant 0 : i32
    return %arg0, %c0_i32, %c0_i32_0, %c0_i32_1 : i32, i32, i32, i32
  }
  func.func @transform_2(%arg0: i32) -> (i32, i32, i32) {
    %c0_i32 = arith.constant 0 : i32
    %c0_i32_0 = arith.constant 0 : i32
    %c0_i32_1 = arith.constant 0 : i32
    %c0_i32_2 = arith.constant 0 : i32
    return %c0_i32, %c0_i32_0, %c0_i32_1 : i32, i32, i32
  }
  func.func @transform_3(%arg0: i32) -> (i32, i32) {
    %c0_i32 = arith.constant 0 : i32
    %c0_i32_0 = arith.constant 0 : i32
    %c0_i32_1 = arith.constant 0 : i32
    return %c0_i32, %c0_i32_0 : i32, i32
  }
  func.func @transform_4(%arg0: i32) -> (i32, i32, i32, i32) {
    %c0_i32 = arith.constant 0 : i32
    %c0_i32_0 = arith.constant 0 : i32
    %c0_i32_1 = arith.constant 0 : i32
    %c0_i32_2 = arith.constant 0 : i32
    return %arg0, %c0_i32, %c0_i32_0, %c0_i32_1 : i32, i32, i32, i32
  }
  func.func @transform_5(%arg0: i32) -> (i32, i32, i32, i32) {
    %c0_i32 = arith.constant 0 : i32
    %c0_i32_0 = arith.constant 0 : i32
    %c0_i32_1 = arith.constant 0 : i32
    %c0_i32_2 = arith.constant 0 : i32
    return %arg0, %c0_i32, %c0_i32_0, %c0_i32_1 : i32, i32, i32, i32
  }
}

</mosaic_0001>

<llo_original>
// kernel: tpu_custom_call.1
$region0: #{tpu_custom_call.1}
  #allocation0 [shape = 'u32[]', space=smem, size = 0x4, offset = 0x4, fixed_abs, tag = 'smem constant byte address 0x4 - core index']
  #allocation1 [shape = 'u32[144,128]{1,0:T(1,128)}', space=vmem, size = 0x12000, scoped, tag = 'internal scratch']
  #allocation2 [shape = 'f32[18,18,64]{2,1,0:T(8,128)}', space=vmem, size = 0x36000, scoped, tag = 'scratch operand']
  %s0 = inlined_call_operand.hbm [shape: f32[2,16,16,64], index: 0, kind: input, shape index: {}]
  %s1 = inlined_call_operand.hbm [shape: f32[2,16,16,32], index: 1, kind: input, shape index: {}]
  %s2 = inlined_call_operand.hbm [shape: bf16[9,64,128], index: 2, kind: input, shape index: {}]
  %s3 = inlined_call_operand.vmem [shape: f32[1,128], index: 3, kind: input, shape index: {}]
  %s4 = inlined_call_operand.hbm [shape: f32[2,16,16,32], index: 4, kind: output, shape index: {0}]
  %s5 = inlined_call_operand.hbm [shape: f32[2,16,16,32], index: 5, kind: output, shape index: {1}]
  %6 = xla_tuple %s4, %s5
  %s7 = sld [smem:[#allocation0]]
  $region69: #{tpu_custom_call.1} parent=0
    _
  %s9 = ssub.s32 1, %s7
  %s10 = scalar_select 0, %s9, %s7
  $region1: #{tpu_custom_call.1} parent=0
    #allocation3 [shape = 'u8[262144]{0}', space=vmem, size = 0x40000, scoped, tag = 'input window, operand 0']
    #allocation4 [shape = 's32[2]{0}', space=sflag, size = 0x8, scoped, tag = 'scoped memory for tpu_custom_call.1']
    #allocation5 [shape = 's32[2]{0}', space=sflag, size = 0x8, scoped, tag = 'scoped memory for tpu_custom_call.1']
    #allocation6 [shape = 'u8[262144]{0}', space=vmem, size = 0x40000, scoped, tag = 'input window, operand 1']
    #allocation7 [shape = 's32[2]{0}', space=sflag, size = 0x8, scoped, tag = 'scoped memory for tpu_custom_call.1']
    #allocation8 [shape = 'u8[147456]{0}', space=vmem, size = 0x24000, scoped, tag = 'input window, operand 2, single buffered']
    #allocation9 [shape = 'u8[262144]{0}', space=vmem, size = 0x40000, scoped, tag = 'output window, operand 0']
    #allocation10 [shape = 'u8[262144]{0}', space=vmem, size = 0x40000, scoped, tag = 'output window, operand 1']
    #allocation11 [shape = 's32[2]{0}', space=sflag, size = 0x8, scoped, tag = 'scoped memory for tpu_custom_call.1']
    %11 = vsyncpa [#allocation4], 0
    %s12 = scalar_lea.sflag [#allocation4], 1
    %13 = vsyncpa %s12, 0
    %14 = vsyncpa [#allocation7], 0
    %s15 = scalar_lea.sflag [#allocation7], 1
    %16 = vsyncpa %s15, 0
    %17 = vsyncpa [#allocation5], 0
    %s18 = scalar_lea.sflag [#allocation5], 1
    %19 = vsyncpa %s18, 0
    %20 = vsyncpa [#allocation11], 0
    %s21 = scalar_lea.sflag [#allocation11], 1
    %22 = vsyncpa %s21, 0
    loop: start=0, step=1, limit=4
    $region2: #{tpu_custom_call.1} parent=1 // loop_pre_header
      _
    $region3: #{tpu_custom_call.1} parent=1 // loop_header
      %s24 = sphi 0, %s28
      %p25 = scmp.ge.s32.totalorder %s24, 4
      %s34 = sphi 0, %s36
      %s37 = sphi 0, %s34
      %s38 = sphi 0, %s37
      %s54 = sphi 0, %s38
      %s60 = sphi 0, %s62
      %s63 = sphi 0, %s60
      %s64 = sphi 0, %s63
      %s80 = sphi 0, %s64
      %s84 = sphi 0, %s84
      %s86 = sphi 0, %s84
      %s87 = sphi 0, %s86
      %s101 = sphi 0, %s87
      %s105 = sphi 0, %s105
      %s107 = sphi 0, %s105
      %s108 = sphi 0, %s107
      %s122 = sphi 0, %s108
      %s128 = sphi 0, %s130
      %s131 = sphi 0, %s128
      %s132 = sphi 0, %s131
      %s148 = sphi 0, %s132
      %s154 = sphi 0, %s156
      %s157 = sphi 0, %s154
      %s158 = sphi 0, %s157
      %s174 = sphi 0, %s158
    $region4: #{tpu_custom_call.1} parent=1 // loop_header_branch
      %27 = sbr.rel (%p25) target = $region8
    $region5: #{tpu_custom_call.1} parent=1 // loop_body
      %s29 = ssub.s32 %s24, 1
      %s30 = ssub.s32 %s24, 2
      %s31 = sadd.s32 %s24, 1
      %s32 = ssub.s32 %s24, %s31
      %p33 = scmp.eq.s32.totalorder %s32, 0
      %s35 = sadd.s32 %s34, 1
      %s36 = scalar_select %p33, %s34, %s35
      %p39 = pneg %p33
      %p40 = scmp.eq.s32.totalorder %s24, 1
      %p41 = por %p39, %p40
      %p42 = scmp.ne.s32.totalorder %s34, %s37
      %p43 = scmp.eq.s32.totalorder %s24, 0
      %p44 = por %p42, %p43
      %p45 = scmp.ne.s32.totalorder %s34, %s37
      %p46 = scmp.eq.s32.totalorder %s29, 1
      %p47 = por %p45, %p46
      %p48 = scmp.ne.s32.totalorder %s37, %s38
      %p49 = scmp.eq.s32.totalorder %s29, 0
      %p50 = por %p48, %p49
      %p51 = scmp.ne.s32.totalorder %s37, %s38
      %p52 = scmp.eq.s32.totalorder %s30, 1
      %p53 = por %p51, %p52
      %p55 = scmp.ne.s32.totalorder %s38, %s54
      %p56 = scmp.eq.s32.totalorder %s30, 0
      %p57 = por %p55, %p56
      %s58 = ssub.s32 %s24, %s31
      %p59 = scmp.eq.s32.totalorder %s58, 0
      %s61 = sadd.s32 %s60, 1
      %s62 = scalar_select %p59, %s60, %s61
      %p65 = pneg %p59
      %p66 = scmp.eq.s32.totalorder %s24, 1
      %p67 = por %p65, %p66
      %p68 = scmp.ne.s32.totalorder %s60, %s63
      %p69 = scmp.eq.s32.totalorder %s24, 0
      %p70 = por %p68, %p69
      %p71 = scmp.ne.s32.totalorder %s60, %s63
      %p72 = scmp.eq.s32.totalorder %s29, 1
      %p73 = por %p71, %p72
      %p74 = scmp.ne.s32.totalorder %s63, %s64
      %p75 = scmp.eq.s32.totalorder %s29, 0
      %p76 = por %p74, %p75
      %p77 = scmp.ne.s32.totalorder %s63, %s64
      %p78 = scmp.eq.s32.totalorder %s30, 1
      %p79 = por %p77, %p78
      %p81 = scmp.ne.s32.totalorder %s64, %s80
      %p82 = scmp.eq.s32.totalorder %s30, 0
      %p83 = por %p81, %p82
      %s85 = sadd.s32 %s84, 1
      %p88 = scmp.eq.s32.totalorder %s24, 1
      %p89 = scmp.ne.s32.totalorder %s84, %s86
      %p90 = scmp.eq.s32.totalorder %s24, 0
      %p91 = por %p89, %p90
      %p92 = scmp.ne.s32.totalorder %s84, %s86
      %p93 = scmp.eq.s32.totalorder %s29, 1
      %p94 = por %p92, %p93
      %p95 = scmp.ne.s32.totalorder %s86, %s87
      %p96 = scmp.eq.s32.totalorder %s29, 0
      %p97 = por %p95, %p96
      %p98 = scmp.ne.s32.totalorder %s86, %s87
      %p99 = scmp.eq.s32.totalorder %s30, 1
      %p100 = por %p98, %p99
      %p102 = scmp.ne.s32.totalorder %s87, %s101
      %p103 = scmp.eq.s32.totalorder %s30, 0
      %p104 = por %p102, %p103
      %s106 = sadd.s32 %s105, 1
      %p109 = scmp.eq.s32.totalorder %s24, 1
      %p110 = scmp.ne.s32.totalorder %s105, %s107
      %p111 = scmp.eq.s32.totalorder %s24, 0
      %p112 = por %p110, %p111
      %p113 = scmp.ne.s32.totalorder %s105, %s107
      %p114 = scmp.eq.s32.totalorder %s29, 1
      %p115 = por %p113, %p114
      %p116 = scmp.ne.s32.totalorder %s107, %s108
      %p117 = scmp.eq.s32.totalorder %s29, 0
      %p118 = por %p116, %p117
      %p119 = scmp.ne.s32.totalorder %s107, %s108
      %p120 = scmp.eq.s32.totalorder %s30, 1
      %p121 = por %p119, %p120
      %p123 = scmp.ne.s32.totalorder %s108, %s122
      %p124 = scmp.eq.s32.totalorder %s30, 0
      %p125 = por %p123, %p124
      %s126 = ssub.s32 %s24, %s31
      %p127 = scmp.eq.s32.totalorder %s126, 0
      %s129 = sadd.s32 %s128, 1
      %s130 = scalar_select %p127, %s128, %s129
      %p133 = pneg %p127
      %p134 = scmp.eq.s32.totalorder %s24, 1
      %p135 = por %p133, %p134
      %p136 = scmp.ne.s32.totalorder %s128, %s131
      %p137 = scmp.eq.s32.totalorder %s24, 0
      %p138 = por %p136, %p137
      %p139 = scmp.ne.s32.totalorder %s128, %s131
      %p140 = scmp.eq.s32.totalorder %s29, 1
      %p141 = por %p139, %p140
      %p142 = scmp.ne.s32.totalorder %s131, %s132
      %p143 = scmp.eq.s32.totalorder %s29, 0
      %p144 = por %p142, %p143
      %p145 = scmp.ne.s32.totalorder %s131, %s132
      %p146 = scmp.eq.s32.totalorder %s30, 1
      %p147 = por %p145, %p146
      %p149 = scmp.ne.s32.totalorder %s132, %s148
      %p150 = scmp.eq.s32.totalorder %s30, 0
      %p151 = por %p149, %p150
      %s152 = ssub.s32 %s24, %s31
      %p153 = scmp.eq.s32.totalorder %s152, 0
      %s155 = sadd.s32 %s154, 1
      %s156 = scalar_select %p153, %s154, %s155
      %p159 = pneg %p153
      %p160 = scmp.eq.s32.totalorder %s24, 1
      %p161 = por %p159, %p160
      %p162 = scmp.ne.s32.totalorder %s154, %s157
      %p163 = scmp.eq.s32.totalorder %s24, 0
      %p164 = por %p162, %p163
      %p165 = scmp.ne.s32.totalorder %s154, %s157
      %p166 = scmp.eq.s32.totalorder %s29, 1
      %p167 = por %p165, %p166
      %p168 = scmp.ne.s32.totalorder %s157, %s158
      %p169 = scmp.eq.s32.totalorder %s29, 0
      %p170 = por %p168, %p169
      %p171 = scmp.ne.s32.totalorder %s157, %s158
      %p172 = scmp.eq.s32.totalorder %s30, 1
      %p173 = por %p171, %p172
      %p175 = scmp.ne.s32.totalorder %s158, %s174
      %p176 = scmp.eq.s32.totalorder %s30, 0
      %p177 = por %p175, %p176
      %p178 = scmp.le.s32.totalorder 1, %s24
      %p179 = scmp.lt.s32.totalorder %s24, 3
      %p180 = pnand %p178, %p179
      %p181 = pneg %p180
      // Predicated region
      $region9: #{tpu_custom_call.1} parent=5 // pred_check
        _
      $region10: #{tpu_custom_call.1} parent=5 // pred_check_branch
        %183 = sbr.rel (%p180) target = $region12
      $region11: #{tpu_custom_call.1} parent=5 // pred_region
        %s184 = ssub.s32 %s24, 1
        // Predicated region
        $region13: #{tpu_custom_call.1} parent=11 // pred_check
          %p185 = pneg %p97
        $region14: #{tpu_custom_call.1} parent=11 // pred_check_branch
          %187 = sbr.rel (%p185) target = $region16
        $region15: #{tpu_custom_call.1} parent=11 // pred_region
          %s189 = ssub.s32 4608, 4608
          %190 = vsyncadd [#allocation7], %s189
          %s191 = sshll.u32 [#allocation8], 4
          %s192 = int_to_ptr.vmem [resolvable:$true] %s191
          %197 = dma.hbm_to_vmem [thread:$0]  %s2, 4608, %s192, [#allocation7], 64, 64, 4
        $region16: #{tpu_custom_call.1} parent=11 // pred_fallthru
          _
        // Predicated region
        $region17: #{tpu_custom_call.1} parent=11 // pred_check
          %p198 = pneg %p118
        $region18: #{tpu_custom_call.1} parent=11 // pred_check_branch
          %200 = sbr.rel (%p198) target = $region20
        $region19: #{tpu_custom_call.1} parent=11 // pred_region
          _
        $region20: #{tpu_custom_call.1} parent=11 // pred_fallthru
          _
      $region12: #{tpu_custom_call.1} parent=5 // pred_fallthru
        _
      %p201 = scmp.lt.s32.totalorder %s24, 2
      // Predicated region
      $region21: #{tpu_custom_call.1} parent=5 // pred_check
        %p202 = pneg %p201
      $region22: #{tpu_custom_call.1} parent=5 // pred_check_branch
        %204 = sbr.rel (%p202) target = $region24
      $region23: #{tpu_custom_call.1} parent=5 // pred_region
        // Predicated region
        $region25: #{tpu_custom_call.1} parent=23 // pred_check
          %p205 = pneg %p44
        $region26: #{tpu_custom_call.1} parent=23 // pred_check_branch
          %207 = sbr.rel (%p205) target = $region28
        $region27: #{tpu_custom_call.1} parent=23 // pred_region
          %s208 = sand.u32 %s34, 1
          %s209 = scalar_lea.sflag [#allocation4], %s208
          %s210 = sand.u32 %s34, 1
          %s211 = smul.addr %s210, 256
          %s212 = scalar_lea.vmem [#allocation3], %s211
          %s214 = ssub.s32 4096, 4096
          %215 = vsyncadd %s209, %s214
          %s216 = smul.addr %s24, 32
          %s217 = smul.addr %s216, 128
          %s218 = scalar_lea.hbm %s0, %s217
          %s219 = sshll.u32 %s212, 4
          %s220 = int_to_ptr.vmem [resolvable:$true] %s219
          %225 = dma.hbm_to_vmem [thread:$0]  %s218, 4096, %s220, %s209, 128, 128, 8
        $region28: #{tpu_custom_call.1} parent=23 // pred_fallthru
          _
        // Predicated region
        $region29: #{tpu_custom_call.1} parent=23 // pred_check
          %p226 = pneg %p70
        $region30: #{tpu_custom_call.1} parent=23 // pred_check_branch
          %228 = sbr.rel (%p226) target = $region32
        $region31: #{tpu_custom_call.1} parent=23 // pred_region
          %s229 = sand.u32 %s24, 1
          %s230 = scalar_lea.sflag [#allocation7], %s229
          %s231 = sand.u32 %s60, 1
          %s232 = smul.addr %s231, 256
          %s233 = scalar_lea.vmem [#allocation6], %s232
          %s235 = ssub.s32 4096, 4096
          %236 = vsyncadd %s230, %s235
          %s237 = smul.addr %s24, 32
          %s238 = smul.addr %s237, 128
          %s239 = scalar_lea.hbm %s1, %s238
          %s240 = sshll.u32 %s233, 4
          %s241 = int_to_ptr.vmem [resolvable:$true] %s240
          %246 = dma.hbm_to_vmem [thread:$0]  %s239, 4096, %s241, %s230, 128, 128, 8
        $region32: #{tpu_custom_call.1} parent=23 // pred_fallthru
          _
      $region24: #{tpu_custom_call.1} parent=5 // pred_fallthru
        _
      %p247 = scmp.le.s32.totalorder 1, %s24
      %p248 = scmp.lt.s32.totalorder %s24, 3
      %p249 = pnand %p247, %p248
      %p250 = pneg %p249
      // Predicated region
      $region33: #{tpu_custom_call.1} parent=5 // pred_check
        _
      $region34: #{tpu_custom_call.1} parent=5 // pred_check_branch
        %252 = sbr.rel (%p249) target = $region36
      $region35: #{tpu_custom_call.1} parent=5 // pred_region
        %s253 = ssub.s32 %s24, 1
        %s254 = sand.u32 %s37, 1
        %s255 = scalar_lea.sflag [#allocation4], %s254
        %s256 = sand.u32 %s37, 1
        %s257 = smul.addr %s256, 256
        %s258 = scalar_lea.vmem [#allocation3], %s257
        // Predicated region
        $region37: #{tpu_custom_call.1} parent=35 // pred_check
          %p259 = pneg %p50
        $region38: #{tpu_custom_call.1} parent=35 // pred_check_branch
          %261 = sbr.rel (%p259) target = $region40
        $region39: #{tpu_custom_call.1} parent=35 // pred_region
          %262 = dma.done %s255, 4096
        $region40: #{tpu_custom_call.1} parent=35 // pred_fallthru
          _
        %s263 = sand.u32 %s29, 1
        %s264 = scalar_lea.sflag [#allocation7], %s263
        %s265 = sand.u32 %s63, 1
        %s266 = smul.addr %s265, 256
        %s267 = scalar_lea.vmem [#allocation6], %s266
        // Predicated region
        $region41: #{tpu_custom_call.1} parent=35 // pred_check
          %p268 = pneg %p76
        $region42: #{tpu_custom_call.1} parent=35 // pred_check_branch
          %270 = sbr.rel (%p268) target = $region44
        $region43: #{tpu_custom_call.1} parent=35 // pred_region
          %271 = dma.done %s264, 4096
        $region44: #{tpu_custom_call.1} parent=35 // pred_fallthru
          _
        // Predicated region
        $region45: #{tpu_custom_call.1} parent=35 // pred_check
          %p272 = pneg %p97
        $region46: #{tpu_custom_call.1} parent=35 // pred_check_branch
          %274 = sbr.rel (%p272) target = $region48
        $region47: #{tpu_custom_call.1} parent=35 // pred_region
          %275 = dma.done [#allocation7], 4608
        $region48: #{tpu_custom_call.1} parent=35 // pred_fallthru
          _
        %s276 = sand.u32 %s37, 1
        %s277 = scalar_lea.sflag [#allocation4], %s276
        %s278 = sand.u32 %s37, 1
        %s279 = smul.addr %s278, 256
        %s280 = scalar_lea.vmem [#allocation3], %s279
        %p281 = pneg %p50
        %p282 = pneg %p47
        %s283 = sand.u32 %s29, 1
        %s284 = scalar_lea.sflag [#allocation7], %s283
        %s285 = sand.u32 %s63, 1
        %s286 = smul.addr %s285, 256
        %s287 = scalar_lea.vmem [#allocation6], %s286
        %p288 = pneg %p76
        %p289 = pneg %p73
        %p290 = pneg %p97
        %p291 = pneg %p94
        %p292 = pneg %p118
        %p293 = pneg %p115
        %p294 = pneg %p144
        %p295 = pneg %p141
        %s296 = sand.u32 %s131, 1
        %s297 = scalar_lea.sflag [#allocation5], %s296
        %s298 = sand.u32 %s131, 1
        %s299 = smul.addr %s298, 256
        %s300 = scalar_lea.vmem [#allocation9], %s299
        %p301 = pneg %p170
        %p302 = pneg %p167
        %s303 = sand.u32 %s157, 1
        %s304 = scalar_lea.sflag [#allocation11], %s303
        %s305 = sand.u32 %s157, 1
        %s306 = smul.addr %s305, 256
        %s307 = scalar_lea.vmem [#allocation10], %s306
        %vm309 = vcmask 523264
        %310 = vst.msk [vmem:[#allocation2] sm:$0xff] %vm309, 0.0
        %311 = vst.msk [vmem:[#allocation2 + $0x8] sm:$0xff] %vm309, 0.0
        %vm312 = vcmask 517120
        %313 = vst.msk [vmem:[#allocation2 + $0x10] sm:$0x3] %vm312, 0.0
        %s314 = scalar_lea.vmem [#allocation2], 408
        %315 = vst.msk [vmem:[%s314] sm:$0xff] %vm309, 0.0
        %316 = vst.msk [vmem:[%s314 + $0x8] sm:$0xff] %vm309, 0.0
        %317 = vst.msk [vmem:[%s314 + $0x10] sm:$0x3] %vm312, 0.0
        %vm318 = vcmask 516096
        %319 = vst.msk [vmem:[#allocation2] sm:$0x1] %vm318, 0.0
        %320 = vst.msk [vmem:[#allocation2 + $0x18] sm:$0x1] %vm318, 0.0
        %321 = vst.msk [vmem:[#allocation2 + $0x30] sm:$0x1] %vm318, 0.0
        %322 = vst.msk [vmem:[#allocation2 + $0x48] sm:$0x1] %vm318, 0.0
        %323 = vst.msk [vmem:[#allocation2 + $0x60] sm:$0x1] %vm318, 0.0
        %324 = vst.msk [vmem:[#allocation2 + $0x78] sm:$0x1] %vm318, 0.0
        %325 = vst.msk [vmem:[#allocation2 + $0x90] sm:$0x1] %vm318, 0.0
        %326 = vst.msk [vmem:[#allocation2 + $0xa8] sm:$0x1] %vm318, 0.0
        %327 = vst.msk [vmem:[#allocation2 + $0xc0] sm:$0x1] %vm318, 0.0
        %328 = vst.msk [vmem:[#allocation2 + $0xd8] sm:$0x1] %vm318, 0.0
        %329 = vst.msk [vmem:[#allocation2 + $0xf0] sm:$0x1] %vm318, 0.0
        %330 = vst.msk [vmem:[#allocation2 + $0x108] sm:$0x1] %vm318, 0.0
        %331 = vst.msk [vmem:[#allocation2 + $0x120] sm:$0x1] %vm318, 0.0
        %332 = vst.msk [vmem:[#allocation2 + $0x138] sm:$0x1] %vm318, 0.0
        %333 = vst.msk [vmem:[#allocation2 + $0x150] sm:$0x1] %vm318, 0.0
        %334 = vst.msk [vmem:[#allocation2 + $0x168] sm:$0x1] %vm318, 0.0
        %335 = vst.msk [vmem:[#allocation2 + $0x180] sm:$0x1] %vm318, 0.0
        %336 = vst.msk [vmem:[#allocation2 + $0x198] sm:$0x1] %vm318, 0.0
        %337 = vst.msk [vmem:[#allocation2 + $0x11] sm:$0x1] %vm318, 0.0
        %338 = vst.msk [vmem:[#allocation2 + $0x29] sm:$0x1] %vm318, 0.0
        %339 = vst.msk [vmem:[#allocation2 + $0x41] sm:$0x1] %vm318, 0.0
        %340 = vst.msk [vmem:[#allocation2 + $0x59] sm:$0x1] %vm318, 0.0
        %341 = vst.msk [vmem:[#allocation2 + $0x71] sm:$0x1] %vm318, 0.0
        %342 = vst.msk [vmem:[#allocation2 + $0x89] sm:$0x1] %vm318, 0.0
        %343 = vst.msk [vmem:[#allocation2 + $0xa1] sm:$0x1] %vm318, 0.0
        %344 = vst.msk [vmem:[#allocation2 + $0xb9] sm:$0x1] %vm318, 0.0
        %345 = vst.msk [vmem:[#allocation2 + $0xd1] sm:$0x1] %vm318, 0.0
        %346 = vst.msk [vmem:[#allocation2 + $0xe9] sm:$0x1] %vm318, 0.0
        %347 = vst.msk [vmem:[#allocation2 + $0x101] sm:$0x1] %vm318, 0.0
        %348 = vst.msk [vmem:[#allocation2 + $0x119] sm:$0x1] %vm318, 0.0
        %349 = vst.msk [vmem:[#allocation2 + $0x131] sm:$0x1] %vm318, 0.0
        %350 = vst.msk [vmem:[#allocation2 + $0x149] sm:$0x1] %vm318, 0.0
        %351 = vst.msk [vmem:[#allocation2 + $0x161] sm:$0x1] %vm318, 0.0
        %352 = vst.msk [vmem:[#allocation2 + $0x179] sm:$0x1] %vm318, 0.0
        %353 = vst.msk [vmem:[#allocation2 + $0x191] sm:$0x1] %vm318, 0.0
        %354 = vst.msk [vmem:[#allocation2 + $0x1a9] sm:$0x1] %vm318, 0.0
        %v355 = vld [vmem:[%s258] sm:$0xff]
        %v356 = vld [vmem:[%s258 + $0x8] sm:$0xff]
        %v357 = vld [vmem:[%s258 + $0x10] sm:$0xff]
        %v358 = vld [vmem:[%s258 + $0x18] sm:$0xff]
        %v359 = vld [vmem:[%s258 + $0x20] sm:$0xff]
        %v360 = vld [vmem:[%s258 + $0x28] sm:$0xff]
        %v361 = vld [vmem:[%s258 + $0x30] sm:$0xff]
        %v362 = vld [vmem:[%s258 + $0x38] sm:$0xff]
        %v363 = vld [vmem:[%s258 + $0x40] sm:$0xff]
        %v364 = vld [vmem:[%s258 + $0x48] sm:$0xff]
        %v365 = vld [vmem:[%s258 + $0x50] sm:$0xff]
        %v366 = vld [vmem:[%s258 + $0x58] sm:$0xff]
        %v367 = vld [vmem:[%s258 + $0x60] sm:$0xff]
        %v368 = vld [vmem:[%s258 + $0x68] sm:$0xff]
        %v369 = vld [vmem:[%s258 + $0x70] sm:$0xff]
        %v370 = vld [vmem:[%s258 + $0x78] sm:$0xff]
        %v371 = vld [vmem:[%s258 + $0x80] sm:$0xff]
        %v372 = vld [vmem:[%s258 + $0x88] sm:$0xff]
        %v373 = vld [vmem:[%s258 + $0x90] sm:$0xff]
        %v374 = vld [vmem:[%s258 + $0x98] sm:$0xff]
        %v375 = vld [vmem:[%s258 + $0xa0] sm:$0xff]
        %v376 = vld [vmem:[%s258 + $0xa8] sm:$0xff]
        %v377 = vld [vmem:[%s258 + $0xb0] sm:$0xff]
        %v378 = vld [vmem:[%s258 + $0xb8] sm:$0xff]
        %v379 = vld [vmem:[%s258 + $0xc0] sm:$0xff]
        %v380 = vld [vmem:[%s258 + $0xc8] sm:$0xff]
        %v381 = vld [vmem:[%s258 + $0xd0] sm:$0xff]
        %v382 = vld [vmem:[%s258 + $0xd8] sm:$0xff]
        %v383 = vld [vmem:[%s258 + $0xe0] sm:$0xff]
        %v384 = vld [vmem:[%s258 + $0xe8] sm:$0xff]
        %v385 = vld [vmem:[%s258 + $0xf0] sm:$0xff]
        %v386 = vld [vmem:[%s258 + $0xf8] sm:$0xff]
        %s387 = scalar_lea.vmem [#allocation2], 24
        %388 = vst.msk [vmem:[%s387 + $0x1] sm:$0xff] %vm309, %v355
        %389 = vst.msk [vmem:[%s387 + $0x9] sm:$0xff] %vm309, %v356
        %390 = vst.msk [vmem:[%s387 + $0x19] sm:$0xff] %vm309, %v357
        %391 = vst.msk [vmem:[%s387 + $0x21] sm:$0xff] %vm309, %v358
        %392 = vst.msk [vmem:[%s387 + $0x31] sm:$0xff] %vm309, %v359
        %393 = vst.msk [vmem:[%s387 + $0x39] sm:$0xff] %vm309, %v360
        %394 = vst.msk [vmem:[%s387 + $0x49] sm:$0xff] %vm309, %v361
        %395 = vst.msk [vmem:[%s387 + $0x51] sm:$0xff] %vm309, %v362
        %396 = vst.msk [vmem:[%s387 + $0x61] sm:$0xff] %vm309, %v363
        %397 = vst.msk [vmem:[%s387 + $0x69] sm:$0xff] %vm309, %v364
        %398 = vst.msk [vmem:[%s387 + $0x79] sm:$0xff] %vm309, %v365
        %399 = vst.msk [vmem:[%s387 + $0x81] sm:$0xff] %vm309, %v366
        %400 = vst.msk [vmem:[%s387 + $0x91] sm:$0xff] %vm309, %v367
        %401 = vst.msk [vmem:[%s387 + $0x99] sm:$0xff] %vm309, %v368
        %402 = vst.msk [vmem:[%s387 + $0xa9] sm:$0xff] %vm309, %v369
        %403 = vst.msk [vmem:[%s387 + $0xb1] sm:$0xff] %vm309, %v370
        %404 = vst.msk [vmem:[%s387 + $0xc1] sm:$0xff] %vm309, %v371
        %405 = vst.msk [vmem:[%s387 + $0xc9] sm:$0xff] %vm309, %v372
        %406 = vst.msk [vmem:[%s387 + $0xd9] sm:$0xff] %vm309, %v373
        %407 = vst.msk [vmem:[%s387 + $0xe1] sm:$0xff] %vm309, %v374
        %408 = vst.msk [vmem:[%s387 + $0xf1] sm:$0xff] %vm309, %v375
        %409 = vst.msk [vmem:[%s387 + $0xf9] sm:$0xff] %vm309, %v376
        %410 = vst.msk [vmem:[%s387 + $0x109] sm:$0xff] %vm309, %v377
        %411 = vst.msk [vmem:[%s387 + $0x111] sm:$0xff] %vm309, %v378
        %412 = vst.msk [vmem:[%s387 + $0x121] sm:$0xff] %vm309, %v379
        %413 = vst.msk [vmem:[%s387 + $0x129] sm:$0xff] %vm309, %v380
        %414 = vst.msk [vmem:[%s387 + $0x139] sm:$0xff] %vm309, %v381
        %415 = vst.msk [vmem:[%s387 + $0x141] sm:$0xff] %vm309, %v382
        %416 = vst.msk [vmem:[%s387 + $0x151] sm:$0xff] %vm309, %v383
        %417 = vst.msk [vmem:[%s387 + $0x159] sm:$0xff] %vm309, %v384
        %418 = vst.msk [vmem:[%s387 + $0x169] sm:$0xff] %vm309, %v385
        %419 = vst.msk [vmem:[%s387 + $0x171] sm:$0xff] %vm309, %v386
        %v420 = vld [vmem:[#allocation2] sm:$0xff]
        %v421 = vld [vmem:[#allocation2 + $0x8] sm:$0xff]
        %v422 = vld [vmem:[#allocation2 + $0x18] sm:$0xff]
        %v423 = vld [vmem:[#allocation2 + $0x20] sm:$0xff]
        %v424 = vld [vmem:[#allocation2 + $0x30] sm:$0xff]
        %v425 = vld [vmem:[#allocation2 + $0x38] sm:$0xff]
        %v426 = vld [vmem:[#allocation2 + $0x48] sm:$0xff]
        %v427 = vld [vmem:[#allocation2 + $0x50] sm:$0xff]
        %v428 = vld [vmem:[#allocation2 + $0x60] sm:$0xff]
        %v429 = vld [vmem:[#allocation2 + $0x68] sm:$0xff]
        %v430 = vld [vmem:[#allocation2 + $0x78] sm:$0xff]
        %v431 = vld [vmem:[#allocation2 + $0x80] sm:$0xff]
        %v432 = vld [vmem:[#allocation2 + $0x90] sm:$0xff]
        %v433 = vld [vmem:[#allocation2 + $0x98] sm:$0xff]
        %v434 = vld [vmem:[#allocation2 + $0xa8] sm:$0xff]
        %v435 = vld [vmem:[#allocation2 + $0xb0] sm:$0xff]
        %v436 = vld [vmem:[#allocation2 + $0xc0] sm:$0xff]
        %v437 = vld [vmem:[#allocation2 + $0xc8] sm:$0xff]
        %v438 = vld [vmem:[#allocation2 + $0xd8] sm:$0xff]
        %v439 = vld [vmem:[#allocation2 + $0xe0] sm:$0xff]
        %v440 = vld [vmem:[#allocation2 + $0xf0] sm:$0xff]
        %v441 = vld [vmem:[#allocation2 + $0xf8] sm:$0xff]
        %v442 = vld [vmem:[#allocation2 + $0x108] sm:$0xff]
        %v443 = vld [vmem:[#allocation2 + $0x110] sm:$0xff]
        %v444 = vld [vmem:[#allocation2 + $0x120] sm:$0xff]
        %v445 = vld [vmem:[#allocation2 + $0x128] sm:$0xff]
        %v446 = vld [vmem:[#allocation2 + $0x138] sm:$0xff]
        %v447 = vld [vmem:[#allocation2 + $0x140] sm:$0xff]
        %v448 = vld [vmem:[#allocation2 + $0x150] sm:$0xff]
        %v449 = vld [vmem:[#allocation2 + $0x158] sm:$0xff]
        %v450 = vld [vmem:[#allocation2 + $0x168] sm:$0xff]
        %v451 = vld [vmem:[#allocation2 + $0x170] sm:$0xff]
        %v452 = vpack.c.bf16 %v421, %v420
        %v453 = vpack.c.bf16 %v423, %v422
        %v454 = vpack.c.bf16 %v425, %v424
        %v455 = vpack.c.bf16 %v427, %v426
        %v456 = vpack.c.bf16 %v429, %v428
        %v457 = vpack.c.bf16 %v431, %v430
        %v458 = vpack.c.bf16 %v433, %v432
        %v459 = vpack.c.bf16 %v435, %v434
        %v460 = vpack.c.bf16 %v437, %v436
        %v461 = vpack.c.bf16 %v439, %v438
        %v462 = vpack.c.bf16 %v441, %v440
        %v463 = vpack.c.bf16 %v443, %v442
        %v464 = vpack.c.bf16 %v445, %v444
        %v465 = vpack.c.bf16 %v447, %v446
        %v466 = vpack.c.bf16 %v449, %v448
        %v467 = vpack.c.bf16 %v451, %v450
        %v468 = vld [vmem:[#allocation8] sm:$0xf]
        %v469 = vld [vmem:[#allocation8 + $0x4] sm:$0xf]
        %v470 = vld [vmem:[#allocation8 + $0x8] sm:$0xf]
        %v471 = vld [vmem:[#allocation8 + $0xc] sm:$0xf]
        %v472 = vld [vmem:[#allocation8 + $0x10] sm:$0xf]
        %v473 = vld [vmem:[#allocation8 + $0x14] sm:$0xf]
        %v474 = vld [vmem:[#allocation8 + $0x18] sm:$0xf]
        %v475 = vld [vmem:[#allocation8 + $0x1c] sm:$0xf]
        %v476 = vld [vmem:[#allocation2 + $0x1] sm:$0xff]
        %v477 = vld [vmem:[#allocation2 + $0x9] sm:$0xff]
        %v478 = vld [vmem:[#allocation2 + $0x19] sm:$0xff]
        %v479 = vld [vmem:[#allocation2 + $0x21] sm:$0xff]
        %v480 = vld [vmem:[#allocation2 + $0x31] sm:$0xff]
        %v481 = vld [vmem:[#allocation2 + $0x39] sm:$0xff]
        %v482 = vld [vmem:[#allocation2 + $0x49] sm:$0xff]
        %v483 = vld [vmem:[#allocation2 + $0x51] sm:$0xff]
        %v484 = vld [vmem:[#allocation2 + $0x61] sm:$0xff]
        %v485 = vld [vmem:[#allocation2 + $0x69] sm:$0xff]
        %v486 = vld [vmem:[#allocation2 + $0x79] sm:$0xff]
        %v487 = vld [vmem:[#allocation2 + $0x81] sm:$0xff]
        %v488 = vld [vmem:[#allocation2 + $0x91] sm:$0xff]
        %v489 = vld [vmem:[#allocation2 + $0x99] sm:$0xff]
        %v490 = vld [vmem:[#allocation2 + $0xa9] sm:$0xff]
        %v491 = vld [vmem:[#allocation2 + $0xb1] sm:$0xff]
        %v492 = vld [vmem:[#allocation2 + $0xc1] sm:$0xff]
        %v493 = vld [vmem:[#allocation2 + $0xc9] sm:$0xff]
        %v494 = vld [vmem:[#allocation2 + $0xd9] sm:$0xff]
        %v495 = vld [vmem:[#allocation2 + $0xe1] sm:$0xff]
        %v496 = vld [vmem:[#allocation2 + $0xf1] sm:$0xff]
        %v497 = vld [vmem:[#allocation2 + $0xf9] sm:$0xff]
        %v498 = vld [vmem:[#allocation2 + $0x109] sm:$0xff]
        %v499 = vld [vmem:[#allocation2 + $0x111] sm:$0xff]
        %v500 = vld [vmem:[#allocation2 + $0x121] sm:$0xff]
        %v501 = vld [vmem:[#allocation2 + $0x129] sm:$0xff]
        %v502 = vld [vmem:[#allocation2 + $0x139] sm:$0xff]
        %v503 = vld [vmem:[#allocation2 + $0x141] sm:$0xff]
        %v504 = vld [vmem:[#allocation2 + $0x151] sm:$0xff]
        %v505 = vld [vmem:[#allocation2 + $0x159] sm:$0xff]
        %v506 = vld [vmem:[#allocation2 + $0x169] sm:$0xff]
        %v507 = vld [vmem:[#allocation2 + $0x171] sm:$0xff]
        %v508 = vpack.c.bf16 %v477, %v476
        %v509 = vpack.c.bf16 %v479, %v478
        %v510 = vpack.c.bf16 %v481, %v480
        %v511 = vpack.c.bf16 %v483, %v482
        %v512 = vpack.c.bf16 %v485, %v484
        %v513 = vpack.c.bf16 %v487, %v486
        %v514 = vpack.c.bf16 %v489, %v488
        %v515 = vpack.c.bf16 %v491, %v490
        %v516 = vpack.c.bf16 %v493, %v492
        %v517 = vpack.c.bf16 %v495, %v494
        %v518 = vpack.c.bf16 %v497, %v496
        %v519 = vpack.c.bf16 %v499, %v498
        %v520 = vpack.c.bf16 %v501, %v500
        %v521 = vpack.c.bf16 %v503, %v502
        %v522 = vpack.c.bf16 %v505, %v504
        %v523 = vpack.c.bf16 %v507, %v506
        %s524 = scalar_lea.vmem [#allocation8], 32
        %v525 = vld [vmem:[%s524] sm:$0xf]
        %v526 = vld [vmem:[%s524 + $0x4] sm:$0xf]
        %v527 = vld [vmem:[%s524 + $0x8] sm:$0xf]
        %v528 = vld [vmem:[%s524 + $0xc] sm:$0xf]
        %v529 = vld [vmem:[%s524 + $0x10] sm:$0xf]
        %v530 = vld [vmem:[%s524 + $0x14] sm:$0xf]
        %v531 = vld [vmem:[%s524 + $0x18] sm:$0xf]
        %v532 = vld [vmem:[%s524 + $0x1c] sm:$0xf]
        %v541 = vunpack.c.l.b16 %v525
        %v542 = vunpack.c.l.b16 %v526
        %v543 = vunpack.c.l.b16 %v527
        %v544 = vunpack.c.l.b16 %v528
        %v545 = vunpack.c.l.b16 %v529
        %v546 = vunpack.c.l.b16 %v530
        %v547 = vunpack.c.l.b16 %v531
        %v548 = vunpack.c.l.b16 %v532
        %v549 = vpack.c.b16 %v542, %v541
        %v550 = vpack.c.b16 %v544, %v543
        %v551 = vpack.c.b16 %v546, %v545
        %v552 = vpack.c.b16 %v548, %v547
        %v558 = vsel %vm309, %v508, 0
        %v561 = vsel %vm309, %v509, 0
        %v564 = vsel %vm309, %v510, 0
        %v567 = vsel %vm309, %v511, 0
        %v570 = vsel %vm309, %v512, 0
        %v573 = vsel %vm309, %v513, 0
        %v576 = vsel %vm309, %v514, 0
        %v579 = vsel %vm309, %v515, 0
        %v582 = vsel %vm309, %v516, 0
        %v585 = vsel %vm309, %v517, 0
        %v588 = vsel %vm309, %v518, 0
        %v591 = vsel %vm309, %v519, 0
        %v594 = vsel %vm309, %v520, 0
        %v597 = vsel %vm309, %v521, 0
        %v600 = vsel %vm309, %v522, 0
        %v603 = vsel %vm309, %v523, 0
        %605 = vmatprep.subr.bf16.mxu0 0
        %606 = vmatpush1.bf16.msra.mxu0 %v549
        %607 = vmatprep.subr.bf16.mxu0 0
        %608 = vmatpush1.bf16.msra.mxu0 %v550
        %609 = vmatprep.subr.bf16.mxu0 0
        %610 = vmatpush1.bf16.msra.mxu0 %v551
        %611 = vmatprep.subr.bf16.mxu0 0
        %612 = vmatpush1.bf16.msra.mxu0 %v552
        %613 = vmatprep.subr.bf16.mxu0 0
        %614 = vmatpush1.bf16.msra.mxu0 0
        %615 = vmatprep.subr.bf16.mxu0 0
        %616 = vmatpush1.bf16.msra.mxu0 0
        %617 = vmatprep.subr.bf16.mxu0 0
        %618 = vmatpush1.bf16.msra.mxu0 0
        %619 = vmatprep.subr.bf16.mxu0 0
        %620 = vmatpush1.bf16.msra.mxu0 0
        %621 = vmatprep.subr.bf16.mxu0 0
        %622 = vmatpush1.bf16.msra.mxu0 0
        %623 = vmatprep.subr.bf16.mxu0 0
        %624 = vmatpush1.bf16.msra.mxu0 0
        %625 = vmatprep.subr.bf16.mxu0 0
        %626 = vmatpush1.bf16.msra.mxu0 0
        %627 = vmatprep.subr.bf16.mxu0 0
        %628 = vmatpush1.bf16.msra.mxu0 0
        %629 = vmatprep.subr.bf16.mxu0 0
        %630 = vmatpush1.bf16.msra.mxu0 0
        %631 = vmatprep.subr.bf16.mxu0 0
        %632 = vmatpush1.bf16.msra.mxu0 0
        %633 = vmatprep.subr.bf16.mxu0 0
        %634 = vmatpush1.bf16.msra.mxu0 0
        %635 = vmatprep.subr.bf16.mxu0 0
        %636 = vmatpush1.bf16.msra.mxu0 0
        %637 = vmatprep.mubr.bf16.mxu0 0
        %638 = vmatmul.mubr.bf16.gmra.mrb[0].mxu0 %v558
        %v639 = vpop.f32.mrb[0].mxu0
        %v640 = vadd.f32 0.0, %v639
        %v641 = vpop.f32.mrb[0].mxu0
        %v642 = vpop.f32.mrb[0].mxu0
        %v643 = vadd.f32 0.0, %v642
        %v644 = vpop.f32.mrb[0].mxu0
        %645 = vmatprep.mubr.bf16.mxu0 0
        %646 = vmatmul.mubr.bf16.gmra.mrb[0].mxu0 %v561
        %v647 = vpop.f32.mrb[0].mxu0
        %v648 = vadd.f32 0.0, %v647
        %v649 = vpop.f32.mrb[0].mxu0
        %v650 = vpop.f32.mrb[0].mxu0
        %v651 = vadd.f32 0.0, %v650
        %v652 = vpop.f32.mrb[0].mxu0
        %653 = vmatprep.mubr.bf16.mxu0 0
        %654 = vmatmul.mubr.bf16.gmra.mrb[0].mxu0 %v564
        %v655 = vpop.f32.mrb[0].mxu0
        %v656 = vadd.f32 0.0, %v655
        %v657 = vpop.f32.mrb[0].mxu0
        %v658 = vpop.f32.mrb[0].mxu0
        %v659 = vadd.f32 0.0, %v658
        %v660 = vpop.f32.mrb[0].mxu0
        %661 = vmatprep.mubr.bf16.mxu0 0
        %662 = vmatmul.mubr.bf16.gmra.mrb[0].mxu0 %v567
        %v663 = vpop.f32.mrb[0].mxu0
        %v664 = vadd.f32 0.0, %v663
        %v665 = vpop.f32.mrb[0].mxu0
        %v666 = vpop.f32.mrb[0].mxu0
        %v667 = vadd.f32 0.0, %v666
        %v668 = vpop.f32.mrb[0].mxu0
        %669 = vmatprep.mubr.bf16.mxu0 0
        %670 = vmatmul.mubr.bf16.gmra.mrb[0].mxu0 %v570
        %v671 = vpop.f32.mrb[0].mxu0
        %v672 = vadd.f32 0.0, %v671
        %v673 = vpop.f32.mrb[0].mxu0
        %v674 = vpop.f32.mrb[0].mxu0
        %v675 = vadd.f32 0.0, %v674
        %v676 = vpop.f32.mrb[0].mxu0
        %677 = vmatprep.mubr.bf16.mxu0 0
        %678 = vmatmul.mubr.bf16.gmra.mrb[0].mxu0 %v573
        %v679 = vpop.f32.mrb[0].mxu0
        %v680 = vadd.f32 0.0, %v679
        %v681 = vpop.f32.mrb[0].mxu0
        %v682 = vpop.f32.mrb[0].mxu0
        %v683 = vadd.f32 0.0, %v682
        %v684 = vpop.f32.mrb[0].mxu0
        %685 = vmatprep.mubr.bf16.mxu0 0
        %686 = vmatmul.mubr.bf16.gmra.mrb[0].mxu0 %v576
        %v687 = vpop.f32.mrb[0].mxu0
        %v688 = vadd.f32 0.0, %v687
        %v689 = vpop.f32.mrb[0].mxu0
        %v690 = vpop.f32.mrb[0].mxu0
        %v691 = vadd.f32 0.0, %v690
        %v692 = vpop.f32.mrb[0].mxu0
        %693 = vmatprep.mubr.bf16.mxu0 0
        %694 = vmatmul.mubr.bf16.gmra.mrb[0].mxu0 %v579
        %v695 = vpop.f32.mrb[0].mxu0
        %v696 = vadd.f32 0.0, %v695
        %v697 = vpop.f32.mrb[0].mxu0
        %v698 = vpop.f32.mrb[0].mxu0
        %v699 = vadd.f32 0.0, %v698
        %v700 = vpop.f32.mrb[0].mxu0
        %701 = vmatprep.mubr.bf16.mxu0 0
        %702 = vmatmul.mubr.bf16.gmra.mrb[0].mxu0 %v582
        %v703 = vpop.f32.mrb[0].mxu0
        %v704 = vadd.f32 0.0, %v703
        %v705 = vpop.f32.mrb[0].mxu0
        %v706 = vpop.f32.mrb[0].mxu0
        %v707 = vadd.f32 0.0, %v706
        %v708 = vpop.f32.mrb[0].mxu0
        %709 = vmatprep.mubr.bf16.mxu0 0
        %710 = vmatmul.mubr.bf16.gmra.mrb[0].mxu0 %v585
        %v711 = vpop.f32.mrb[0].mxu0
        %v712 = vadd.f32 0.0, %v711
        %v713 = vpop.f32.mrb[0].mxu0
        %v714 = vpop.f32.mrb[0].mxu0
        %v715 = vadd.f32 0.0, %v714
        %v716 = vpop.f32.mrb[0].mxu0
        %717 = vmatprep.mubr.bf16.mxu0 0
        %718 = vmatmul.mubr.bf16.gmra.mrb[0].mxu0 %v588
        %v719 = vpop.f32.mrb[0].mxu0
        %v720 = vadd.f32 0.0, %v719
        %v721 = vpop.f32.mrb[0].mxu0
        %v722 = vpop.f32.mrb[0].mxu0
        %v723 = vadd.f32 0.0, %v722
        %v724 = vpop.f32.mrb[0].mxu0
        %725 = vmatprep.mubr.bf16.mxu0 0
        %726 = vmatmul.mubr.bf16.gmra.mrb[0].mxu0 %v591
        %v727 = vpop.f32.mrb[0].mxu0
        %v728 = vadd.f32 0.0, %v727
        %v729 = vpop.f32.mrb[0].mxu0
        %v730 = vpop.f32.mrb[0].mxu0
        %v731 = vadd.f32 0.0, %v730
        %v732 = vpop.f32.mrb[0].mxu0
        %733 = vmatprep.mubr.bf16.mxu0 0
        %734 = vmatmul.mubr.bf16.gmra.mrb[0].mxu0 %v594
        %v735 = vpop.f32.mrb[0].mxu0
        %v736 = vadd.f32 0.0, %v735
        %v737 = vpop.f32.mrb[0].mxu0
        %v738 = vpop.f32.mrb[0].mxu0
        %v739 = vadd.f32 0.0, %v738
        %v740 = vpop.f32.mrb[0].mxu0
        %741 = vmatprep.mubr.bf16.mxu0 0
        %742 = vmatmul.mubr.bf16.gmra.mrb[0].mxu0 %v597
        %v743 = vpop.f32.mrb[0].mxu0
        %v744 = vadd.f32 0.0, %v743
        %v745 = vpop.f32.mrb[0].mxu0
        %v746 = vpop.f32.mrb[0].mxu0
        %v747 = vadd.f32 0.0, %v746
        %v748 = vpop.f32.mrb[0].mxu0
        %749 = vmatprep.mubr.bf16.mxu0 0
        %750 = vmatmul.mubr.bf16.gmra.mrb[0].mxu0 %v600
        %v751 = vpop.f32.mrb[0].mxu0
        %v752 = vadd.f32 0.0, %v751
        %v753 = vpop.f32.mrb[0].mxu0
        %v754 = vpop.f32.mrb[0].mxu0
        %v755 = vadd.f32 0.0, %v754
        %v756 = vpop.f32.mrb[0].mxu0
        %757 = vmatprep.mubr.bf16.mxu0 0
        %758 = vmatmul.mubr.bf16.gmra.mrb[0].mxu0 %v603
        %v759 = vpop.f32.mrb[0].mxu0
        %v760 = vadd.f32 0.0, %v759
        %v761 = vpop.f32.mrb[0].mxu0
        %v762 = vpop.f32.mrb[0].mxu0
        %v763 = vadd.f32 0.0, %v762
        %v764 = vpop.f32.mrb[0].mxu0
        %765 = vdwg.mxu0
        %v774 = vunpack.c.l.b16 %v468
        %v775 = vunpack.c.l.b16 %v469
        %v776 = vunpack.c.l.b16 %v470
        %v777 = vunpack.c.l.b16 %v471
        %v778 = vunpack.c.l.b16 %v472
        %v779 = vunpack.c.l.b16 %v473
        %v780 = vunpack.c.l.b16 %v474
        %v781 = vunpack.c.l.b16 %v475
        %v782 = vpack.c.b16 %v775, %v774
        %v783 = vpack.c.b16 %v777, %v776
        %v784 = vpack.c.b16 %v779, %v778
        %v785 = vpack.c.b16 %v781, %v780
        %v791 = vsel %vm309, %v452, 0
        %v794 = vsel %vm309, %v453, 0
        %v797 = vsel %vm309, %v454, 0
        %v800 = vsel %vm309, %v455, 0
        %v803 = vsel %vm309, %v456, 0
        %v806 = vsel %vm309, %v457, 0
        %v809 = vsel %vm309, %v458, 0
        %v812 = vsel %vm309, %v459, 0
        %v815 = vsel %vm309, %v460, 0
        %v818 = vsel %vm309, %v461, 0
        %v821 = vsel %vm309, %v462, 0
        %v824 = vsel %vm309, %v463, 0
        %v827 = vsel %vm309, %v464, 0
        %v830 = vsel %vm309, %v465, 0
        %v833 = vsel %vm309, %v466, 0
        %v836 = vsel %vm309, %v467, 0
        %838 = vmatprep.subr.bf16.mxu0 0
        %839 = vmatpush1.bf16.msra.mxu0 %v782
        %840 = vmatprep.subr.bf16.mxu0 0
        %841 = vmatpush1.bf16.msra.mxu0 %v783
        %842 = vmatprep.subr.bf16.mxu0 0
        %843 = vmatpush1.bf16.msra.mxu0 %v784
        %844 = vmatprep.subr.bf16.mxu0 0
        %845 = vmatpush1.bf16.msra.mxu0 %v785
        %846 = vmatprep.subr.bf16.mxu0 0
        %847 = vmatpush1.bf16.msra.mxu0 0
        %848 = vmatprep.subr.bf16.mxu0 0
        %849 = vmatpush1.bf16.msra.mxu0 0
        %850 = vmatprep.subr.bf16.mxu0 0
        %851 = vmatpush1.bf16.msra.mxu0 0
        %852 = vmatprep.subr.bf16.mxu0 0
        %853 = vmatpush1.bf16.msra.mxu0 0
        %854 = vmatprep.subr.bf16.mxu0 0
        %855 = vmatpush1.bf16.msra.mxu0 0
        %856 = vmatprep.subr.bf16.mxu0 0
        %857 = vmatpush1.bf16.msra.mxu0 0
        %858 = vmatprep.subr.bf16.mxu0 0
        %859 = vmatpush1.bf16.msra.mxu0 0
        %860 = vmatprep.subr.bf16.mxu0 0
        %861 = vmatpush1.bf16.msra.mxu0 0
        %862 = vmatprep.subr.bf16.mxu0 0
        %863 = vmatpush1.bf16.msra.mxu0 0
        %864 = vmatprep.subr.bf16.mxu0 0
        %865 = vmatpush1.bf16.msra.mxu0 0
        %866 = vmatprep.subr.bf16.mxu0 0
        %867 = vmatpush1.bf16.msra.mxu0 0
        %868 = vmatprep.subr.bf16.mxu0 0
        %869 = vmatpush1.bf16.msra.mxu0 0
        %870 = vmatprep.mubr.bf16.mxu0 0
        %871 = vmatmul.mubr.bf16.gmra.mrb[0].mxu0 %v791
        %v872 = vpop.f32.mrb[0].mxu0
        %v873 = vadd.f32 %v640, %v872
        %v874 = vpop.f32.mrb[0].mxu0
        %v875 = vpop.f32.mrb[0].mxu0
        %v876 = vadd.f32 %v643, %v875
        %v877 = vpop.f32.mrb[0].mxu0
        %878 = vmatprep.mubr.bf16.mxu0 0
        %879 = vmatmul.mubr.bf16.gmra.mrb[0].mxu0 %v794
        %v880 = vpop.f32.mrb[0].mxu0
        %v881 = vadd.f32 %v648, %v880
        %v882 = vpop.f32.mrb[0].mxu0
        %v883 = vpop.f32.mrb[0].mxu0
        %v884 = vadd.f32 %v651, %v883
        %v885 = vpop.f32.mrb[0].mxu0
        %886 = vmatprep.mubr.bf16.mxu0 0
        %887 = vmatmul.mubr.bf16.gmra.mrb[0].mxu0 %v797
        %v888 = vpop.f32.mrb[0].mxu0
        %v889 = vadd.f32 %v656, %v888
        %v890 = vpop.f32.mrb[0].mxu0
        %v891 = vpop.f32.mrb[0].mxu0
        %v892 = vadd.f32 %v659, %v891
        %v893 = vpop.f32.mrb[0].mxu0
        %894 = vmatprep.mubr.bf16.mxu0 0
        %895 = vmatmul.mubr.bf16.gmra.mrb[0].mxu0 %v800
        %v896 = vpop.f32.mrb[0].mxu0
        %v897 = vadd.f32 %v664, %v896
        %v898 = vpop.f32.mrb[0].mxu0
        %v899 = vpop.f32.mrb[0].mxu0
        %v900 = vadd.f32 %v667, %v899
        %v901 = vpop.f32.mrb[0].mxu0
        %902 = vmatprep.mubr.bf16.mxu0 0
        %903 = vmatmul.mubr.bf16.gmra.mrb[0].mxu0 %v803
        %v904 = vpop.f32.mrb[0].mxu0
        %v905 = vadd.f32 %v672, %v904
        %v906 = vpop.f32.mrb[0].mxu0
        %v907 = vpop.f32.mrb[0].mxu0
        %v908 = vadd.f32 %v675, %v907
        %v909 = vpop.f32.mrb[0].mxu0
        %910 = vmatprep.mubr.bf16.mxu0 0
        %911 = vmatmul.mubr.bf16.gmra.mrb[0].mxu0 %v806
        %v912 = vpop.f32.mrb[0].mxu0
        %v913 = vadd.f32 %v680, %v912
        %v914 = vpop.f32.mrb[0].mxu0
        %v915 = vpop.f32.mrb[0].mxu0
        %v916 = vadd.f32 %v683, %v915
        %v917 = vpop.f32.mrb[0].mxu0
        %918 = vmatprep.mubr.bf16.mxu0 0
        %919 = vmatmul.mubr.bf16.gmra.mrb[0].mxu0 %v809
        %v920 = vpop.f32.mrb[0].mxu0
        %v921 = vadd.f32 %v688, %v920
        %v922 = vpop.f32.mrb[0].mxu0
        %v923 = vpop.f32.mrb[0].mxu0
        %v924 = vadd.f32 %v691, %v923
        %v925 = vpop.f32.mrb[0].mxu0
        %926 = vmatprep.mubr.bf16.mxu0 0
        %927 = vmatmul.mubr.bf16.gmra.mrb[0].mxu0 %v812
        %v928 = vpop.f32.mrb[0].mxu0
        %v929 = vadd.f32 %v696, %v928
        %v930 = vpop.f32.mrb[0].mxu0
        %v931 = vpop.f32.mrb[0].mxu0
        %v932 = vadd.f32 %v699, %v931
        %v933 = vpop.f32.mrb[0].mxu0
        %934 = vmatprep.mubr.bf16.mxu0 0
        %935 = vmatmul.mubr.bf16.gmra.mrb[0].mxu0 %v815
        %v936 = vpop.f32.mrb[0].mxu0
        %v937 = vadd.f32 %v704, %v936
        %v938 = vpop.f32.mrb[0].mxu0
        %v939 = vpop.f32.mrb[0].mxu0
        %v940 = vadd.f32 %v707, %v939
        %v941 = vpop.f32.mrb[0].mxu0
        %942 = vmatprep.mubr.bf16.mxu0 0
        %943 = vmatmul.mubr.bf16.gmra.mrb[0].mxu0 %v818
        %v944 = vpop.f32.mrb[0].mxu0
        %v945 = vadd.f32 %v712, %v944
        %v946 = vpop.f32.mrb[0].mxu0
        %v947 = vpop.f32.mrb[0].mxu0
        %v948 = vadd.f32 %v715, %v947
        %v949 = vpop.f32.mrb[0].mxu0
        %950 = vmatprep.mubr.bf16.mxu0 0
        %951 = vmatmul.mubr.bf16.gmra.mrb[0].mxu0 %v821
        %v952 = vpop.f32.mrb[0].mxu0
        %v953 = vadd.f32 %v720, %v952
        %v954 = vpop.f32.mrb[0].mxu0
        %v955 = vpop.f32.mrb[0].mxu0
        %v956 = vadd.f32 %v723, %v955
        %v957 = vpop.f32.mrb[0].mxu0
        %958 = vmatprep.mubr.bf16.mxu0 0
        %959 = vmatmul.mubr.bf16.gmra.mrb[0].mxu0 %v824
        %v960 = vpop.f32.mrb[0].mxu0
        %v961 = vadd.f32 %v728, %v960
        %v962 = vpop.f32.mrb[0].mxu0
        %v963 = vpop.f32.mrb[0].mxu0
        %v964 = vadd.f32 %v731, %v963
        %v965 = vpop.f32.mrb[0].mxu0
        %966 = vmatprep.mubr.bf16.mxu0 0
        %967 = vmatmul.mubr.bf16.gmra.mrb[0].mxu0 %v827
        %v968 = vpop.f32.mrb[0].mxu0
        %v969 = vadd.f32 %v736, %v968
        %v970 = vpop.f32.mrb[0].mxu0
        %v971 = vpop.f32.mrb[0].mxu0
        %v972 = vadd.f32 %v739, %v971
        %v973 = vpop.f32.mrb[0].mxu0
        %974 = vmatprep.mubr.bf16.mxu0 0
        %975 = vmatmul.mubr.bf16.gmra.mrb[0].mxu0 %v830
        %v976 = vpop.f32.mrb[0].mxu0
        %v977 = vadd.f32 %v744, %v976
        %v978 = vpop.f32.mrb[0].mxu0
        %v979 = vpop.f32.mrb[0].mxu0
        %v980 = vadd.f32 %v747, %v979
        %v981 = vpop.f32.mrb[0].mxu0
        %982 = vmatprep.mubr.bf16.mxu0 0
        %983 = vmatmul.mubr.bf16.gmra.mrb[0].mxu0 %v833
        %v984 = vpop.f32.mrb[0].mxu0
        %v985 = vadd.f32 %v752, %v984
        %v986 = vpop.f32.mrb[0].mxu0
        %v987 = vpop.f32.mrb[0].mxu0
        %v988 = vadd.f32 %v755, %v987
        %v989 = vpop.f32.mrb[0].mxu0
        %990 = vmatprep.mubr.bf16.mxu0 0
        %991 = vmatmul.mubr.bf16.gmra.mrb[0].mxu0 %v836
        %v992 = vpop.f32.mrb[0].mxu0
        %v993 = vadd.f32 %v760, %v992
        %v994 = vpop.f32.mrb[0].mxu0
        %v995 = vpop.f32.mrb[0].mxu0
        %v996 = vadd.f32 %v763, %v995
        %v997 = vpop.f32.mrb[0].mxu0
        %998 = vdwg.mxu0
        %v999 = vld [vmem:[#allocation2 + $0x2] sm:$0xff]
        %v1000 = vld [vmem:[#allocation2 + $0xa] sm:$0xff]
        %v1001 = vld [vmem:[#allocation2 + $0x1a] sm:$0xff]
        %v1002 = vld [vmem:[#allocation2 + $0x22] sm:$0xff]
        %v1003 = vld [vmem:[#allocation2 + $0x32] sm:$0xff]
        %v1004 = vld [vmem:[#allocation2 + $0x3a] sm:$0xff]
        %v1005 = vld [vmem:[#allocation2 + $0x4a] sm:$0xff]
        %v1006 = vld [vmem:[#allocation2 + $0x52] sm:$0xff]
        %v1007 = vld [vmem:[#allocation2 + $0x62] sm:$0xff]
        %v1008 = vld [vmem:[#allocation2 + $0x6a] sm:$0xff]
        %v1009 = vld [vmem:[#allocation2 + $0x7a] sm:$0xff]
        %v1010 = vld [vmem:[#allocation2 + $0x82] sm:$0xff]
        %v1011 = vld [vmem:[#allocation2 + $0x92] sm:$0xff]
        %v1012 = vld [vmem:[#allocation2 + $0x9a] sm:$0xff]
        %v1013 = vld [vmem:[#allocation2 + $0xaa] sm:$0xff]
        %v1014 = vld [vmem:[#allocation2 + $0xb2] sm:$0xff]
        %v1015 = vld [vmem:[#allocation2 + $0xc2] sm:$0xff]
        %v1016 = vld [vmem:[#allocation2 + $0xca] sm:$0xff]
        %v1017 = vld [vmem:[#allocation2 + $0xda] sm:$0xff]
        %v1018 = vld [vmem:[#allocation2 + $0xe2] sm:$0xff]
        %v1019 = vld [vmem:[#allocation2 + $0xf2] sm:$0xff]
        %v1020 = vld [vmem:[#allocation2 + $0xfa] sm:$0xff]
        %v1021 = vld [vmem:[#allocation2 + $0x10a] sm:$0xff]
        %v1022 = vld [vmem:[#allocation2 + $0x112] sm:$0xff]
        %v1023 = vld [vmem:[#allocation2 + $0x122] sm:$0xff]
        %v1024 = vld [vmem:[#allocation2 + $0x12a] sm:$0xff]
        %v1025 = vld [vmem:[#allocation2 + $0x13a] sm:$0xff]
        %v1026 = vld [vmem:[#allocation2 + $0x142] sm:$0xff]
        %v1027 = vld [vmem:[#allocation2 + $0x152] sm:$0xff]
        %v1028 = vld [vmem:[#allocation2 + $0x15a] sm:$0xff]
        %v1029 = vld [vmem:[#allocation2 + $0x16a] sm:$0xff]
        %v1030 = vld [vmem:[#allocation2 + $0x172] sm:$0xff]
        %v1031 = vpack.c.bf16 %v1000, %v999
        %v1032 = vpack.c.bf16 %v1002, %v1001
        %v1033 = vpack.c.bf16 %v1004, %v1003
        %v1034 = vpack.c.bf16 %v1006, %v1005
        %v1035 = vpack.c.bf16 %v1008, %v1007
        %v1036 = vpack.c.bf16 %v1010, %v1009
        %v1037 = vpack.c.bf16 %v1012, %v1011
        %v1038 = vpack.c.bf16 %v1014, %v1013
        %v1039 = vpack.c.bf16 %v1016, %v1015
        %v1040 = vpack.c.bf16 %v1018, %v1017
        %v1041 = vpack.c.bf16 %v1020, %v1019
        %v1042 = vpack.c.bf16 %v1022, %v1021
        %v1043 = vpack.c.bf16 %v1024, %v1023
        %v1044 = vpack.c.bf16 %v1026, %v1025
        %v1045 = vpack.c.bf16 %v1028, %v1027
        %v1046 = vpack.c.bf16 %v1030, %v1029
        %s1047 = scalar_lea.vmem [#allocation8], 64
        %v1048 = vld [vmem:[%s1047] sm:$0xf]
        %v1049 = vld [vmem:[%s1047 + $0x4] sm:$0xf]
        %v1050 = vld [vmem:[%s1047 + $0x8] sm:$0xf]
        %v1051 = vld [vmem:[%s1047 + $0xc] sm:$0xf]
        %v1052 = vld [vmem:[%s1047 + $0x10] sm:$0xf]
        %v1053 = vld [vmem:[%s1047 + $0x14] sm:$0xf]
        %v1054 = vld [vmem:[%s1047 + $0x18] sm:$0xf]
        %v1055 = vld [vmem:[%s1047 + $0x1c] sm:$0xf]
        %v1064 = vunpack.c.l.b16 %v1048
        %v1065 = vunpack.c.l.b16 %v1049
        %v1066 = vunpack.c.l.b16 %v1050
        %v1067 = vunpack.c.l.b16 %v1051
        %v1068 = vunpack.c.l.b16 %v1052
        %v1069 = vunpack.c.l.b16 %v1053
        %v1070 = vunpack.c.l.b16 %v1054
        %v1071 = vunpack.c.l.b16 %v1055
        %v1072 = vpack.c.b16 %v1065, %v1064
        %v1073 = vpack.c.b16 %v1067, %v1066
        %v1074 = vpack.c.b16 %v1069, %v1068
        %v1075 = vpack.c.b16 %v1071, %v1070
        %v1081 = vsel %vm309, %v1031, 0
        %v1084 = vsel %vm309, %v1032, 0
        %v1087 = vsel %vm309, %v1033, 0
        %v1090 = vsel %vm309, %v1034, 0
        %v1093 = vsel %vm309, %v1035, 0
        %v1096 = vsel %vm309, %v1036, 0
        %v1099 = vsel %vm309, %v1037, 0
        %v1102 = vsel %vm309, %v1038, 0
        %v1105 = vsel %vm309, %v1039, 0
        %v1108 = vsel %vm309, %v1040, 0
        %v1111 = vsel %vm309, %v1041, 0
        %v1114 = vsel %vm309, %v1042, 0
        %v1117 = vsel %vm309, %v1043, 0
        %v1120 = vsel %vm309, %v1044, 0
        %v1123 = vsel %vm309, %v1045, 0
        %v1126 = vsel %vm309, %v1046, 0
        %1128 = vmatprep.subr.bf16.mxu0 0
        %1129 = vmatpush1.bf16.msra.mxu0 %v1072
        %1130 = vmatprep.subr.bf16.mxu0 0
        %1131 = vmatpush1.bf16.msra.mxu0 %v1073
        %1132 = vmatprep.subr.bf16.mxu0 0
        %1133 = vmatpush1.bf16.msra.mxu0 %v1074
        %1134 = vmatprep.subr.bf16.mxu0 0
        %1135 = vmatpush1.bf16.msra.mxu0 %v1075
        %1136 = vmatprep.subr.bf16.mxu0 0
        %1137 = vmatpush1.bf16.msra.mxu0 0
        %1138 = vmatprep.subr.bf16.mxu0 0
        %1139 = vmatpush1.bf16.msra.mxu0 0
        %1140 = vmatprep.subr.bf16.mxu0 0
        %1141 = vmatpush1.bf16.msra.mxu0 0
        %1142 = vmatprep.subr.bf16.mxu0 0
        %1143 = vmatpush1.bf16.msra.mxu0 0
        %1144 = vmatprep.subr.bf16.mxu0 0
        %1145 = vmatpush1.bf16.msra.mxu0 0
        %1146 = vmatprep.subr.bf16.mxu0 0
        %1147 = vmatpush1.bf16.msra.mxu0 0
        %1148 = vmatprep.subr.bf16.mxu0 0
        %1149 = vmatpush1.bf16.msra.mxu0 0
        %1150 = vmatprep.subr.bf16.mxu0 0
        %1151 = vmatpush1.bf16.msra.mxu0 0
        %1152 = vmatprep.subr.bf16.mxu0 0
        %1153 = vmatpush1.bf16.msra.mxu0 0
        %1154 = vmatprep.subr.bf16.mxu0 0
        %1155 = vmatpush1.bf16.msra.mxu0 0
        %1156 = vmatprep.subr.bf16.mxu0 0
        %1157 = vmatpush1.bf16.msra.mxu0 0
        %1158 = vmatprep.subr.bf16.mxu0 0
        %1159 = vmatpush1.bf16.msra.mxu0 0
        %1160 = vmatprep.mubr.bf16.mxu0 0
        %1161 = vmatmul.mubr.bf16.gmra.mrb[0].mxu0 %v1081
        %v1162 = vpop.f32.mrb[0].mxu0
        %v1163 = vadd.f32 0.0, %v1162
        %v1164 = vpop.f32.mrb[0].mxu0
        %v1165 = vpop.f32.mrb[0].mxu0
        %v1166 = vadd.f32 0.0, %v1165
        %v1167 = vpop.f32.mrb[0].mxu0
        %1168 = vmatprep.mubr.bf16.mxu0 0
        %1169 = vmatmul.mubr.bf16.gmra.mrb[0].mxu0 %v1084
        %v1170 = vpop.f32.mrb[0].mxu0
        %v1171 = vadd.f32 0.0, %v1170
        %v1172 = vpop.f32.mrb[0].mxu0
        %v1173 = vpop.f32.mrb[0].mxu0
        %v1174 = vadd.f32 0.0, %v1173
        %v1175 = vpop.f32.mrb[0].mxu0
        %1176 = vmatprep.mubr.bf16.mxu0 0
        %1177 = vmatmul.mubr.bf16.gmra.mrb[0].mxu0 %v1087
        %v1178 = vpop.f32.mrb[0].mxu0
        %v1179 = vadd.f32 0.0, %v1178
        %v1180 = vpop.f32.mrb[0].mxu0
        %v1181 = vpop.f32.mrb[0].mxu0
        %v1182 = vadd.f32 0.0, %v1181
        %v1183 = vpop.f32.mrb[0].mxu0
        %1184 = vmatprep.mubr.bf16.mxu0 0
        %1185 = vmatmul.mubr.bf16.gmra.mrb[0].mxu0 %v1090
        %v1186 = vpop.f32.mrb[0].mxu0
        %v1187 = vadd.f32 0.0, %v1186
        %v1188 = vpop.f32.mrb[0].mxu0
        %v1189 = vpop.f32.mrb[0].mxu0
        %v1190 = vadd.f32 0.0, %v1189
        %v1191 = vpop.f32.mrb[0].mxu0
        %1192 = vmatprep.mubr.bf16.mxu0 0
        %1193 = vmatmul.mubr.bf16.gmra.mrb[0].mxu0 %v1093
        %v1194 = vpop.f32.mrb[0].mxu0
        %v1195 = vadd.f32 0.0, %v1194
        %v1196 = vpop.f32.mrb[0].mxu0
        %v1197 = vpop.f32.mrb[0].mxu0
        %v1198 = vadd.f32 0.0, %v1197
        %v1199 = vpop.f32.mrb[0].mxu0
        %1200 = vmatprep.mubr.bf16.mxu0 0
        %1201 = vmatmul.mubr.bf16.gmra.mrb[0].mxu0 %v1096
        %v1202 = vpop.f32.mrb[0].mxu0
        %v1203 = vadd.f32 0.0, %v1202
        %v1204 = vpop.f32.mrb[0].mxu0
        %v1205 = vpop.f32.mrb[0].mxu0
        %v1206 = vadd.f32 0.0, %v1205
        %v1207 = vpop.f32.mrb[0].mxu0
        %1208 = vmatprep.mubr.bf16.mxu0 0
        %1209 = vmatmul.mubr.bf16.gmra.mrb[0].mxu0 %v1099
        %v1210 = vpop.f32.mrb[0].mxu0
        %v1211 = vadd.f32 0.0, %v1210
        %v1212 = vpop.f32.mrb[0].mxu0
        %v1213 = vpop.f32.mrb[0].mxu0
        %v1214 = vadd.f32 0.0, %v1213
        %v1215 = vpop.f32.mrb[0].mxu0
        %1216 = vmatprep.mubr.bf16.mxu0 0
        %1217 = vmatmul.mubr.bf16.gmra.mrb[0].mxu0 %v1102
        %v1218 = vpop.f32.mrb[0].mxu0
        %v1219 = vadd.f32 0.0, %v1218
        %v1220 = vpop.f32.mrb[0].mxu0
        %v1221 = vpop.f32.mrb[0].mxu0
        %v1222 = vadd.f32 0.0, %v1221
        %v1223 = vpop.f32.mrb[0].mxu0
        %1224 = vmatprep.mubr.bf16.mxu0 0
        %1225 = vmatmul.mubr.bf16.gmra.mrb[0].mxu0 %v1105
        %v1226 = vpop.f32.mrb[0].mxu0
        %v1227 = vadd.f32 0.0, %v1226
        %v1228 = vpop.f32.mrb[0].mxu0
        %v1229 = vpop.f32.mrb[0].mxu0
        %v1230 = vadd.f32 0.0, %v1229
        %v1231 = vpop.f32.mrb[0].mxu0
        %1232 = vmatprep.mubr.bf16.mxu0 0
        %1233 = vmatmul.mubr.bf16.gmra.mrb[0].mxu0 %v1108
        %v1234 = vpop.f32.mrb[0].mxu0
        %v1235 = vadd.f32 0.0, %v1234
        %v1236 = vpop.f32.mrb[0].mxu0
        %v1237 = vpop.f32.mrb[0].mxu0
        %v1238 = vadd.f32 0.0, %v1237
        %v1239 = vpop.f32.mrb[0].mxu0
        %1240 = vmatprep.mubr.bf16.mxu0 0
        %1241 = vmatmul.mubr.bf16.gmra.mrb[0].mxu0 %v1111
        %v1242 = vpop.f32.mrb[0].mxu0
        %v1243 = vadd.f32 0.0, %v1242
        %v1244 = vpop.f32.mrb[0].mxu0
        %v1245 = vpop.f32.mrb[0].mxu0
        %v1246 = vadd.f32 0.0, %v1245
        %v1247 = vpop.f32.mrb[0].mxu0
        %1248 = vmatprep.mubr.bf16.mxu0 0
        %1249 = vmatmul.mubr.bf16.gmra.mrb[0].mxu0 %v1114
        %v1250 = vpop.f32.mrb[0].mxu0
        %v1251 = vadd.f32 0.0, %v1250
        %v1252 = vpop.f32.mrb[0].mxu0
        %v1253 = vpop.f32.mrb[0].mxu0
        %v1254 = vadd.f32 0.0, %v1253
        %v1255 = vpop.f32.mrb[0].mxu0
        %1256 = vmatprep.mubr.bf16.mxu0 0
        %1257 = vmatmul.mubr.bf16.gmra.mrb[0].mxu0 %v1117
        %v1258 = vpop.f32.mrb[0].mxu0
        %v1259 = vadd.f32 0.0, %v1258
        %v1260 = vpop.f32.mrb[0].mxu0
        %v1261 = vpop.f32.mrb[0].mxu0
        %v1262 = vadd.f32 0.0, %v1261
        %v1263 = vpop.f32.mrb[0].mxu0
        %1264 = vmatprep.mubr.bf16.mxu0 0
        %1265 = vmatmul.mubr.bf16.gmra.mrb[0].mxu0 %v1120
        %v1266 = vpop.f32.mrb[0].mxu0
        %v1267 = vadd.f32 0.0, %v1266
        %v1268 = vpop.f32.mrb[0].mxu0
        %v1269 = vpop.f32.mrb[0].mxu0
        %v1270 = vadd.f32 0.0, %v1269
        %v1271 = vpop.f32.mrb[0].mxu0
        %1272 = vmatprep.mubr.bf16.mxu0 0
        %1273 = vmatmul.mubr.bf16.gmra.mrb[0].mxu0 %v1123
        %v1274 = vpop.f32.mrb[0].mxu0
        %v1275 = vadd.f32 0.0, %v1274
        %v1276 = vpop.f32.mrb[0].mxu0
        %v1277 = vpop.f32.mrb[0].mxu0
        %v1278 = vadd.f32 0.0, %v1277
        %v1279 = vpop.f32.mrb[0].mxu0
        %1280 = vmatprep.mubr.bf16.mxu0 0
        %1281 = vmatmul.mubr.bf16.gmra.mrb[0].mxu0 %v1126
        %v1282 = vpop.f32.mrb[0].mxu0
        %v1283 = vadd.f32 0.0, %v1282
        %v1284 = vpop.f32.mrb[0].mxu0
        %v1285 = vpop.f32.mrb[0].mxu0
        %v1286 = vadd.f32 0.0, %v1285
        %v1287 = vpop.f32.mrb[0].mxu0
        %1288 = vdwg.mxu0
        %v1289 = vadd.f32 %v873, %v1163
        %v1290 = vadd.f32 %v876, %v1166
        %v1291 = vadd.f32 %v881, %v1171
        %v1292 = vadd.f32 %v884, %v1174
        %v1293 = vadd.f32 %v889, %v1179
        %v1294 = vadd.f32 %v892, %v1182
        %v1295 = vadd.f32 %v897, %v1187
        %v1296 = vadd.f32 %v900, %v1190
        %v1297 = vadd.f32 %v905, %v1195
        %v1298 = vadd.f32 %v908, %v1198
        %v1299 = vadd.f32 %v913, %v1203
        %v1300 = vadd.f32 %v916, %v1206
        %v1301 = vadd.f32 %v921, %v1211
        %v1302 = vadd.f32 %v924, %v1214
        %v1303 = vadd.f32 %v929, %v1219
        %v1304 = vadd.f32 %v932, %v1222
        %v1305 = vadd.f32 %v937, %v1227
        %v1306 = vadd.f32 %v940, %v1230
        %v1307 = vadd.f32 %v945, %v1235
        %v1308 = vadd.f32 %v948, %v1238
        %v1309 = vadd.f32 %v953, %v1243
        %v1310 = vadd.f32 %v956, %v1246
        %v1311 = vadd.f32 %v961, %v1251
        %v1312 = vadd.f32 %v964, %v1254
        %v1313 = vadd.f32 %v969, %v1259
        %v1314 = vadd.f32 %v972, %v1262
        %v1315 = vadd.f32 %v977, %v1267
        %v1316 = vadd.f32 %v980, %v1270
        %v1317 = vadd.f32 %v985, %v1275
        %v1318 = vadd.f32 %v988, %v1278
        %v1319 = vadd.f32 %v993, %v1283
        %v1320 = vadd.f32 %v996, %v1286
        %v1321 = vld [vmem:[%s387] sm:$0xff]
        %v1322 = vld [vmem:[%s387 + $0x8] sm:$0xff]
        %v1323 = vld [vmem:[%s387 + $0x18] sm:$0xff]
        %v1324 = vld [vmem:[%s387 + $0x20] sm:$0xff]
        %v1325 = vld [vmem:[%s387 + $0x30] sm:$0xff]
        %v1326 = vld [vmem:[%s387 + $0x38] sm:$0xff]
        %v1327 = vld [vmem:[%s387 + $0x48] sm:$0xff]
        %v1328 = vld [vmem:[%s387 + $0x50] sm:$0xff]
        %v1329 = vld [vmem:[%s387 + $0x60] sm:$0xff]
        %v1330 = vld [vmem:[%s387 + $0x68] sm:$0xff]
        %v1331 = vld [vmem:[%s387 + $0x78] sm:$0xff]
        %v1332 = vld [vmem:[%s387 + $0x80] sm:$0xff]
        %v1333 = vld [vmem:[%s387 + $0x90] sm:$0xff]
        %v1334 = vld [vmem:[%s387 + $0x98] sm:$0xff]
        %v1335 = vld [vmem:[%s387 + $0xa8] sm:$0xff]
        %v1336 = vld [vmem:[%s387 + $0xb0] sm:$0xff]
        %v1337 = vld [vmem:[%s387 + $0xc0] sm:$0xff]
        %v1338 = vld [vmem:[%s387 + $0xc8] sm:$0xff]
        %v1339 = vld [vmem:[%s387 + $0xd8] sm:$0xff]
        %v1340 = vld [vmem:[%s387 + $0xe0] sm:$0xff]
        %v1341 = vld [vmem:[%s387 + $0xf0] sm:$0xff]
        %v1342 = vld [vmem:[%s387 + $0xf8] sm:$0xff]
        %v1343 = vld [vmem:[%s387 + $0x108] sm:$0xff]
        %v1344 = vld [vmem:[%s387 + $0x110] sm:$0xff]
        %v1345 = vld [vmem:[%s387 + $0x120] sm:$0xff]
        %v1346 = vld [vmem:[%s387 + $0x128] sm:$0xff]
        %v1347 = vld [vmem:[%s387 + $0x138] sm:$0xff]
        %v1348 = vld [vmem:[%s387 + $0x140] sm:$0xff]
        %v1349 = vld [vmem:[%s387 + $0x150] sm:$0xff]
        %v1350 = vld [vmem:[%s387 + $0x158] sm:$0xff]
        %v1351 = vld [vmem:[%s387 + $0x168] sm:$0xff]
        %v1352 = vld [vmem:[%s387 + $0x170] sm:$0xff]
        %v1353 = vpack.c.bf16 %v1322, %v1321
        %v1354 = vpack.c.bf16 %v1324, %v1323
        %v1355 = vpack.c.bf16 %v1326, %v1325
        %v1356 = vpack.c.bf16 %v1328, %v1327
        %v1357 = vpack.c.bf16 %v1330, %v1329
        %v1358 = vpack.c.bf16 %v1332, %v1331
        %v1359 = vpack.c.bf16 %v1334, %v1333
        %v1360 = vpack.c.bf16 %v1336, %v1335
        %v1361 = vpack.c.bf16 %v1338, %v1337
        %v1362 = vpack.c.bf16 %v1340, %v1339
        %v1363 = vpack.c.bf16 %v1342, %v1341
        %v1364 = vpack.c.bf16 %v1344, %v1343
        %v1365 = vpack.c.bf16 %v1346, %v1345
        %v1366 = vpack.c.bf16 %v1348, %v1347
        %v1367 = vpack.c.bf16 %v1350, %v1349
        %v1368 = vpack.c.bf16 %v1352, %v1351
        %s1369 = scalar_lea.vmem [#allocation8], 96
        %v1370 = vld [vmem:[%s1369] sm:$0xf]
        %v1371 = vld [vmem:[%s1369 + $0x4] sm:$0xf]
        %v1372 = vld [vmem:[%s1369 + $0x8] sm:$0xf]
        %v1373 = vld [vmem:[%s1369 + $0xc] sm:$0xf]
        %v1374 = vld [vmem:[%s1369 + $0x10] sm:$0xf]
        %v1375 = vld [vmem:[%s1369 + $0x14] sm:$0xf]
        %v1376 = vld [vmem:[%s1369 + $0x18] sm:$0xf]
        %v1377 = vld [vmem:[%s1369 + $0x1c] sm:$0xf]
        %v1386 = vunpack.c.l.b16 %v1370
        %v1387 = vunpack.c.l.b16 %v1371
        %v1388 = vunpack.c.l.b16 %v1372
        %v1389 = vunpack.c.l.b16 %v1373
        %v1390 = vunpack.c.l.b16 %v1374
        %v1391 = vunpack.c.l.b16 %v1375
        %v1392 = vunpack.c.l.b16 %v1376
        %v1393 = vunpack.c.l.b16 %v1377
        %v1394 = vpack.c.b16 %v1387, %v1386
        %v1395 = vpack.c.b16 %v1389, %v1388
        %v1396 = vpack.c.b16 %v1391, %v1390
        %v1397 = vpack.c.b16 %v1393, %v1392
        %v1403 = vsel %vm309, %v1353, 0
        %v1406 = vsel %vm309, %v1354, 0
        %v1409 = vsel %vm309, %v1355, 0
        %v1412 = vsel %vm309, %v1356, 0
        %v1415 = vsel %vm309, %v1357, 0
        %v1418 = vsel %vm309, %v1358, 0
        %v1421 = vsel %vm309, %v1359, 0
        %v1424 = vsel %vm309, %v1360, 0
        %v1427 = vsel %vm309, %v1361, 0
        %v1430 = vsel %vm309, %v1362, 0
        %v1433 = vsel %vm309, %v1363, 0
        %v1436 = vsel %vm309, %v1364, 0
        %v1439 = vsel %vm309, %v1365, 0
        %v1442 = vsel %vm309, %v1366, 0
        %v1445 = vsel %vm309, %v1367, 0
        %v1448 = vsel %vm309, %v1368, 0
        %1450 = vmatprep.subr.bf16.mxu0 0
        %1451 = vmatpush1.bf16.msra.mxu0 %v1394
        %1452 = vmatprep.subr.bf16.mxu0 0
        %1453 = vmatpush1.bf16.msra.mxu0 %v1395
        %1454 = vmatprep.subr.bf16.mxu0 0
        %1455 = vmatpush1.bf16.msra.mxu0 %v1396
        %1456 = vmatprep.subr.bf16.mxu0 0
        %1457 = vmatpush1.bf16.msra.mxu0 %v1397
        %1458 = vmatprep.subr.bf16.mxu0 0
        %1459 = vmatpush1.bf16.msra.mxu0 0
        %1460 = vmatprep.subr.bf16.mxu0 0
        %1461 = vmatpush1.bf16.msra.mxu0 0
        %1462 = vmatprep.subr.bf16.mxu0 0
        %1463 = vmatpush1.bf16.msra.mxu0 0
        %1464 = vmatprep.subr.bf16.mxu0 0
        %1465 = vmatpush1.bf16.msra.mxu0 0
        %1466 = vmatprep.subr.bf16.mxu0 0
        %1467 = vmatpush1.bf16.msra.mxu0 0
        %1468 = vmatprep.subr.bf16.mxu0 0
        %1469 = vmatpush1.bf16.msra.mxu0 0
        %1470 = vmatprep.subr.bf16.mxu0 0
        %1471 = vmatpush1.bf16.msra.mxu0 0
        %1472 = vmatprep.subr.bf16.mxu0 0
        %1473 = vmatpush1.bf16.msra.mxu0 0
        %1474 = vmatprep.subr.bf16.mxu0 0
        %1475 = vmatpush1.bf16.msra.mxu0 0
        %1476 = vmatprep.subr.bf16.mxu0 0
        %1477 = vmatpush1.bf16.msra.mxu0 0
        %1478 = vmatprep.subr.bf16.mxu0 0
        %1479 = vmatpush1.bf16.msra.mxu0 0
        %1480 = vmatprep.subr.bf16.mxu0 0
        %1481 = vmatpush1.bf16.msra.mxu0 0
        %1482 = vmatprep.mubr.bf16.mxu0 0
        %1483 = vmatmul.mubr.bf16.gmra.mrb[0].mxu0 %v1403
        %v1484 = vpop.f32.mrb[0].mxu0
        %v1485 = vadd.f32 0.0, %v1484
        %v1486 = vpop.f32.mrb[0].mxu0
        %v1487 = vpop.f32.mrb[0].mxu0
        %v1488 = vadd.f32 0.0, %v1487
        %v1489 = vpop.f32.mrb[0].mxu0
        %1490 = vmatprep.mubr.bf16.mxu0 0
        %1491 = vmatmul.mubr.bf16.gmra.mrb[0].mxu0 %v1406
        %v1492 = vpop.f32.mrb[0].mxu0
        %v1493 = vadd.f32 0.0, %v1492
        %v1494 = vpop.f32.mrb[0].mxu0
        %v1495 = vpop.f32.mrb[0].mxu0
        %v1496 = vadd.f32 0.0, %v1495
        %v1497 = vpop.f32.mrb[0].mxu0
        %1498 = vmatprep.mubr.bf16.mxu0 0
        %1499 = vmatmul.mubr.bf16.gmra.mrb[0].mxu0 %v1409
        %v1500 = vpop.f32.mrb[0].mxu0
        %v1501 = vadd.f32 0.0, %v1500
        %v1502 = vpop.f32.mrb[0].mxu0
        %v1503 = vpop.f32.mrb[0].mxu0
        %v1504 = vadd.f32 0.0, %v1503
        %v1505 = vpop.f32.mrb[0].mxu0
        %1506 = vmatprep.mubr.bf16.mxu0 0
        %1507 = vmatmul.mubr.bf16.gmra.mrb[0].mxu0 %v1412
        %v1508 = vpop.f32.mrb[0].mxu0
        %v1509 = vadd.f32 0.0, %v1508
        %v1510 = vpop.f32.mrb[0].mxu0
        %v1511 = vpop.f32.mrb[0].mxu0
        %v1512 = vadd.f32 0.0, %v1511
        %v1513 = vpop.f32.mrb[0].mxu0
        %1514 = vmatprep.mubr.bf16.mxu0 0
        %1515 = vmatmul.mubr.bf16.gmra.mrb[0].mxu0 %v1415
        %v1516 = vpop.f32.mrb[0].mxu0
        %v1517 = vadd.f32 0.0, %v1516
        %v1518 = vpop.f32.mrb[0].mxu0
        %v1519 = vpop.f32.mrb[0].mxu0
        %v1520 = vadd.f32 0.0, %v1519
        %v1521 = vpop.f32.mrb[0].mxu0
        %1522 = vmatprep.mubr.bf16.mxu0 0
        %1523 = vmatmul.mubr.bf16.gmra.mrb[0].mxu0 %v1418
        %v1524 = vpop.f32.mrb[0].mxu0
        %v1525 = vadd.f32 0.0, %v1524
        %v1526 = vpop.f32.mrb[0].mxu0
        %v1527 = vpop.f32.mrb[0].mxu0
        %v1528 = vadd.f32 0.0, %v1527
        %v1529 = vpop.f32.mrb[0].mxu0
        %1530 = vmatprep.mubr.bf16.mxu0 0
        %1531 = vmatmul.mubr.bf16.gmra.mrb[0].mxu0 %v1421
        %v1532 = vpop.f32.mrb[0].mxu0
        %v1533 = vadd.f32 0.0, %v1532
        %v1534 = vpop.f32.mrb[0].mxu0
        %v1535 = vpop.f32.mrb[0].mxu0
        %v1536 = vadd.f32 0.0, %v1535
        %v1537 = vpop.f32.mrb[0].mxu0
        %1538 = vmatprep.mubr.bf16.mxu0 0
        %1539 = vmatmul.mubr.bf16.gmra.mrb[0].mxu0 %v1424
        %v1540 = vpop.f32.mrb[0].mxu0
        %v1541 = vadd.f32 0.0, %v1540
        %v1542 = vpop.f32.mrb[0].mxu0
        %v1543 = vpop.f32.mrb[0].mxu0
        %v1544 = vadd.f32 0.0, %v1543
        %v1545 = vpop.f32.mrb[0].mxu0
        %1546 = vmatprep.mubr.bf16.mxu0 0
        %1547 = vmatmul.mubr.bf16.gmra.mrb[0].mxu0 %v1427
        %v1548 = vpop.f32.mrb[0].mxu0
        %v1549 = vadd.f32 0.0, %v1548
        %v1550 = vpop.f32.mrb[0].mxu0
        %v1551 = vpop.f32.mrb[0].mxu0
        %v1552 = vadd.f32 0.0, %v1551
        %v1553 = vpop.f32.mrb[0].mxu0
        %1554 = vmatprep.mubr.bf16.mxu0 0
        %1555 = vmatmul.mubr.bf16.gmra.mrb[0].mxu0 %v1430
        %v1556 = vpop.f32.mrb[0].mxu0
        %v1557 = vadd.f32 0.0, %v1556
        %v1558 = vpop.f32.mrb[0].mxu0
        %v1559 = vpop.f32.mrb[0].mxu0
        %v1560 = vadd.f32 0.0, %v1559
        %v1561 = vpop.f32.mrb[0].mxu0
        %1562 = vmatprep.mubr.bf16.mxu0 0
        %1563 = vmatmul.mubr.bf16.gmra.mrb[0].mxu0 %v1433
        %v1564 = vpop.f32.mrb[0].mxu0
        %v1565 = vadd.f32 0.0, %v1564
        %v1566 = vpop.f32.mrb[0].mxu0
        %v1567 = vpop.f32.mrb[0].mxu0
        %v1568 = vadd.f32 0.0, %v1567
        %v1569 = vpop.f32.mrb[0].mxu0
        %1570 = vmatprep.mubr.bf16.mxu0 0
        %1571 = vmatmul.mubr.bf16.gmra.mrb[0].mxu0 %v1436
        %v1572 = vpop.f32.mrb[0].mxu0
        %v1573 = vadd.f32 0.0, %v1572
        %v1574 = vpop.f32.mrb[0].mxu0
        %v1575 = vpop.f32.mrb[0].mxu0
        %v1576 = vadd.f32 0.0, %v1575
        %v1577 = vpop.f32.mrb[0].mxu0
        %1578 = vmatprep.mubr.bf16.mxu0 0
        %1579 = vmatmul.mubr.bf16.gmra.mrb[0].mxu0 %v1439
        %v1580 = vpop.f32.mrb[0].mxu0
        %v1581 = vadd.f32 0.0, %v1580
        %v1582 = vpop.f32.mrb[0].mxu0
        %v1583 = vpop.f32.mrb[0].mxu0
        %v1584 = vadd.f32 0.0, %v1583
        %v1585 = vpop.f32.mrb[0].mxu0
        %1586 = vmatprep.mubr.bf16.mxu0 0
        %1587 = vmatmul.mubr.bf16.gmra.mrb[0].mxu0 %v1442
        %v1588 = vpop.f32.mrb[0].mxu0
        %v1589 = vadd.f32 0.0, %v1588
        %v1590 = vpop.f32.mrb[0].mxu0
        %v1591 = vpop.f32.mrb[0].mxu0
        %v1592 = vadd.f32 0.0, %v1591
        %v1593 = vpop.f32.mrb[0].mxu0
        %1594 = vmatprep.mubr.bf16.mxu0 0
        %1595 = vmatmul.mubr.bf16.gmra.mrb[0].mxu0 %v1445
        %v1596 = vpop.f32.mrb[0].mxu0
        %v1597 = vadd.f32 0.0, %v1596
        %v1598 = vpop.f32.mrb[0].mxu0
        %v1599 = vpop.f32.mrb[0].mxu0
        %v1600 = vadd.f32 0.0, %v1599
        %v1601 = vpop.f32.mrb[0].mxu0
        %1602 = vmatprep.mubr.bf16.mxu0 0
        %1603 = vmatmul.mubr.bf16.gmra.mrb[0].mxu0 %v1448
        %v1604 = vpop.f32.mrb[0].mxu0
        %v1605 = vadd.f32 0.0, %v1604
        %v1606 = vpop.f32.mrb[0].mxu0
        %v1607 = vpop.f32.mrb[0].mxu0
        %v1608 = vadd.f32 0.0, %v1607
        %v1609 = vpop.f32.mrb[0].mxu0
        %1610 = vdwg.mxu0
        %v1611 = vadd.f32 %v1289, %v1485
        %v1612 = vadd.f32 %v1290, %v1488
        %v1613 = vadd.f32 %v1291, %v1493
        %v1614 = vadd.f32 %v1292, %v1496
        %v1615 = vadd.f32 %v1293, %v1501
        %v1616 = vadd.f32 %v1294, %v1504
        %v1617 = vadd.f32 %v1295, %v1509
        %v1618 = vadd.f32 %v1296, %v1512
        %v1619 = vadd.f32 %v1297, %v1517
        %v1620 = vadd.f32 %v1298, %v1520
        %v1621 = vadd.f32 %v1299, %v1525
        %v1622 = vadd.f32 %v1300, %v1528
        %v1623 = vadd.f32 %v1301, %v1533
        %v1624 = vadd.f32 %v1302, %v1536
        %v1625 = vadd.f32 %v1303, %v1541
        %v1626 = vadd.f32 %v1304, %v1544
        %v1627 = vadd.f32 %v1305, %v1549
        %v1628 = vadd.f32 %v1306, %v1552
        %v1629 = vadd.f32 %v1307, %v1557
        %v1630 = vadd.f32 %v1308, %v1560
        %v1631 = vadd.f32 %v1309, %v1565
        %v1632 = vadd.f32 %v1310, %v1568
        %v1633 = vadd.f32 %v1311, %v1573
        %v1634 = vadd.f32 %v1312, %v1576
        %v1635 = vadd.f32 %v1313, %v1581
        %v1636 = vadd.f32 %v1314, %v1584
        %v1637 = vadd.f32 %v1315, %v1589
        %v1638 = vadd.f32 %v1316, %v1592
        %v1639 = vadd.f32 %v1317, %v1597
        %v1640 = vadd.f32 %v1318, %v1600
        %v1641 = vadd.f32 %v1319, %v1605
        %v1642 = vadd.f32 %v1320, %v1608
        %v1643 = vld [vmem:[%s387 + $0x1] sm:$0xff]
        %v1644 = vld [vmem:[%s387 + $0x9] sm:$0xff]
        %v1645 = vld [vmem:[%s387 + $0x19] sm:$0xff]
        %v1646 = vld [vmem:[%s387 + $0x21] sm:$0xff]
        %v1647 = vld [vmem:[%s387 + $0x31] sm:$0xff]
        %v1648 = vld [vmem:[%s387 + $0x39] sm:$0xff]
        %v1649 = vld [vmem:[%s387 + $0x49] sm:$0xff]
        %v1650 = vld [vmem:[%s387 + $0x51] sm:$0xff]
        %v1651 = vld [vmem:[%s387 + $0x61] sm:$0xff]
        %v1652 = vld [vmem:[%s387 + $0x69] sm:$0xff]
        %v1653 = vld [vmem:[%s387 + $0x79] sm:$0xff]
        %v1654 = vld [vmem:[%s387 + $0x81] sm:$0xff]
        %v1655 = vld [vmem:[%s387 + $0x91] sm:$0xff]
        %v1656 = vld [vmem:[%s387 + $0x99] sm:$0xff]
        %v1657 = vld [vmem:[%s387 + $0xa9] sm:$0xff]
        %v1658 = vld [vmem:[%s387 + $0xb1] sm:$0xff]
        %v1659 = vld [vmem:[%s387 + $0xc1] sm:$0xff]
        %v1660 = vld [vmem:[%s387 + $0xc9] sm:$0xff]
        %v1661 = vld [vmem:[%s387 + $0xd9] sm:$0xff]
        %v1662 = vld [vmem:[%s387 + $0xe1] sm:$0xff]
        %v1663 = vld [vmem:[%s387 + $0xf1] sm:$0xff]
        %v1664 = vld [vmem:[%s387 + $0xf9] sm:$0xff]
        %v1665 = vld [vmem:[%s387 + $0x109] sm:$0xff]
        %v1666 = vld [vmem:[%s387 + $0x111] sm:$0xff]
        %v1667 = vld [vmem:[%s387 + $0x121] sm:$0xff]
        %v1668 = vld [vmem:[%s387 + $0x129] sm:$0xff]
        %v1669 = vld [vmem:[%s387 + $0x139] sm:$0xff]
        %v1670 = vld [vmem:[%s387 + $0x141] sm:$0xff]
        %v1671 = vld [vmem:[%s387 + $0x151] sm:$0xff]
        %v1672 = vld [vmem:[%s387 + $0x159] sm:$0xff]
        %v1673 = vld [vmem:[%s387 + $0x169] sm:$0xff]
        %v1674 = vld [vmem:[%s387 + $0x171] sm:$0xff]
        %v1675 = vpack.c.bf16 %v1644, %v1643
        %v1676 = vpack.c.bf16 %v1646, %v1645
        %v1677 = vpack.c.bf16 %v1648, %v1647
        %v1678 = vpack.c.bf16 %v1650, %v1649
        %v1679 = vpack.c.bf16 %v1652, %v1651
        %v1680 = vpack.c.bf16 %v1654, %v1653
        %v1681 = vpack.c.bf16 %v1656, %v1655
        %v1682 = vpack.c.bf16 %v1658, %v1657
        %v1683 = vpack.c.bf16 %v1660, %v1659
        %v1684 = vpack.c.bf16 %v1662, %v1661
        %v1685 = vpack.c.bf16 %v1664, %v1663
        %v1686 = vpack.c.bf16 %v1666, %v1665
        %v1687 = vpack.c.bf16 %v1668, %v1667
        %v1688 = vpack.c.bf16 %v1670, %v1669
        %v1689 = vpack.c.bf16 %v1672, %v1671
        %v1690 = vpack.c.bf16 %v1674, %v1673
        %s1691 = scalar_lea.vmem [#allocation8], 128
        %v1692 = vld [vmem:[%s1691] sm:$0xf]
        %v1693 = vld [vmem:[%s1691 + $0x4] sm:$0xf]
        %v1694 = vld [vmem:[%s1691 + $0x8] sm:$0xf]
        %v1695 = vld [vmem:[%s1691 + $0xc] sm:$0xf]
        %v1696 = vld [vmem:[%s1691 + $0x10] sm:$0xf]
        %v1697 = vld [vmem:[%s1691 + $0x14] sm:$0xf]
        %v1698 = vld [vmem:[%s1691 + $0x18] sm:$0xf]
        %v1699 = vld [vmem:[%s1691 + $0x1c] sm:$0xf]
        %v1708 = vunpack.c.l.b16 %v1692
        %v1709 = vunpack.c.l.b16 %v1693
        %v1710 = vunpack.c.l.b16 %v1694
        %v1711 = vunpack.c.l.b16 %v1695
        %v1712 = vunpack.c.l.b16 %v1696
        %v1713 = vunpack.c.l.b16 %v1697
        %v1714 = vunpack.c.l.b16 %v1698
        %v1715 = vunpack.c.l.b16 %v1699
        %v1716 = vpack.c.b16 %v1709, %v1708
        %v1717 = vpack.c.b16 %v1711, %v1710
        %v1718 = vpack.c.b16 %v1713, %v1712
        %v1719 = vpack.c.b16 %v1715, %v1714
        %v1725 = vsel %vm309, %v1675, 0
        %v1728 = vsel %vm309, %v1676, 0
        %v1731 = vsel %vm309, %v1677, 0
        %v1734 = vsel %vm309, %v1678, 0
        %v1737 = vsel %vm309, %v1679, 0
        %v1740 = vsel %vm309, %v1680, 0
        %v1743 = vsel %vm309, %v1681, 0
        %v1746 = vsel %vm309, %v1682, 0
        %v1749 = vsel %vm309, %v1683, 0
        %v1752 = vsel %vm309, %v1684, 0
        %v1755 = vsel %vm309, %v1685, 0
        %v1758 = vsel %vm309, %v1686, 0
        %v1761 = vsel %vm309, %v1687, 0
        %v1764 = vsel %vm309, %v1688, 0
        %v1767 = vsel %vm309, %v1689, 0
        %v1770 = vsel %vm309, %v1690, 0
        %1772 = vmatprep.subr.bf16.mxu0 0
        %1773 = vmatpush1.bf16.msra.mxu0 %v1716
        %1774 = vmatprep.subr.bf16.mxu0 0
        %1775 = vmatpush1.bf16.msra.mxu0 %v1717
        %1776 = vmatprep.subr.bf16.mxu0 0
        %1777 = vmatpush1.bf16.msra.mxu0 %v1718
        %1778 = vmatprep.subr.bf16.mxu0 0
        %1779 = vmatpush1.bf16.msra.mxu0 %v1719
        %1780 = vmatprep.subr.bf16.mxu0 0
        %1781 = vmatpush1.bf16.msra.mxu0 0
        %1782 = vmatprep.subr.bf16.mxu0 0
        %1783 = vmatpush1.bf16.msra.mxu0 0
        %1784 = vmatprep.subr.bf16.mxu0 0
        %1785 = vmatpush1.bf16.msra.mxu0 0
        %1786 = vmatprep.subr.bf16.mxu0 0
        %1787 = vmatpush1.bf16.msra.mxu0 0
        %1788 = vmatprep.subr.bf16.mxu0 0
        %1789 = vmatpush1.bf16.msra.mxu0 0
        %1790 = vmatprep.subr.bf16.mxu0 0
        %1791 = vmatpush1.bf16.msra.mxu0 0
        %1792 = vmatprep.subr.bf16.mxu0 0
        %1793 = vmatpush1.bf16.msra.mxu0 0
        %1794 = vmatprep.subr.bf16.mxu0 0
        %1795 = vmatpush1.bf16.msra.mxu0 0
        %1796 = vmatprep.subr.bf16.mxu0 0
        %1797 = vmatpush1.bf16.msra.mxu0 0
        %1798 = vmatprep.subr.bf16.mxu0 0
        %1799 = vmatpush1.bf16.msra.mxu0 0
        %1800 = vmatprep.subr.bf16.mxu0 0
        %1801 = vmatpush1.bf16.msra.mxu0 0
        %1802 = vmatprep.subr.bf16.mxu0 0
        %1803 = vmatpush1.bf16.msra.mxu0 0
        %1804 = vmatprep.mubr.bf16.mxu0 0
        %1805 = vmatmul.mubr.bf16.gmra.mrb[0].mxu0 %v1725
        %v1806 = vpop.f32.mrb[0].mxu0
        %v1807 = vadd.f32 0.0, %v1806
        %v1808 = vpop.f32.mrb[0].mxu0
        %v1809 = vpop.f32.mrb[0].mxu0
        %v1810 = vadd.f32 0.0, %v1809
        %v1811 = vpop.f32.mrb[0].mxu0
        %1812 = vmatprep.mubr.bf16.mxu0 0
        %1813 = vmatmul.mubr.bf16.gmra.mrb[0].mxu0 %v1728
        %v1814 = vpop.f32.mrb[0].mxu0
        %v1815 = vadd.f32 0.0, %v1814
        %v1816 = vpop.f32.mrb[0].mxu0
        %v1817 = vpop.f32.mrb[0].mxu0
        %v1818 = vadd.f32 0.0, %v1817
        %v1819 = vpop.f32.mrb[0].mxu0
        %1820 = vmatprep.mubr.bf16.mxu0 0
        %1821 = vmatmul.mubr.bf16.gmra.mrb[0].mxu0 %v1731
        %v1822 = vpop.f32.mrb[0].mxu0
        %v1823 = vadd.f32 0.0, %v1822
        %v1824 = vpop.f32.mrb[0].mxu0
        %v1825 = vpop.f32.mrb[0].mxu0
        %v1826 = vadd.f32 0.0, %v1825
        %v1827 = vpop.f32.mrb[0].mxu0
        %1828 = vmatprep.mubr.bf16.mxu0 0
        %1829 = vmatmul.mubr.bf16.gmra.mrb[0].mxu0 %v1734
        %v1830 = vpop.f32.mrb[0].mxu0
        %v1831 = vadd.f32 0.0, %v1830
        %v1832 = vpop.f32.mrb[0].mxu0
        %v1833 = vpop.f32.mrb[0].mxu0
        %v1834 = vadd.f32 0.0, %v1833
        %v1835 = vpop.f32.mrb[0].mxu0
        %1836 = vmatprep.mubr.bf16.mxu0 0
        %1837 = vmatmul.mubr.bf16.gmra.mrb[0].mxu0 %v1737
        %v1838 = vpop.f32.mrb[0].mxu0
        %v1839 = vadd.f32 0.0, %v1838
        %v1840 = vpop.f32.mrb[0].mxu0
        %v1841 = vpop.f32.mrb[0].mxu0
        %v1842 = vadd.f32 0.0, %v1841
        %v1843 = vpop.f32.mrb[0].mxu0
        %1844 = vmatprep.mubr.bf16.mxu0 0
        %1845 = vmatmul.mubr.bf16.gmra.mrb[0].mxu0 %v1740
        %v1846 = vpop.f32.mrb[0].mxu0
        %v1847 = vadd.f32 0.0, %v1846
        %v1848 = vpop.f32.mrb[0].mxu0
        %v1849 = vpop.f32.mrb[0].mxu0
        %v1850 = vadd.f32 0.0, %v1849
        %v1851 = vpop.f32.mrb[0].mxu0
        %1852 = vmatprep.mubr.bf16.mxu0 0
        %1853 = vmatmul.mubr.bf16.gmra.mrb[0].mxu0 %v1743
        %v1854 = vpop.f32.mrb[0].mxu0
        %v1855 = vadd.f32 0.0, %v1854
        %v1856 = vpop.f32.mrb[0].mxu0
        %v1857 = vpop.f32.mrb[0].mxu0
        %v1858 = vadd.f32 0.0, %v1857
        %v1859 = vpop.f32.mrb[0].mxu0
        %1860 = vmatprep.mubr.bf16.mxu0 0
        %1861 = vmatmul.mubr.bf16.gmra.mrb[0].mxu0 %v1746
        %v1862 = vpop.f32.mrb[0].mxu0
        %v1863 = vadd.f32 0.0, %v1862
        %v1864 = vpop.f32.mrb[0].mxu0
        %v1865 = vpop.f32.mrb[0].mxu0
        %v1866 = vadd.f32 0.0, %v1865
        %v1867 = vpop.f32.mrb[0].mxu0
        %1868 = vmatprep.mubr.bf16.mxu0 0
        %1869 = vmatmul.mubr.bf16.gmra.mrb[0].mxu0 %v1749
        %v1870 = vpop.f32.mrb[0].mxu0
        %v1871 = vadd.f32 0.0, %v1870
        %v1872 = vpop.f32.mrb[0].mxu0
        %v1873 = vpop.f32.mrb[0].mxu0
        %v1874 = vadd.f32 0.0, %v1873
        %v1875 = vpop.f32.mrb[0].mxu0
        %1876 = vmatprep.mubr.bf16.mxu0 0
        %1877 = vmatmul.mubr.bf16.gmra.mrb[0].mxu0 %v1752
        %v1878 = vpop.f32.mrb[0].mxu0
        %v1879 = vadd.f32 0.0, %v1878
        %v1880 = vpop.f32.mrb[0].mxu0
        %v1881 = vpop.f32.mrb[0].mxu0
        %v1882 = vadd.f32 0.0, %v1881
        %v1883 = vpop.f32.mrb[0].mxu0
        %1884 = vmatprep.mubr.bf16.mxu0 0
        %1885 = vmatmul.mubr.bf16.gmra.mrb[0].mxu0 %v1755
        %v1886 = vpop.f32.mrb[0].mxu0
        %v1887 = vadd.f32 0.0, %v1886
        %v1888 = vpop.f32.mrb[0].mxu0
        %v1889 = vpop.f32.mrb[0].mxu0
        %v1890 = vadd.f32 0.0, %v1889
        %v1891 = vpop.f32.mrb[0].mxu0
        %1892 = vmatprep.mubr.bf16.mxu0 0
        %1893 = vmatmul.mubr.bf16.gmra.mrb[0].mxu0 %v1758
        %v1894 = vpop.f32.mrb[0].mxu0
        %v1895 = vadd.f32 0.0, %v1894
        %v1896 = vpop.f32.mrb[0].mxu0
        %v1897 = vpop.f32.mrb[0].mxu0
        %v1898 = vadd.f32 0.0, %v1897
        %v1899 = vpop.f32.mrb[0].mxu0
        %1900 = vmatprep.mubr.bf16.mxu0 0
        %1901 = vmatmul.mubr.bf16.gmra.mrb[0].mxu0 %v1761
        %v1902 = vpop.f32.mrb[0].mxu0
        %v1903 = vadd.f32 0.0, %v1902
        %v1904 = vpop.f32.mrb[0].mxu0
        %v1905 = vpop.f32.mrb[0].mxu0
        %v1906 = vadd.f32 0.0, %v1905
        %v1907 = vpop.f32.mrb[0].mxu0
        %1908 = vmatprep.mubr.bf16.mxu0 0
        %1909 = vmatmul.mubr.bf16.gmra.mrb[0].mxu0 %v1764
        %v1910 = vpop.f32.mrb[0].mxu0
        %v1911 = vadd.f32 0.0, %v1910
        %v1912 = vpop.f32.mrb[0].mxu0
        %v1913 = vpop.f32.mrb[0].mxu0
        %v1914 = vadd.f32 0.0, %v1913
        %v1915 = vpop.f32.mrb[0].mxu0
        %1916 = vmatprep.mubr.bf16.mxu0 0
        %1917 = vmatmul.mubr.bf16.gmra.mrb[0].mxu0 %v1767
        %v1918 = vpop.f32.mrb[0].mxu0
        %v1919 = vadd.f32 0.0, %v1918
        %v1920 = vpop.f32.mrb[0].mxu0
        %v1921 = vpop.f32.mrb[0].mxu0
        %v1922 = vadd.f32 0.0, %v1921
        %v1923 = vpop.f32.mrb[0].mxu0
        %1924 = vmatprep.mubr.bf16.mxu0 0
        %1925 = vmatmul.mubr.bf16.gmra.mrb[0].mxu0 %v1770
        %v1926 = vpop.f32.mrb[0].mxu0
        %v1927 = vadd.f32 0.0, %v1926
        %v1928 = vpop.f32.mrb[0].mxu0
        %v1929 = vpop.f32.mrb[0].mxu0
        %v1930 = vadd.f32 0.0, %v1929
        %v1931 = vpop.f32.mrb[0].mxu0
        %1932 = vdwg.mxu0
        %v1933 = vadd.f32 %v1611, %v1807
        %v1934 = vadd.f32 %v1612, %v1810
        %v1935 = vadd.f32 %v1613, %v1815
        %v1936 = vadd.f32 %v1614, %v1818
        %v1937 = vadd.f32 %v1615, %v1823
        %v1938 = vadd.f32 %v1616, %v1826
        %v1939 = vadd.f32 %v1617, %v1831
        %v1940 = vadd.f32 %v1618, %v1834
        %v1941 = vadd.f32 %v1619, %v1839
        %v1942 = vadd.f32 %v1620, %v1842
        %v1943 = vadd.f32 %v1621, %v1847
        %v1944 = vadd.f32 %v1622, %v1850
        %v1945 = vadd.f32 %v1623, %v1855
        %v1946 = vadd.f32 %v1624, %v1858
        %v1947 = vadd.f32 %v1625, %v1863
        %v1948 = vadd.f32 %v1626, %v1866
        %v1949 = vadd.f32 %v1627, %v1871
        %v1950 = vadd.f32 %v1628, %v1874
        %v1951 = vadd.f32 %v1629, %v1879
        %v1952 = vadd.f32 %v1630, %v1882
        %v1953 = vadd.f32 %v1631, %v1887
        %v1954 = vadd.f32 %v1632, %v1890
        %v1955 = vadd.f32 %v1633, %v1895
        %v1956 = vadd.f32 %v1634, %v1898
        %v1957 = vadd.f32 %v1635, %v1903
        %v1958 = vadd.f32 %v1636, %v1906
        %v1959 = vadd.f32 %v1637, %v1911
        %v1960 = vadd.f32 %v1638, %v1914
        %v1961 = vadd.f32 %v1639, %v1919
        %v1962 = vadd.f32 %v1640, %v1922
        %v1963 = vadd.f32 %v1641, %v1927
        %v1964 = vadd.f32 %v1642, %v1930
        %v1965 = vld [vmem:[%s387 + $0x2] sm:$0xff]
        %v1966 = vld [vmem:[%s387 + $0xa] sm:$0xff]
        %v1967 = vld [vmem:[%s387 + $0x1a] sm:$0xff]
        %v1968 = vld [vmem:[%s387 + $0x22] sm:$0xff]
        %v1969 = vld [vmem:[%s387 + $0x32] sm:$0xff]
        %v1970 = vld [vmem:[%s387 + $0x3a] sm:$0xff]
        %v1971 = vld [vmem:[%s387 + $0x4a] sm:$0xff]
        %v1972 = vld [vmem:[%s387 + $0x52] sm:$0xff]
        %v1973 = vld [vmem:[%s387 + $0x62] sm:$0xff]
        %v1974 = vld [vmem:[%s387 + $0x6a] sm:$0xff]
        %v1975 = vld [vmem:[%s387 + $0x7a] sm:$0xff]
        %v1976 = vld [vmem:[%s387 + $0x82] sm:$0xff]
        %v1977 = vld [vmem:[%s387 + $0x92] sm:$0xff]
        %v1978 = vld [vmem:[%s387 + $0x9a] sm:$0xff]
        %v1979 = vld [vmem:[%s387 + $0xaa] sm:$0xff]
        %v1980 = vld [vmem:[%s387 + $0xb2] sm:$0xff]
        %v1981 = vld [vmem:[%s387 + $0xc2] sm:$0xff]
        %v1982 = vld [vmem:[%s387 + $0xca] sm:$0xff]
        %v1983 = vld [vmem:[%s387 + $0xda] sm:$0xff]
        %v1984 = vld [vmem:[%s387 + $0xe2] sm:$0xff]
        %v1985 = vld [vmem:[%s387 + $0xf2] sm:$0xff]
        %v1986 = vld [vmem:[%s387 + $0xfa] sm:$0xff]
        %v1987 = vld [vmem:[%s387 + $0x10a] sm:$0xff]
        %v1988 = vld [vmem:[%s387 + $0x112] sm:$0xff]
        %v1989 = vld [vmem:[%s387 + $0x122] sm:$0xff]
        %v1990 = vld [vmem:[%s387 + $0x12a] sm:$0xff]
        %v1991 = vld [vmem:[%s387 + $0x13a] sm:$0xff]
        %v1992 = vld [vmem:[%s387 + $0x142] sm:$0xff]
        %v1993 = vld [vmem:[%s387 + $0x152] sm:$0xff]
        %v1994 = vld [vmem:[%s387 + $0x15a] sm:$0xff]
        %v1995 = vld [vmem:[%s387 + $0x16a] sm:$0xff]
        %v1996 = vld [vmem:[%s387 + $0x172] sm:$0xff]
        %v1997 = vpack.c.bf16 %v1966, %v1965
        %v1998 = vpack.c.bf16 %v1968, %v1967
        %v1999 = vpack.c.bf16 %v1970, %v1969
        %v2000 = vpack.c.bf16 %v1972, %v1971
        %v2001 = vpack.c.bf16 %v1974, %v1973
        %v2002 = vpack.c.bf16 %v1976, %v1975
        %v2003 = vpack.c.bf16 %v1978, %v1977
        %v2004 = vpack.c.bf16 %v1980, %v1979
        %v2005 = vpack.c.bf16 %v1982, %v1981
        %v2006 = vpack.c.bf16 %v1984, %v1983
        %v2007 = vpack.c.bf16 %v1986, %v1985
        %v2008 = vpack.c.bf16 %v1988, %v1987
        %v2009 = vpack.c.bf16 %v1990, %v1989
        %v2010 = vpack.c.bf16 %v1992, %v1991
        %v2011 = vpack.c.bf16 %v1994, %v1993
        %v2012 = vpack.c.bf16 %v1996, %v1995
        %s2013 = scalar_lea.vmem [#allocation8], 160
        %v2014 = vld [vmem:[%s2013] sm:$0xf]
        %v2015 = vld [vmem:[%s2013 + $0x4] sm:$0xf]
        %v2016 = vld [vmem:[%s2013 + $0x8] sm:$0xf]
        %v2017 = vld [vmem:[%s2013 + $0xc] sm:$0xf]
        %v2018 = vld [vmem:[%s2013 + $0x10] sm:$0xf]
        %v2019 = vld [vmem:[%s2013 + $0x14] sm:$0xf]
        %v2020 = vld [vmem:[%s2013 + $0x18] sm:$0xf]
        %v2021 = vld [vmem:[%s2013 + $0x1c] sm:$0xf]
        %v2030 = vunpack.c.l.b16 %v2014
        %v2031 = vunpack.c.l.b16 %v2015
        %v2032 = vunpack.c.l.b16 %v2016
        %v2033 = vunpack.c.l.b16 %v2017
        %v2034 = vunpack.c.l.b16 %v2018
        %v2035 = vunpack.c.l.b16 %v2019
        %v2036 = vunpack.c.l.b16 %v2020
        %v2037 = vunpack.c.l.b16 %v2021
        %v2038 = vpack.c.b16 %v2031, %v2030
        %v2039 = vpack.c.b16 %v2033, %v2032
        %v2040 = vpack.c.b16 %v2035, %v2034
        %v2041 = vpack.c.b16 %v2037, %v2036
        %v2047 = vsel %vm309, %v1997, 0
        %v2050 = vsel %vm309, %v1998, 0
        %v2053 = vsel %vm309, %v1999, 0
        %v2056 = vsel %vm309, %v2000, 0
        %v2059 = vsel %vm309, %v2001, 0
        %v2062 = vsel %vm309, %v2002, 0
        %v2065 = vsel %vm309, %v2003, 0
        %v2068 = vsel %vm309, %v2004, 0
        %v2071 = vsel %vm309, %v2005, 0
        %v2074 = vsel %vm309, %v2006, 0
        %v2077 = vsel %vm309, %v2007, 0
        %v2080 = vsel %vm309, %v2008, 0
        %v2083 = vsel %vm309, %v2009, 0
        %v2086 = vsel %vm309, %v2010, 0
        %v2089 = vsel %vm309, %v2011, 0
        %v2092 = vsel %vm309, %v2012, 0
        %2094 = vmatprep.subr.bf16.mxu0 0
        %2095 = vmatpush1.bf16.msra.mxu0 %v2038
        %2096 = vmatprep.subr.bf16.mxu0 0
        %2097 = vmatpush1.bf16.msra.mxu0 %v2039
        %2098 = vmatprep.subr.bf16.mxu0 0
        %2099 = vmatpush1.bf16.msra.mxu0 %v2040
        %2100 = vmatprep.subr.bf16.mxu0 0
        %2101 = vmatpush1.bf16.msra.mxu0 %v2041
        %2102 = vmatprep.subr.bf16.mxu0 0
        %2103 = vmatpush1.bf16.msra.mxu0 0
        %2104 = vmatprep.subr.bf16.mxu0 0
        %2105 = vmatpush1.bf16.msra.mxu0 0
        %2106 = vmatprep.subr.bf16.mxu0 0
        %2107 = vmatpush1.bf16.msra.mxu0 0
        %2108 = vmatprep.subr.bf16.mxu0 0
        %2109 = vmatpush1.bf16.msra.mxu0 0
        %2110 = vmatprep.subr.bf16.mxu0 0
        %2111 = vmatpush1.bf16.msra.mxu0 0
        %2112 = vmatprep.subr.bf16.mxu0 0
        %2113 = vmatpush1.bf16.msra.mxu0 0
        %2114 = vmatprep.subr.bf16.mxu0 0
        %2115 = vmatpush1.bf16.msra.mxu0 0
        %2116 = vmatprep.subr.bf16.mxu0 0
        %2117 = vmatpush1.bf16.msra.mxu0 0
        %2118 = vmatprep.subr.bf16.mxu0 0
        %2119 = vmatpush1.bf16.msra.mxu0 0
        %2120 = vmatprep.subr.bf16.mxu0 0
        %2121 = vmatpush1.bf16.msra.mxu0 0
        %2122 = vmatprep.subr.bf16.mxu0 0
        %2123 = vmatpush1.bf16.msra.mxu0 0
        %2124 = vmatprep.subr.bf16.mxu0 0
        %2125 = vmatpush1.bf16.msra.mxu0 0
        %2126 = vmatprep.mubr.bf16.mxu0 0
        %2127 = vmatmul.mubr.bf16.gmra.mrb[0].mxu0 %v2047
        %v2128 = vpop.f32.mrb[0].mxu0
        %v2129 = vadd.f32 0.0, %v2128
        %v2130 = vpop.f32.mrb[0].mxu0
        %v2131 = vpop.f32.mrb[0].mxu0
        %v2132 = vadd.f32 0.0, %v2131
        %v2133 = vpop.f32.mrb[0].mxu0
        %2134 = vmatprep.mubr.bf16.mxu0 0
        %2135 = vmatmul.mubr.bf16.gmra.mrb[0].mxu0 %v2050
        %v2136 = vpop.f32.mrb[0].mxu0
        %v2137 = vadd.f32 0.0, %v2136
        %v2138 = vpop.f32.mrb[0].mxu0
        %v2139 = vpop.f32.mrb[0].mxu0
        %v2140 = vadd.f32 0.0, %v2139
        %v2141 = vpop.f32.mrb[0].mxu0
        %2142 = vmatprep.mubr.bf16.mxu0 0
        %2143 = vmatmul.mubr.bf16.gmra.mrb[0].mxu0 %v2053
        %v2144 = vpop.f32.mrb[0].mxu0
        %v2145 = vadd.f32 0.0, %v2144
        %v2146 = vpop.f32.mrb[0].mxu0
        %v2147 = vpop.f32.mrb[0].mxu0
        %v2148 = vadd.f32 0.0, %v2147
        %v2149 = vpop.f32.mrb[0].mxu0
        %2150 = vmatprep.mubr.bf16.mxu0 0
        %2151 = vmatmul.mubr.bf16.gmra.mrb[0].mxu0 %v2056
        %v2152 = vpop.f32.mrb[0].mxu0
        %v2153 = vadd.f32 0.0, %v2152
        %v2154 = vpop.f32.mrb[0].mxu0
        %v2155 = vpop.f32.mrb[0].mxu0
        %v2156 = vadd.f32 0.0, %v2155
        %v2157 = vpop.f32.mrb[0].mxu0
        %2158 = vmatprep.mubr.bf16.mxu0 0
        %2159 = vmatmul.mubr.bf16.gmra.mrb[0].mxu0 %v2059
        %v2160 = vpop.f32.mrb[0].mxu0
        %v2161 = vadd.f32 0.0, %v2160
        %v2162 = vpop.f32.mrb[0].mxu0
        %v2163 = vpop.f32.mrb[0].mxu0
        %v2164 = vadd.f32 0.0, %v2163
        %v2165 = vpop.f32.mrb[0].mxu0
        %2166 = vmatprep.mubr.bf16.mxu0 0
        %2167 = vmatmul.mubr.bf16.gmra.mrb[0].mxu0 %v2062
        %v2168 = vpop.f32.mrb[0].mxu0
        %v2169 = vadd.f32 0.0, %v2168
        %v2170 = vpop.f32.mrb[0].mxu0
        %v2171 = vpop.f32.mrb[0].mxu0
        %v2172 = vadd.f32 0.0, %v2171
        %v2173 = vpop.f32.mrb[0].mxu0
        %2174 = vmatprep.mubr.bf16.mxu0 0
        %2175 = vmatmul.mubr.bf16.gmra.mrb[0].mxu0 %v2065
        %v2176 = vpop.f32.mrb[0].mxu0
        %v2177 = vadd.f32 0.0, %v2176
        %v2178 = vpop.f32.mrb[0].mxu0
        %v2179 = vpop.f32.mrb[0].mxu0
        %v2180 = vadd.f32 0.0, %v2179
        %v2181 = vpop.f32.mrb[0].mxu0
        %2182 = vmatprep.mubr.bf16.mxu0 0
        %2183 = vmatmul.mubr.bf16.gmra.mrb[0].mxu0 %v2068
        %v2184 = vpop.f32.mrb[0].mxu0
        %v2185 = vadd.f32 0.0, %v2184
        %v2186 = vpop.f32.mrb[0].mxu0
        %v2187 = vpop.f32.mrb[0].mxu0
        %v2188 = vadd.f32 0.0, %v2187
        %v2189 = vpop.f32.mrb[0].mxu0
        %2190 = vmatprep.mubr.bf16.mxu0 0
        %2191 = vmatmul.mubr.bf16.gmra.mrb[0].mxu0 %v2071
        %v2192 = vpop.f32.mrb[0].mxu0
        %v2193 = vadd.f32 0.0, %v2192
        %v2194 = vpop.f32.mrb[0].mxu0
        %v2195 = vpop.f32.mrb[0].mxu0
        %v2196 = vadd.f32 0.0, %v2195
        %v2197 = vpop.f32.mrb[0].mxu0
        %2198 = vmatprep.mubr.bf16.mxu0 0
        %2199 = vmatmul.mubr.bf16.gmra.mrb[0].mxu0 %v2074
        %v2200 = vpop.f32.mrb[0].mxu0
        %v2201 = vadd.f32 0.0, %v2200
        %v2202 = vpop.f32.mrb[0].mxu0
        %v2203 = vpop.f32.mrb[0].mxu0
        %v2204 = vadd.f32 0.0, %v2203
        %v2205 = vpop.f32.mrb[0].mxu0
        %2206 = vmatprep.mubr.bf16.mxu0 0
        %2207 = vmatmul.mubr.bf16.gmra.mrb[0].mxu0 %v2077
        %v2208 = vpop.f32.mrb[0].mxu0
        %v2209 = vadd.f32 0.0, %v2208
        %v2210 = vpop.f32.mrb[0].mxu0
        %v2211 = vpop.f32.mrb[0].mxu0
        %v2212 = vadd.f32 0.0, %v2211
        %v2213 = vpop.f32.mrb[0].mxu0
        %2214 = vmatprep.mubr.bf16.mxu0 0
        %2215 = vmatmul.mubr.bf16.gmra.mrb[0].mxu0 %v2080
        %v2216 = vpop.f32.mrb[0].mxu0
        %v2217 = vadd.f32 0.0, %v2216
        %v2218 = vpop.f32.mrb[0].mxu0
        %v2219 = vpop.f32.mrb[0].mxu0
        %v2220 = vadd.f32 0.0, %v2219
        %v2221 = vpop.f32.mrb[0].mxu0
        %2222 = vmatprep.mubr.bf16.mxu0 0
        %2223 = vmatmul.mubr.bf16.gmra.mrb[0].mxu0 %v2083
        %v2224 = vpop.f32.mrb[0].mxu0
        %v2225 = vadd.f32 0.0, %v2224
        %v2226 = vpop.f32.mrb[0].mxu0
        %v2227 = vpop.f32.mrb[0].mxu0
        %v2228 = vadd.f32 0.0, %v2227
        %v2229 = vpop.f32.mrb[0].mxu0
        %2230 = vmatprep.mubr.bf16.mxu0 0
        %2231 = vmatmul.mubr.bf16.gmra.mrb[0].mxu0 %v2086
        %v2232 = vpop.f32.mrb[0].mxu0
        %v2233 = vadd.f32 0.0, %v2232
        %v2234 = vpop.f32.mrb[0].mxu0
        %v2235 = vpop.f32.mrb[0].mxu0
        %v2236 = vadd.f32 0.0, %v2235
        %v2237 = vpop.f32.mrb[0].mxu0
        %2238 = vmatprep.mubr.bf16.mxu0 0
        %2239 = vmatmul.mubr.bf16.gmra.mrb[0].mxu0 %v2089
        %v2240 = vpop.f32.mrb[0].mxu0
        %v2241 = vadd.f32 0.0, %v2240
        %v2242 = vpop.f32.mrb[0].mxu0
        %v2243 = vpop.f32.mrb[0].mxu0
        %v2244 = vadd.f32 0.0, %v2243
        %v2245 = vpop.f32.mrb[0].mxu0
        %2246 = vmatprep.mubr.bf16.mxu0 0
        %2247 = vmatmul.mubr.bf16.gmra.mrb[0].mxu0 %v2092
        %v2248 = vpop.f32.mrb[0].mxu0
        %v2249 = vadd.f32 0.0, %v2248
        %v2250 = vpop.f32.mrb[0].mxu0
        %v2251 = vpop.f32.mrb[0].mxu0
        %v2252 = vadd.f32 0.0, %v2251
        %v2253 = vpop.f32.mrb[0].mxu0
        %2254 = vdwg.mxu0
        %v2255 = vadd.f32 %v1933, %v2129
        %v2256 = vadd.f32 %v1934, %v2132
        %v2257 = vadd.f32 %v1935, %v2137
        %v2258 = vadd.f32 %v1936, %v2140
        %v2259 = vadd.f32 %v1937, %v2145
        %v2260 = vadd.f32 %v1938, %v2148
        %v2261 = vadd.f32 %v1939, %v2153
        %v2262 = vadd.f32 %v1940, %v2156
        %v2263 = vadd.f32 %v1941, %v2161
        %v2264 = vadd.f32 %v1942, %v2164
        %v2265 = vadd.f32 %v1943, %v2169
        %v2266 = vadd.f32 %v1944, %v2172
        %v2267 = vadd.f32 %v1945, %v2177
        %v2268 = vadd.f32 %v1946, %v2180
        %v2269 = vadd.f32 %v1947, %v2185
        %v2270 = vadd.f32 %v1948, %v2188
        %v2271 = vadd.f32 %v1949, %v2193
        %v2272 = vadd.f32 %v1950, %v2196
        %v2273 = vadd.f32 %v1951, %v2201
        %v2274 = vadd.f32 %v1952, %v2204
        %v2275 = vadd.f32 %v1953, %v2209
        %v2276 = vadd.f32 %v1954, %v2212
        %v2277 = vadd.f32 %v1955, %v2217
        %v2278 = vadd.f32 %v1956, %v2220
        %v2279 = vadd.f32 %v1957, %v2225
        %v2280 = vadd.f32 %v1958, %v2228
        %v2281 = vadd.f32 %v1959, %v2233
        %v2282 = vadd.f32 %v1960, %v2236
        %v2283 = vadd.f32 %v1961, %v2241
        %v2284 = vadd.f32 %v1962, %v2244
        %v2285 = vadd.f32 %v1963, %v2249
        %v2286 = vadd.f32 %v1964, %v2252
        %s2287 = scalar_lea.vmem [#allocation2], 48
        %v2288 = vld [vmem:[%s2287] sm:$0xff]
        %v2289 = vld [vmem:[%s2287 + $0x8] sm:$0xff]
        %v2290 = vld [vmem:[%s2287 + $0x18] sm:$0xff]
        %v2291 = vld [vmem:[%s2287 + $0x20] sm:$0xff]
        %v2292 = vld [vmem:[%s2287 + $0x30] sm:$0xff]
        %v2293 = vld [vmem:[%s2287 + $0x38] sm:$0xff]
        %v2294 = vld [vmem:[%s2287 + $0x48] sm:$0xff]
        %v2295 = vld [vmem:[%s2287 + $0x50] sm:$0xff]
        %v2296 = vld [vmem:[%s2287 + $0x60] sm:$0xff]
        %v2297 = vld [vmem:[%s2287 + $0x68] sm:$0xff]
        %v2298 = vld [vmem:[%s2287 + $0x78] sm:$0xff]
        %v2299 = vld [vmem:[%s2287 + $0x80] sm:$0xff]
        %v2300 = vld [vmem:[%s2287 + $0x90] sm:$0xff]
        %v2301 = vld [vmem:[%s2287 + $0x98] sm:$0xff]
        %v2302 = vld [vmem:[%s2287 + $0xa8] sm:$0xff]
        %v2303 = vld [vmem:[%s2287 + $0xb0] sm:$0xff]
        %v2304 = vld [vmem:[%s2287 + $0xc0] sm:$0xff]
        %v2305 = vld [vmem:[%s2287 + $0xc8] sm:$0xff]
        %v2306 = vld [vmem:[%s2287 + $0xd8] sm:$0xff]
        %v2307 = vld [vmem:[%s2287 + $0xe0] sm:$0xff]
        %v2308 = vld [vmem:[%s2287 + $0xf0] sm:$0xff]
        %v2309 = vld [vmem:[%s2287 + $0xf8] sm:$0xff]
        %v2310 = vld [vmem:[%s2287 + $0x108] sm:$0xff]
        %v2311 = vld [vmem:[%s2287 + $0x110] sm:$0xff]
        %v2312 = vld [vmem:[%s2287 + $0x120] sm:$0xff]
        %v2313 = vld [vmem:[%s2287 + $0x128] sm:$0xff]
        %v2314 = vld [vmem:[%s2287 + $0x138] sm:$0xff]
        %v2315 = vld [vmem:[%s2287 + $0x140] sm:$0xff]
        %v2316 = vld [vmem:[%s2287 + $0x150] sm:$0xff]
        %v2317 = vld [vmem:[%s2287 + $0x158] sm:$0xff]
        %v2318 = vld [vmem:[%s2287 + $0x168] sm:$0xff]
        %v2319 = vld [vmem:[%s2287 + $0x170] sm:$0xff]
        %v2320 = vpack.c.bf16 %v2289, %v2288
        %v2321 = vpack.c.bf16 %v2291, %v2290
        %v2322 = vpack.c.bf16 %v2293, %v2292
        %v2323 = vpack.c.bf16 %v2295, %v2294
        %v2324 = vpack.c.bf16 %v2297, %v2296
        %v2325 = vpack.c.bf16 %v2299, %v2298
        %v2326 = vpack.c.bf16 %v2301, %v2300
        %v2327 = vpack.c.bf16 %v2303, %v2302
        %v2328 = vpack.c.bf16 %v2305, %v2304
        %v2329 = vpack.c.bf16 %v2307, %v2306
        %v2330 = vpack.c.bf16 %v2309, %v2308
        %v2331 = vpack.c.bf16 %v2311, %v2310
        %v2332 = vpack.c.bf16 %v2313, %v2312
        %v2333 = vpack.c.bf16 %v2315, %v2314
        %v2334 = vpack.c.bf16 %v2317, %v2316
        %v2335 = vpack.c.bf16 %v2319, %v2318
        %s2336 = scalar_lea.vmem [#allocation8], 192
        %v2337 = vld [vmem:[%s2336] sm:$0xf]
        %v2338 = vld [vmem:[%s2336 + $0x4] sm:$0xf]
        %v2339 = vld [vmem:[%s2336 + $0x8] sm:$0xf]
        %v2340 = vld [vmem:[%s2336 + $0xc] sm:$0xf]
        %v2341 = vld [vmem:[%s2336 + $0x10] sm:$0xf]
        %v2342 = vld [vmem:[%s2336 + $0x14] sm:$0xf]
        %v2343 = vld [vmem:[%s2336 + $0x18] sm:$0xf]
        %v2344 = vld [vmem:[%s2336 + $0x1c] sm:$0xf]
        %v2353 = vunpack.c.l.b16 %v2337
        %v2354 = vunpack.c.l.b16 %v2338
        %v2355 = vunpack.c.l.b16 %v2339
        %v2356 = vunpack.c.l.b16 %v2340
        %v2357 = vunpack.c.l.b16 %v2341
        %v2358 = vunpack.c.l.b16 %v2342
        %v2359 = vunpack.c.l.b16 %v2343
        %v2360 = vunpack.c.l.b16 %v2344
        %v2361 = vpack.c.b16 %v2354, %v2353
        %v2362 = vpack.c.b16 %v2356, %v2355
        %v2363 = vpack.c.b16 %v2358, %v2357
        %v2364 = vpack.c.b16 %v2360, %v2359
        %v2370 = vsel %vm309, %v2320, 0
        %v2373 = vsel %vm309, %v2321, 0
        %v2376 = vsel %vm309, %v2322, 0
        %v2379 = vsel %vm309, %v2323, 0
        %v2382 = vsel %vm309, %v2324, 0
        %v2385 = vsel %vm309, %v2325, 0
        %v2388 = vsel %vm309, %v2326, 0
        %v2391 = vsel %vm309, %v2327, 0
        %v2394 = vsel %vm309, %v2328, 0
        %v2397 = vsel %vm309, %v2329, 0
        %v2400 = vsel %vm309, %v2330, 0
        %v2403 = vsel %vm309, %v2331, 0
        %v2406 = vsel %vm309, %v2332, 0
        %v2409 = vsel %vm309, %v2333, 0
        %v2412 = vsel %vm309, %v2334, 0
        %v2415 = vsel %vm309, %v2335, 0
        %2417 = vmatprep.subr.bf16.mxu0 0
        %2418 = vmatpush1.bf16.msra.mxu0 %v2361
        %2419 = vmatprep.subr.bf16.mxu0 0
        %2420 = vmatpush1.bf16.msra.mxu0 %v2362
        %2421 = vmatprep.subr.bf16.mxu0 0
        %2422 = vmatpush1.bf16.msra.mxu0 %v2363
        %2423 = vmatprep.subr.bf16.mxu0 0
        %2424 = vmatpush1.bf16.msra.mxu0 %v2364
        %2425 = vmatprep.subr.bf16.mxu0 0
        %2426 = vmatpush1.bf16.msra.mxu0 0
        %2427 = vmatprep.subr.bf16.mxu0 0
        %2428 = vmatpush1.bf16.msra.mxu0 0
        %2429 = vmatprep.subr.bf16.mxu0 0
        %2430 = vmatpush1.bf16.msra.mxu0 0
        %2431 = vmatprep.subr.bf16.mxu0 0
        %2432 = vmatpush1.bf16.msra.mxu0 0
        %2433 = vmatprep.subr.bf16.mxu0 0
        %2434 = vmatpush1.bf16.msra.mxu0 0
        %2435 = vmatprep.subr.bf16.mxu0 0
        %2436 = vmatpush1.bf16.msra.mxu0 0
        %2437 = vmatprep.subr.bf16.mxu0 0
        %2438 = vmatpush1.bf16.msra.mxu0 0
        %2439 = vmatprep.subr.bf16.mxu0 0
        %2440 = vmatpush1.bf16.msra.mxu0 0
        %2441 = vmatprep.subr.bf16.mxu0 0
        %2442 = vmatpush1.bf16.msra.mxu0 0
        %2443 = vmatprep.subr.bf16.mxu0 0
        %2444 = vmatpush1.bf16.msra.mxu0 0
        %2445 = vmatprep.subr.bf16.mxu0 0
        %2446 = vmatpush1.bf16.msra.mxu0 0
        %2447 = vmatprep.subr.bf16.mxu0 0
        %2448 = vmatpush1.bf16.msra.mxu0 0
        %2449 = vmatprep.mubr.bf16.mxu0 0
        %2450 = vmatmul.mubr.bf16.gmra.mrb[0].mxu0 %v2370
        %v2451 = vpop.f32.mrb[0].mxu0
        %v2452 = vadd.f32 0.0, %v2451
        %v2453 = vpop.f32.mrb[0].mxu0
        %v2454 = vpop.f32.mrb[0].mxu0
        %v2455 = vadd.f32 0.0, %v2454
        %v2456 = vpop.f32.mrb[0].mxu0
        %2457 = vmatprep.mubr.bf16.mxu0 0
        %2458 = vmatmul.mubr.bf16.gmra.mrb[0].mxu0 %v2373
        %v2459 = vpop.f32.mrb[0].mxu0
        %v2460 = vadd.f32 0.0, %v2459
        %v2461 = vpop.f32.mrb[0].mxu0
        %v2462 = vpop.f32.mrb[0].mxu0
        %v2463 = vadd.f32 0.0, %v2462
        %v2464 = vpop.f32.mrb[0].mxu0
        %2465 = vmatprep.mubr.bf16.mxu0 0
        %2466 = vmatmul.mubr.bf16.gmra.mrb[0].mxu0 %v2376
        %v2467 = vpop.f32.mrb[0].mxu0
        %v2468 = vadd.f32 0.0, %v2467
        %v2469 = vpop.f32.mrb[0].mxu0
        %v2470 = vpop.f32.mrb[0].mxu0
        %v2471 = vadd.f32 0.0, %v2470
        %v2472 = vpop.f32.mrb[0].mxu0
        %2473 = vmatprep.mubr.bf16.mxu0 0
        %2474 = vmatmul.mubr.bf16.gmra.mrb[0].mxu0 %v2379
        %v2475 = vpop.f32.mrb[0].mxu0
        %v2476 = vadd.f32 0.0, %v2475
        %v2477 = vpop.f32.mrb[0].mxu0
        %v2478 = vpop.f32.mrb[0].mxu0
        %v2479 = vadd.f32 0.0, %v2478
        %v2480 = vpop.f32.mrb[0].mxu0
        %2481 = vmatprep.mubr.bf16.mxu0 0
        %2482 = vmatmul.mubr.bf16.gmra.mrb[0].mxu0 %v2382
        %v2483 = vpop.f32.mrb[0].mxu0
        %v2484 = vadd.f32 0.0, %v2483
        %v2485 = vpop.f32.mrb[0].mxu0
        %v2486 = vpop.f32.mrb[0].mxu0
        %v2487 = vadd.f32 0.0, %v2486
        %v2488 = vpop.f32.mrb[0].mxu0
        %2489 = vmatprep.mubr.bf16.mxu0 0
        %2490 = vmatmul.mubr.bf16.gmra.mrb[0].mxu0 %v2385
        %v2491 = vpop.f32.mrb[0].mxu0
        %v2492 = vadd.f32 0.0, %v2491
        %v2493 = vpop.f32.mrb[0].mxu0
        %v2494 = vpop.f32.mrb[0].mxu0
        %v2495 = vadd.f32 0.0, %v2494
        %v2496 = vpop.f32.mrb[0].mxu0
        %2497 = vmatprep.mubr.bf16.mxu0 0
        %2498 = vmatmul.mubr.bf16.gmra.mrb[0].mxu0 %v2388
        %v2499 = vpop.f32.mrb[0].mxu0
        %v2500 = vadd.f32 0.0, %v2499
        %v2501 = vpop.f32.mrb[0].mxu0
        %v2502 = vpop.f32.mrb[0].mxu0
        %v2503 = vadd.f32 0.0, %v2502
        %v2504 = vpop.f32.mrb[0].mxu0
        %2505 = vmatprep.mubr.bf16.mxu0 0
        %2506 = vmatmul.mubr.bf16.gmra.mrb[0].mxu0 %v2391
        %v2507 = vpop.f32.mrb[0].mxu0
        %v2508 = vadd.f32 0.0, %v2507
        %v2509 = vpop.f32.mrb[0].mxu0
        %v2510 = vpop.f32.mrb[0].mxu0
        %v2511 = vadd.f32 0.0, %v2510
        %v2512 = vpop.f32.mrb[0].mxu0
        %2513 = vmatprep.mubr.bf16.mxu0 0
        %2514 = vmatmul.mubr.bf16.gmra.mrb[0].mxu0 %v2394
        %v2515 = vpop.f32.mrb[0].mxu0
        %v2516 = vadd.f32 0.0, %v2515
        %v2517 = vpop.f32.mrb[0].mxu0
        %v2518 = vpop.f32.mrb[0].mxu0
        %v2519 = vadd.f32 0.0, %v2518
        %v2520 = vpop.f32.mrb[0].mxu0
        %2521 = vmatprep.mubr.bf16.mxu0 0
        %2522 = vmatmul.mubr.bf16.gmra.mrb[0].mxu0 %v2397
        %v2523 = vpop.f32.mrb[0].mxu0
        %v2524 = vadd.f32 0.0, %v2523
        %v2525 = vpop.f32.mrb[0].mxu0
        %v2526 = vpop.f32.mrb[0].mxu0
        %v2527 = vadd.f32 0.0, %v2526
        %v2528 = vpop.f32.mrb[0].mxu0
        %2529 = vmatprep.mubr.bf16.mxu0 0
        %2530 = vmatmul.mubr.bf16.gmra.mrb[0].mxu0 %v2400
        %v2531 = vpop.f32.mrb[0].mxu0
        %v2532 = vadd.f32 0.0, %v2531
        %v2533 = vpop.f32.mrb[0].mxu0
        %v2534 = vpop.f32.mrb[0].mxu0
        %v2535 = vadd.f32 0.0, %v2534
        %v2536 = vpop.f32.mrb[0].mxu0
        %2537 = vmatprep.mubr.bf16.mxu0 0
        %2538 = vmatmul.mubr.bf16.gmra.mrb[0].mxu0 %v2403
        %v2539 = vpop.f32.mrb[0].mxu0
        %v2540 = vadd.f32 0.0, %v2539
        %v2541 = vpop.f32.mrb[0].mxu0
        %v2542 = vpop.f32.mrb[0].mxu0
        %v2543 = vadd.f32 0.0, %v2542
        %v2544 = vpop.f32.mrb[0].mxu0
        %2545 = vmatprep.mubr.bf16.mxu0 0
        %2546 = vmatmul.mubr.bf16.gmra.mrb[0].mxu0 %v2406
        %v2547 = vpop.f32.mrb[0].mxu0
        %v2548 = vadd.f32 0.0, %v2547
        %v2549 = vpop.f32.mrb[0].mxu0
        %v2550 = vpop.f32.mrb[0].mxu0
        %v2551 = vadd.f32 0.0, %v2550
        %v2552 = vpop.f32.mrb[0].mxu0
        %2553 = vmatprep.mubr.bf16.mxu0 0
        %2554 = vmatmul.mubr.bf16.gmra.mrb[0].mxu0 %v2409
        %v2555 = vpop.f32.mrb[0].mxu0
        %v2556 = vadd.f32 0.0, %v2555
        %v2557 = vpop.f32.mrb[0].mxu0
        %v2558 = vpop.f32.mrb[0].mxu0
        %v2559 = vadd.f32 0.0, %v2558
        %v2560 = vpop.f32.mrb[0].mxu0
        %2561 = vmatprep.mubr.bf16.mxu0 0
        %2562 = vmatmul.mubr.bf16.gmra.mrb[0].mxu0 %v2412
        %v2563 = vpop.f32.mrb[0].mxu0
        %v2564 = vadd.f32 0.0, %v2563
        %v2565 = vpop.f32.mrb[0].mxu0
        %v2566 = vpop.f32.mrb[0].mxu0
        %v2567 = vadd.f32 0.0, %v2566
        %v2568 = vpop.f32.mrb[0].mxu0
        %2569 = vmatprep.mubr.bf16.mxu0 0
        %2570 = vmatmul.mubr.bf16.gmra.mrb[0].mxu0 %v2415
        %v2571 = vpop.f32.mrb[0].mxu0
        %v2572 = vadd.f32 0.0, %v2571
        %v2573 = vpop.f32.mrb[0].mxu0
        %v2574 = vpop.f32.mrb[0].mxu0
        %v2575 = vadd.f32 0.0, %v2574
        %v2576 = vpop.f32.mrb[0].mxu0
        %2577 = vdwg.mxu0
        %v2578 = vadd.f32 %v2255, %v2452
        %v2579 = vadd.f32 %v2256, %v2455
        %v2580 = vadd.f32 %v2257, %v2460
        %v2581 = vadd.f32 %v2258, %v2463
        %v2582 = vadd.f32 %v2259, %v2468
        %v2583 = vadd.f32 %v2260, %v2471
        %v2584 = vadd.f32 %v2261, %v2476
        %v2585 = vadd.f32 %v2262, %v2479
        %v2586 = vadd.f32 %v2263, %v2484
        %v2587 = vadd.f32 %v2264, %v2487
        %v2588 = vadd.f32 %v2265, %v2492
        %v2589 = vadd.f32 %v2266, %v2495
        %v2590 = vadd.f32 %v2267, %v2500
        %v2591 = vadd.f32 %v2268, %v2503
        %v2592 = vadd.f32 %v2269, %v2508
        %v2593 = vadd.f32 %v2270, %v2511
        %v2594 = vadd.f32 %v2271, %v2516
        %v2595 = vadd.f32 %v2272, %v2519
        %v2596 = vadd.f32 %v2273, %v2524
        %v2597 = vadd.f32 %v2274, %v2527
        %v2598 = vadd.f32 %v2275, %v2532
        %v2599 = vadd.f32 %v2276, %v2535
        %v2600 = vadd.f32 %v2277, %v2540
        %v2601 = vadd.f32 %v2278, %v2543
        %v2602 = vadd.f32 %v2279, %v2548
        %v2603 = vadd.f32 %v2280, %v2551
        %v2604 = vadd.f32 %v2281, %v2556
        %v2605 = vadd.f32 %v2282, %v2559
        %v2606 = vadd.f32 %v2283, %v2564
        %v2607 = vadd.f32 %v2284, %v2567
        %v2608 = vadd.f32 %v2285, %v2572
        %v2609 = vadd.f32 %v2286, %v2575
        %v2610 = vld [vmem:[%s2287 + $0x1] sm:$0xff]
        %v2611 = vld [vmem:[%s2287 + $0x9] sm:$0xff]
        %v2612 = vld [vmem:[%s2287 + $0x19] sm:$0xff]
        %v2613 = vld [vmem:[%s2287 + $0x21] sm:$0xff]
        %v2614 = vld [vmem:[%s2287 + $0x31] sm:$0xff]
        %v2615 = vld [vmem:[%s2287 + $0x39] sm:$0xff]
        %v2616 = vld [vmem:[%s2287 + $0x49] sm:$0xff]
        %v2617 = vld [vmem:[%s2287 + $0x51] sm:$0xff]
        %v2618 = vld [vmem:[%s2287 + $0x61] sm:$0xff]
        %v2619 = vld [vmem:[%s2287 + $0x69] sm:$0xff]
        %v2620 = vld [vmem:[%s2287 + $0x79] sm:$0xff]
        %v2621 = vld [vmem:[%s2287 + $0x81] sm:$0xff]
        %v2622 = vld [vmem:[%s2287 + $0x91] sm:$0xff]
        %v2623 = vld [vmem:[%s2287 + $0x99] sm:$0xff]
        %v2624 = vld [vmem:[%s2287 + $0xa9] sm:$0xff]
        %v2625 = vld [vmem:[%s2287 + $0xb1] sm:$0xff]
        %v2626 = vld [vmem:[%s2287 + $0xc1] sm:$0xff]
        %v2627 = vld [vmem:[%s2287 + $0xc9] sm:$0xff]
        %v2628 = vld [vmem:[%s2287 + $0xd9] sm:$0xff]
        %v2629 = vld [vmem:[%s2287 + $0xe1] sm:$0xff]
        %v2630 = vld [vmem:[%s2287 + $0xf1] sm:$0xff]
        %v2631 = vld [vmem:[%s2287 + $0xf9] sm:$0xff]
        %v2632 = vld [vmem:[%s2287 + $0x109] sm:$0xff]
        %v2633 = vld [vmem:[%s2287 + $0x111] sm:$0xff]
        %v2634 = vld [vmem:[%s2287 + $0x121] sm:$0xff]
        %v2635 = vld [vmem:[%s2287 + $0x129] sm:$0xff]
        %v2636 = vld [vmem:[%s2287 + $0x139] sm:$0xff]
        %v2637 = vld [vmem:[%s2287 + $0x141] sm:$0xff]
        %v2638 = vld [vmem:[%s2287 + $0x151] sm:$0xff]
        %v2639 = vld [vmem:[%s2287 + $0x159] sm:$0xff]
        %v2640 = vld [vmem:[%s2287 + $0x169] sm:$0xff]
        %v2641 = vld [vmem:[%s2287 + $0x171] sm:$0xff]
        %v2642 = vpack.c.bf16 %v2611, %v2610
        %v2643 = vpack.c.bf16 %v2613, %v2612
        %v2644 = vpack.c.bf16 %v2615, %v2614
        %v2645 = vpack.c.bf16 %v2617, %v2616
        %v2646 = vpack.c.bf16 %v2619, %v2618
        %v2647 = vpack.c.bf16 %v2621, %v2620
        %v2648 = vpack.c.bf16 %v2623, %v2622
        %v2649 = vpack.c.bf16 %v2625, %v2624
        %v2650 = vpack.c.bf16 %v2627, %v2626
        %v2651 = vpack.c.bf16 %v2629, %v2628
        %v2652 = vpack.c.bf16 %v2631, %v2630
        %v2653 = vpack.c.bf16 %v2633, %v2632
        %v2654 = vpack.c.bf16 %v2635, %v2634
        %v2655 = vpack.c.bf16 %v2637, %v2636
        %v2656 = vpack.c.bf16 %v2639, %v2638
        %v2657 = vpack.c.bf16 %v2641, %v2640
        %s2658 = scalar_lea.vmem [#allocation8], 224
        %v2659 = vld [vmem:[%s2658] sm:$0xf]
        %v2660 = vld [vmem:[%s2658 + $0x4] sm:$0xf]
        %v2661 = vld [vmem:[%s2658 + $0x8] sm:$0xf]
        %v2662 = vld [vmem:[%s2658 + $0xc] sm:$0xf]
        %v2663 = vld [vmem:[%s2658 + $0x10] sm:$0xf]
        %v2664 = vld [vmem:[%s2658 + $0x14] sm:$0xf]
        %v2665 = vld [vmem:[%s2658 + $0x18] sm:$0xf]
        %v2666 = vld [vmem:[%s2658 + $0x1c] sm:$0xf]
        %v2675 = vunpack.c.l.b16 %v2659
        %v2676 = vunpack.c.l.b16 %v2660
        %v2677 = vunpack.c.l.b16 %v2661
        %v2678 = vunpack.c.l.b16 %v2662
        %v2679 = vunpack.c.l.b16 %v2663
        %v2680 = vunpack.c.l.b16 %v2664
        %v2681 = vunpack.c.l.b16 %v2665
        %v2682 = vunpack.c.l.b16 %v2666
        %v2683 = vpack.c.b16 %v2676, %v2675
        %v2684 = vpack.c.b16 %v2678, %v2677
        %v2685 = vpack.c.b16 %v2680, %v2679
        %v2686 = vpack.c.b16 %v2682, %v2681
        %v2692 = vsel %vm309, %v2642, 0
        %v2695 = vsel %vm309, %v2643, 0
        %v2698 = vsel %vm309, %v2644, 0
        %v2701 = vsel %vm309, %v2645, 0
        %v2704 = vsel %vm309, %v2646, 0
        %v2707 = vsel %vm309, %v2647, 0
        %v2710 = vsel %vm309, %v2648, 0
        %v2713 = vsel %vm309, %v2649, 0
        %v2716 = vsel %vm309, %v2650, 0
        %v2719 = vsel %vm309, %v2651, 0
        %v2722 = vsel %vm309, %v2652, 0
        %v2725 = vsel %vm309, %v2653, 0
        %v2728 = vsel %vm309, %v2654, 0
        %v2731 = vsel %vm309, %v2655, 0
        %v2734 = vsel %vm309, %v2656, 0
        %v2737 = vsel %vm309, %v2657, 0
        %2739 = vmatprep.subr.bf16.mxu0 0
        %2740 = vmatpush1.bf16.msra.mxu0 %v2683
        %2741 = vmatprep.subr.bf16.mxu0 0
        %2742 = vmatpush1.bf16.msra.mxu0 %v2684
        %2743 = vmatprep.subr.bf16.mxu0 0
        %2744 = vmatpush1.bf16.msra.mxu0 %v2685
        %2745 = vmatprep.subr.bf16.mxu0 0
        %2746 = vmatpush1.bf16.msra.mxu0 %v2686
        %2747 = vmatprep.subr.bf16.mxu0 0
        %2748 = vmatpush1.bf16.msra.mxu0 0
        %2749 = vmatprep.subr.bf16.mxu0 0
        %2750 = vmatpush1.bf16.msra.mxu0 0
        %2751 = vmatprep.subr.bf16.mxu0 0
        %2752 = vmatpush1.bf16.msra.mxu0 0
        %2753 = vmatprep.subr.bf16.mxu0 0
        %2754 = vmatpush1.bf16.msra.mxu0 0
        %2755 = vmatprep.subr.bf16.mxu0 0
        %2756 = vmatpush1.bf16.msra.mxu0 0
        %2757 = vmatprep.subr.bf16.mxu0 0
        %2758 = vmatpush1.bf16.msra.mxu0 0
        %2759 = vmatprep.subr.bf16.mxu0 0
        %2760 = vmatpush1.bf16.msra.mxu0 0
        %2761 = vmatprep.subr.bf16.mxu0 0
        %2762 = vmatpush1.bf16.msra.mxu0 0
        %2763 = vmatprep.subr.bf16.mxu0 0
        %2764 = vmatpush1.bf16.msra.mxu0 0
        %2765 = vmatprep.subr.bf16.mxu0 0
        %2766 = vmatpush1.bf16.msra.mxu0 0
        %2767 = vmatprep.subr.bf16.mxu0 0
        %2768 = vmatpush1.bf16.msra.mxu0 0
        %2769 = vmatprep.subr.bf16.mxu0 0
        %2770 = vmatpush1.bf16.msra.mxu0 0
        %2771 = vmatprep.mubr.bf16.mxu0 0
        %2772 = vmatmul.mubr.bf16.gmra.mrb[0].mxu0 %v2692
        %v2773 = vpop.f32.mrb[0].mxu0
        %v2774 = vadd.f32 0.0, %v2773
        %v2775 = vpop.f32.mrb[0].mxu0
        %v2776 = vpop.f32.mrb[0].mxu0
        %v2777 = vadd.f32 0.0, %v2776
        %v2778 = vpop.f32.mrb[0].mxu0
        %2779 = vmatprep.mubr.bf16.mxu0 0
        %2780 = vmatmul.mubr.bf16.gmra.mrb[0].mxu0 %v2695
        %v2781 = vpop.f32.mrb[0].mxu0
        %v2782 = vadd.f32 0.0, %v2781
        %v2783 = vpop.f32.mrb[0].mxu0
        %v2784 = vpop.f32.mrb[0].mxu0
        %v2785 = vadd.f32 0.0, %v2784
        %v2786 = vpop.f32.mrb[0].mxu0
        %2787 = vmatprep.mubr.bf16.mxu0 0
        %2788 = vmatmul.mubr.bf16.gmra.mrb[0].mxu0 %v2698
        %v2789 = vpop.f32.mrb[0].mxu0
        %v2790 = vadd.f32 0.0, %v2789
        %v2791 = vpop.f32.mrb[0].mxu0
        %v2792 = vpop.f32.mrb[0].mxu0
        %v2793 = vadd.f32 0.0, %v2792
        %v2794 = vpop.f32.mrb[0].mxu0
        %2795 = vmatprep.mubr.bf16.mxu0 0
        %2796 = vmatmul.mubr.bf16.gmra.mrb[0].mxu0 %v2701
        %v2797 = vpop.f32.mrb[0].mxu0
        %v2798 = vadd.f32 0.0, %v2797
        %v2799 = vpop.f32.mrb[0].mxu0
        %v2800 = vpop.f32.mrb[0].mxu0
        %v2801 = vadd.f32 0.0, %v2800
        %v2802 = vpop.f32.mrb[0].mxu0
        %2803 = vmatprep.mubr.bf16.mxu0 0
        %2804 = vmatmul.mubr.bf16.gmra.mrb[0].mxu0 %v2704
        %v2805 = vpop.f32.mrb[0].mxu0
        %v2806 = vadd.f32 0.0, %v2805
        %v2807 = vpop.f32.mrb[0].mxu0
        %v2808 = vpop.f32.mrb[0].mxu0
        %v2809 = vadd.f32 0.0, %v2808
        %v2810 = vpop.f32.mrb[0].mxu0
        %2811 = vmatprep.mubr.bf16.mxu0 0
        %2812 = vmatmul.mubr.bf16.gmra.mrb[0].mxu0 %v2707
        %v2813 = vpop.f32.mrb[0].mxu0
        %v2814 = vadd.f32 0.0, %v2813
        %v2815 = vpop.f32.mrb[0].mxu0
        %v2816 = vpop.f32.mrb[0].mxu0
        %v2817 = vadd.f32 0.0, %v2816
        %v2818 = vpop.f32.mrb[0].mxu0
        %2819 = vmatprep.mubr.bf16.mxu0 0
        %2820 = vmatmul.mubr.bf16.gmra.mrb[0].mxu0 %v2710
        %v2821 = vpop.f32.mrb[0].mxu0
        %v2822 = vadd.f32 0.0, %v2821
        %v2823 = vpop.f32.mrb[0].mxu0
        %v2824 = vpop.f32.mrb[0].mxu0
        %v2825 = vadd.f32 0.0, %v2824
        %v2826 = vpop.f32.mrb[0].mxu0
        %2827 = vmatprep.mubr.bf16.mxu0 0
        %2828 = vmatmul.mubr.bf16.gmra.mrb[0].mxu0 %v2713
        %v2829 = vpop.f32.mrb[0].mxu0
        %v2830 = vadd.f32 0.0, %v2829
        %v2831 = vpop.f32.mrb[0].mxu0
        %v2832 = vpop.f32.mrb[0].mxu0
        %v2833 = vadd.f32 0.0, %v2832
        %v2834 = vpop.f32.mrb[0].mxu0
        %2835 = vmatprep.mubr.bf16.mxu0 0
        %2836 = vmatmul.mubr.bf16.gmra.mrb[0].mxu0 %v2716
        %v2837 = vpop.f32.mrb[0].mxu0
        %v2838 = vadd.f32 0.0, %v2837
        %v2839 = vpop.f32.mrb[0].mxu0
        %v2840 = vpop.f32.mrb[0].mxu0
        %v2841 = vadd.f32 0.0, %v2840
        %v2842 = vpop.f32.mrb[0].mxu0
        %2843 = vmatprep.mubr.bf16.mxu0 0
        %2844 = vmatmul.mubr.bf16.gmra.mrb[0].mxu0 %v2719
        %v2845 = vpop.f32.mrb[0].mxu0
        %v2846 = vadd.f32 0.0, %v2845
        %v2847 = vpop.f32.mrb[0].mxu0
        %v2848 = vpop.f32.mrb[0].mxu0
        %v2849 = vadd.f32 0.0, %v2848
        %v2850 = vpop.f32.mrb[0].mxu0
        %2851 = vmatprep.mubr.bf16.mxu0 0
        %2852 = vmatmul.mubr.bf16.gmra.mrb[0].mxu0 %v2722
        %v2853 = vpop.f32.mrb[0].mxu0
        %v2854 = vadd.f32 0.0, %v2853
        %v2855 = vpop.f32.mrb[0].mxu0
        %v2856 = vpop.f32.mrb[0].mxu0
        %v2857 = vadd.f32 0.0, %v2856
        %v2858 = vpop.f32.mrb[0].mxu0
        %2859 = vmatprep.mubr.bf16.mxu0 0
        %2860 = vmatmul.mubr.bf16.gmra.mrb[0].mxu0 %v2725
        %v2861 = vpop.f32.mrb[0].mxu0
        %v2862 = vadd.f32 0.0, %v2861
        %v2863 = vpop.f32.mrb[0].mxu0
        %v2864 = vpop.f32.mrb[0].mxu0
        %v2865 = vadd.f32 0.0, %v2864
        %v2866 = vpop.f32.mrb[0].mxu0
        %2867 = vmatprep.mubr.bf16.mxu0 0
        %2868 = vmatmul.mubr.bf16.gmra.mrb[0].mxu0 %v2728
        %v2869 = vpop.f32.mrb[0].mxu0
        %v2870 = vadd.f32 0.0, %v2869
        %v2871 = vpop.f32.mrb[0].mxu0
        %v2872 = vpop.f32.mrb[0].mxu0
        %v2873 = vadd.f32 0.0, %v2872
        %v2874 = vpop.f32.mrb[0].mxu0
        %2875 = vmatprep.mubr.bf16.mxu0 0
        %2876 = vmatmul.mubr.bf16.gmra.mrb[0].mxu0 %v2731
        %v2877 = vpop.f32.mrb[0].mxu0
        %v2878 = vadd.f32 0.0, %v2877
        %v2879 = vpop.f32.mrb[0].mxu0
        %v2880 = vpop.f32.mrb[0].mxu0
        %v2881 = vadd.f32 0.0, %v2880
        %v2882 = vpop.f32.mrb[0].mxu0
        %2883 = vmatprep.mubr.bf16.mxu0 0
        %2884 = vmatmul.mubr.bf16.gmra.mrb[0].mxu0 %v2734
        %v2885 = vpop.f32.mrb[0].mxu0
        %v2886 = vadd.f32 0.0, %v2885
        %v2887 = vpop.f32.mrb[0].mxu0
        %v2888 = vpop.f32.mrb[0].mxu0
        %v2889 = vadd.f32 0.0, %v2888
        %v2890 = vpop.f32.mrb[0].mxu0
        %2891 = vmatprep.mubr.bf16.mxu0 0
        %2892 = vmatmul.mubr.bf16.gmra.mrb[0].mxu0 %v2737
        %v2893 = vpop.f32.mrb[0].mxu0
        %v2894 = vadd.f32 0.0, %v2893
        %v2895 = vpop.f32.mrb[0].mxu0
        %v2896 = vpop.f32.mrb[0].mxu0
        %v2897 = vadd.f32 0.0, %v2896
        %v2898 = vpop.f32.mrb[0].mxu0
        %2899 = vdwg.mxu0
        %v2900 = vadd.f32 %v2578, %v2774
        %v2901 = vadd.f32 %v2579, %v2777
        %v2902 = vadd.f32 %v2580, %v2782
        %v2903 = vadd.f32 %v2581, %v2785
        %v2904 = vadd.f32 %v2582, %v2790
        %v2905 = vadd.f32 %v2583, %v2793
        %v2906 = vadd.f32 %v2584, %v2798
        %v2907 = vadd.f32 %v2585, %v2801
        %v2908 = vadd.f32 %v2586, %v2806
        %v2909 = vadd.f32 %v2587, %v2809
        %v2910 = vadd.f32 %v2588, %v2814
        %v2911 = vadd.f32 %v2589, %v2817
        %v2912 = vadd.f32 %v2590, %v2822
        %v2913 = vadd.f32 %v2591, %v2825
        %v2914 = vadd.f32 %v2592, %v2830
        %v2915 = vadd.f32 %v2593, %v2833
        %v2916 = vadd.f32 %v2594, %v2838
        %v2917 = vadd.f32 %v2595, %v2841
        %v2918 = vadd.f32 %v2596, %v2846
        %v2919 = vadd.f32 %v2597, %v2849
        %v2920 = vadd.f32 %v2598, %v2854
        %v2921 = vadd.f32 %v2599, %v2857
        %v2922 = vadd.f32 %v2600, %v2862
        %v2923 = vadd.f32 %v2601, %v2865
        %v2924 = vadd.f32 %v2602, %v2870
        %v2925 = vadd.f32 %v2603, %v2873
        %v2926 = vadd.f32 %v2604, %v2878
        %v2927 = vadd.f32 %v2605, %v2881
        %v2928 = vadd.f32 %v2606, %v2886
        %v2929 = vadd.f32 %v2607, %v2889
        %v2930 = vadd.f32 %v2608, %v2894
        %v2931 = vadd.f32 %v2609, %v2897
        %v2932 = vld [vmem:[%s2287 + $0x2] sm:$0xff]
        %v2933 = vld [vmem:[%s2287 + $0xa] sm:$0xff]
        %v2934 = vld [vmem:[%s2287 + $0x1a] sm:$0xff]
        %v2935 = vld [vmem:[%s2287 + $0x22] sm:$0xff]
        %v2936 = vld [vmem:[%s2287 + $0x32] sm:$0xff]
        %v2937 = vld [vmem:[%s2287 + $0x3a] sm:$0xff]
        %v2938 = vld [vmem:[%s2287 + $0x4a] sm:$0xff]
        %v2939 = vld [vmem:[%s2287 + $0x52] sm:$0xff]
        %v2940 = vld [vmem:[%s2287 + $0x62] sm:$0xff]
        %v2941 = vld [vmem:[%s2287 + $0x6a] sm:$0xff]
        %v2942 = vld [vmem:[%s2287 + $0x7a] sm:$0xff]
        %v2943 = vld [vmem:[%s2287 + $0x82] sm:$0xff]
        %v2944 = vld [vmem:[%s2287 + $0x92] sm:$0xff]
        %v2945 = vld [vmem:[%s2287 + $0x9a] sm:$0xff]
        %v2946 = vld [vmem:[%s2287 + $0xaa] sm:$0xff]
        %v2947 = vld [vmem:[%s2287 + $0xb2] sm:$0xff]
        %v2948 = vld [vmem:[%s2287 + $0xc2] sm:$0xff]
        %v2949 = vld [vmem:[%s2287 + $0xca] sm:$0xff]
        %v2950 = vld [vmem:[%s2287 + $0xda] sm:$0xff]
        %v2951 = vld [vmem:[%s2287 + $0xe2] sm:$0xff]
        %v2952 = vld [vmem:[%s2287 + $0xf2] sm:$0xff]
        %v2953 = vld [vmem:[%s2287 + $0xfa] sm:$0xff]
        %v2954 = vld [vmem:[%s2287 + $0x10a] sm:$0xff]
        %v2955 = vld [vmem:[%s2287 + $0x112] sm:$0xff]
        %v2956 = vld [vmem:[%s2287 + $0x122] sm:$0xff]
        %v2957 = vld [vmem:[%s2287 + $0x12a] sm:$0xff]
        %v2958 = vld [vmem:[%s2287 + $0x13a] sm:$0xff]
        %v2959 = vld [vmem:[%s2287 + $0x142] sm:$0xff]
        %v2960 = vld [vmem:[%s2287 + $0x152] sm:$0xff]
        %v2961 = vld [vmem:[%s2287 + $0x15a] sm:$0xff]
        %v2962 = vld [vmem:[%s2287 + $0x16a] sm:$0xff]
        %v2963 = vld [vmem:[%s2287 + $0x172] sm:$0xff]
        %v2964 = vpack.c.bf16 %v2933, %v2932
        %v2965 = vpack.c.bf16 %v2935, %v2934
        %v2966 = vpack.c.bf16 %v2937, %v2936
        %v2967 = vpack.c.bf16 %v2939, %v2938
        %v2968 = vpack.c.bf16 %v2941, %v2940
        %v2969 = vpack.c.bf16 %v2943, %v2942
        %v2970 = vpack.c.bf16 %v2945, %v2944
        %v2971 = vpack.c.bf16 %v2947, %v2946
        %v2972 = vpack.c.bf16 %v2949, %v2948
        %v2973 = vpack.c.bf16 %v2951, %v2950
        %v2974 = vpack.c.bf16 %v2953, %v2952
        %v2975 = vpack.c.bf16 %v2955, %v2954
        %v2976 = vpack.c.bf16 %v2957, %v2956
        %v2977 = vpack.c.bf16 %v2959, %v2958
        %v2978 = vpack.c.bf16 %v2961, %v2960
        %v2979 = vpack.c.bf16 %v2963, %v2962
        %s2980 = scalar_lea.vmem [#allocation8], 256
        %v2981 = vld [vmem:[%s2980] sm:$0xf]
        %v2982 = vld [vmem:[%s2980 + $0x4] sm:$0xf]
        %v2983 = vld [vmem:[%s2980 + $0x8] sm:$0xf]
        %v2984 = vld [vmem:[%s2980 + $0xc] sm:$0xf]
        %v2985 = vld [vmem:[%s2980 + $0x10] sm:$0xf]
        %v2986 = vld [vmem:[%s2980 + $0x14] sm:$0xf]
        %v2987 = vld [vmem:[%s2980 + $0x18] sm:$0xf]
        %v2988 = vld [vmem:[%s2980 + $0x1c] sm:$0xf]
        %v2997 = vunpack.c.l.b16 %v2981
        %v2998 = vunpack.c.l.b16 %v2982
        %v2999 = vunpack.c.l.b16 %v2983
        %v3000 = vunpack.c.l.b16 %v2984
        %v3001 = vunpack.c.l.b16 %v2985
        %v3002 = vunpack.c.l.b16 %v2986
        %v3003 = vunpack.c.l.b16 %v2987
        %v3004 = vunpack.c.l.b16 %v2988
        %v3005 = vpack.c.b16 %v2998, %v2997
        %v3006 = vpack.c.b16 %v3000, %v2999
        %v3007 = vpack.c.b16 %v3002, %v3001
        %v3008 = vpack.c.b16 %v3004, %v3003
        %v3014 = vsel %vm309, %v2964, 0
        %v3017 = vsel %vm309, %v2965, 0
        %v3020 = vsel %vm309, %v2966, 0
        %v3023 = vsel %vm309, %v2967, 0
        %v3026 = vsel %vm309, %v2968, 0
        %v3029 = vsel %vm309, %v2969, 0
        %v3032 = vsel %vm309, %v2970, 0
        %v3035 = vsel %vm309, %v2971, 0
        %v3038 = vsel %vm309, %v2972, 0
        %v3041 = vsel %vm309, %v2973, 0
        %v3044 = vsel %vm309, %v2974, 0
        %v3047 = vsel %vm309, %v2975, 0
        %v3050 = vsel %vm309, %v2976, 0
        %v3053 = vsel %vm309, %v2977, 0
        %v3056 = vsel %vm309, %v2978, 0
        %v3059 = vsel %vm309, %v2979, 0
        %3061 = vmatprep.subr.bf16.mxu0 0
        %3062 = vmatpush1.bf16.msra.mxu0 %v3005
        %3063 = vmatprep.subr.bf16.mxu0 0
        %3064 = vmatpush1.bf16.msra.mxu0 %v3006
        %3065 = vmatprep.subr.bf16.mxu0 0
        %3066 = vmatpush1.bf16.msra.mxu0 %v3007
        %3067 = vmatprep.subr.bf16.mxu0 0
        %3068 = vmatpush1.bf16.msra.mxu0 %v3008
        %3069 = vmatprep.subr.bf16.mxu0 0
        %3070 = vmatpush1.bf16.msra.mxu0 0
        %3071 = vmatprep.subr.bf16.mxu0 0
        %3072 = vmatpush1.bf16.msra.mxu0 0
        %3073 = vmatprep.subr.bf16.mxu0 0
        %3074 = vmatpush1.bf16.msra.mxu0 0
        %3075 = vmatprep.subr.bf16.mxu0 0
        %3076 = vmatpush1.bf16.msra.mxu0 0
        %3077 = vmatprep.subr.bf16.mxu0 0
        %3078 = vmatpush1.bf16.msra.mxu0 0
        %3079 = vmatprep.subr.bf16.mxu0 0
        %3080 = vmatpush1.bf16.msra.mxu0 0
        %3081 = vmatprep.subr.bf16.mxu0 0
        %3082 = vmatpush1.bf16.msra.mxu0 0
        %3083 = vmatprep.subr.bf16.mxu0 0
        %3084 = vmatpush1.bf16.msra.mxu0 0
        %3085 = vmatprep.subr.bf16.mxu0 0
        %3086 = vmatpush1.bf16.msra.mxu0 0
        %3087 = vmatprep.subr.bf16.mxu0 0
        %3088 = vmatpush1.bf16.msra.mxu0 0
        %3089 = vmatprep.subr.bf16.mxu0 0
        %3090 = vmatpush1.bf16.msra.mxu0 0
        %3091 = vmatprep.subr.bf16.mxu0 0
        %3092 = vmatpush1.bf16.msra.mxu0 0
        %3093 = vmatprep.mubr.bf16.mxu0 0
        %3094 = vmatmul.mubr.bf16.gmra.mrb[0].mxu0 %v3014
        %v3095 = vpop.f32.mrb[0].mxu0
        %v3096 = vadd.f32 0.0, %v3095
        %v3097 = vpop.f32.mrb[0].mxu0
        %v3098 = vpop.f32.mrb[0].mxu0
        %v3099 = vadd.f32 0.0, %v3098
        %v3100 = vpop.f32.mrb[0].mxu0
        %3101 = vmatprep.mubr.bf16.mxu0 0
        %3102 = vmatmul.mubr.bf16.gmra.mrb[0].mxu0 %v3017
        %v3103 = vpop.f32.mrb[0].mxu0
        %v3104 = vadd.f32 0.0, %v3103
        %v3105 = vpop.f32.mrb[0].mxu0
        %v3106 = vpop.f32.mrb[0].mxu0
        %v3107 = vadd.f32 0.0, %v3106
        %v3108 = vpop.f32.mrb[0].mxu0
        %3109 = vmatprep.mubr.bf16.mxu0 0
        %3110 = vmatmul.mubr.bf16.gmra.mrb[0].mxu0 %v3020
        %v3111 = vpop.f32.mrb[0].mxu0
        %v3112 = vadd.f32 0.0, %v3111
        %v3113 = vpop.f32.mrb[0].mxu0
        %v3114 = vpop.f32.mrb[0].mxu0
        %v3115 = vadd.f32 0.0, %v3114
        %v3116 = vpop.f32.mrb[0].mxu0
        %3117 = vmatprep.mubr.bf16.mxu0 0
        %3118 = vmatmul.mubr.bf16.gmra.mrb[0].mxu0 %v3023
        %v3119 = vpop.f32.mrb[0].mxu0
        %v3120 = vadd.f32 0.0, %v3119
        %v3121 = vpop.f32.mrb[0].mxu0
        %v3122 = vpop.f32.mrb[0].mxu0
        %v3123 = vadd.f32 0.0, %v3122
        %v3124 = vpop.f32.mrb[0].mxu0
        %3125 = vmatprep.mubr.bf16.mxu0 0
        %3126 = vmatmul.mubr.bf16.gmra.mrb[0].mxu0 %v3026
        %v3127 = vpop.f32.mrb[0].mxu0
        %v3128 = vadd.f32 0.0, %v3127
        %v3129 = vpop.f32.mrb[0].mxu0
        %v3130 = vpop.f32.mrb[0].mxu0
        %v3131 = vadd.f32 0.0, %v3130
        %v3132 = vpop.f32.mrb[0].mxu0
        %3133 = vmatprep.mubr.bf16.mxu0 0
        %3134 = vmatmul.mubr.bf16.gmra.mrb[0].mxu0 %v3029
        %v3135 = vpop.f32.mrb[0].mxu0
        %v3136 = vadd.f32 0.0, %v3135
        %v3137 = vpop.f32.mrb[0].mxu0
        %v3138 = vpop.f32.mrb[0].mxu0
        %v3139 = vadd.f32 0.0, %v3138
        %v3140 = vpop.f32.mrb[0].mxu0
        %3141 = vmatprep.mubr.bf16.mxu0 0
        %3142 = vmatmul.mubr.bf16.gmra.mrb[0].mxu0 %v3032
        %v3143 = vpop.f32.mrb[0].mxu0
        %v3144 = vadd.f32 0.0, %v3143
        %v3145 = vpop.f32.mrb[0].mxu0
        %v3146 = vpop.f32.mrb[0].mxu0
        %v3147 = vadd.f32 0.0, %v3146
        %v3148 = vpop.f32.mrb[0].mxu0
        %3149 = vmatprep.mubr.bf16.mxu0 0
        %3150 = vmatmul.mubr.bf16.gmra.mrb[0].mxu0 %v3035
        %v3151 = vpop.f32.mrb[0].mxu0
        %v3152 = vadd.f32 0.0, %v3151
        %v3153 = vpop.f32.mrb[0].mxu0
        %v3154 = vpop.f32.mrb[0].mxu0
        %v3155 = vadd.f32 0.0, %v3154
        %v3156 = vpop.f32.mrb[0].mxu0
        %3157 = vmatprep.mubr.bf16.mxu0 0
        %3158 = vmatmul.mubr.bf16.gmra.mrb[0].mxu0 %v3038
        %v3159 = vpop.f32.mrb[0].mxu0
        %v3160 = vadd.f32 0.0, %v3159
        %v3161 = vpop.f32.mrb[0].mxu0
        %v3162 = vpop.f32.mrb[0].mxu0
        %v3163 = vadd.f32 0.0, %v3162
        %v3164 = vpop.f32.mrb[0].mxu0
        %3165 = vmatprep.mubr.bf16.mxu0 0
        %3166 = vmatmul.mubr.bf16.gmra.mrb[0].mxu0 %v3041
        %v3167 = vpop.f32.mrb[0].mxu0
        %v3168 = vadd.f32 0.0, %v3167
        %v3169 = vpop.f32.mrb[0].mxu0
        %v3170 = vpop.f32.mrb[0].mxu0
        %v3171 = vadd.f32 0.0, %v3170
        %v3172 = vpop.f32.mrb[0].mxu0
        %3173 = vmatprep.mubr.bf16.mxu0 0
        %3174 = vmatmul.mubr.bf16.gmra.mrb[0].mxu0 %v3044
        %v3175 = vpop.f32.mrb[0].mxu0
        %v3176 = vadd.f32 0.0, %v3175
        %v3177 = vpop.f32.mrb[0].mxu0
        %v3178 = vpop.f32.mrb[0].mxu0
        %v3179 = vadd.f32 0.0, %v3178
        %v3180 = vpop.f32.mrb[0].mxu0
        %3181 = vmatprep.mubr.bf16.mxu0 0
        %3182 = vmatmul.mubr.bf16.gmra.mrb[0].mxu0 %v3047
        %v3183 = vpop.f32.mrb[0].mxu0
        %v3184 = vadd.f32 0.0, %v3183
        %v3185 = vpop.f32.mrb[0].mxu0
        %v3186 = vpop.f32.mrb[0].mxu0
        %v3187 = vadd.f32 0.0, %v3186
        %v3188 = vpop.f32.mrb[0].mxu0
        %3189 = vmatprep.mubr.bf16.mxu0 0
        %3190 = vmatmul.mubr.bf16.gmra.mrb[0].mxu0 %v3050
        %v3191 = vpop.f32.mrb[0].mxu0
        %v3192 = vadd.f32 0.0, %v3191
        %v3193 = vpop.f32.mrb[0].mxu0
        %v3194 = vpop.f32.mrb[0].mxu0
        %v3195 = vadd.f32 0.0, %v3194
        %v3196 = vpop.f32.mrb[0].mxu0
        %3197 = vmatprep.mubr.bf16.mxu0 0
        %3198 = vmatmul.mubr.bf16.gmra.mrb[0].mxu0 %v3053
        %v3199 = vpop.f32.mrb[0].mxu0
        %v3200 = vadd.f32 0.0, %v3199
        %v3201 = vpop.f32.mrb[0].mxu0
        %v3202 = vpop.f32.mrb[0].mxu0
        %v3203 = vadd.f32 0.0, %v3202
        %v3204 = vpop.f32.mrb[0].mxu0
        %3205 = vmatprep.mubr.bf16.mxu0 0
        %3206 = vmatmul.mubr.bf16.gmra.mrb[0].mxu0 %v3056
        %v3207 = vpop.f32.mrb[0].mxu0
        %v3208 = vadd.f32 0.0, %v3207
        %v3209 = vpop.f32.mrb[0].mxu0
        %v3210 = vpop.f32.mrb[0].mxu0
        %v3211 = vadd.f32 0.0, %v3210
        %v3212 = vpop.f32.mrb[0].mxu0
        %3213 = vmatprep.mubr.bf16.mxu0 0
        %3214 = vmatmul.mubr.bf16.gmra.mrb[0].mxu0 %v3059
        %v3215 = vpop.f32.mrb[0].mxu0
        %v3216 = vadd.f32 0.0, %v3215
        %v3217 = vpop.f32.mrb[0].mxu0
        %v3218 = vpop.f32.mrb[0].mxu0
        %v3219 = vadd.f32 0.0, %v3218
        %v3220 = vpop.f32.mrb[0].mxu0
        %3221 = vdwg.mxu0
        %v3222 = vadd.f32 %v2900, %v3096
        %v3223 = vadd.f32 %v2901, %v3099
        %v3224 = vadd.f32 %v2902, %v3104
        %v3225 = vadd.f32 %v2903, %v3107
        %v3226 = vadd.f32 %v2904, %v3112
        %v3227 = vadd.f32 %v2905, %v3115
        %v3228 = vadd.f32 %v2906, %v3120
        %v3229 = vadd.f32 %v2907, %v3123
        %v3230 = vadd.f32 %v2908, %v3128
        %v3231 = vadd.f32 %v2909, %v3131
        %v3232 = vadd.f32 %v2910, %v3136
        %v3233 = vadd.f32 %v2911, %v3139
        %v3234 = vadd.f32 %v2912, %v3144
        %v3235 = vadd.f32 %v2913, %v3147
        %v3236 = vadd.f32 %v2914, %v3152
        %v3237 = vadd.f32 %v2915, %v3155
        %v3238 = vadd.f32 %v2916, %v3160
        %v3239 = vadd.f32 %v2917, %v3163
        %v3240 = vadd.f32 %v2918, %v3168
        %v3241 = vadd.f32 %v2919, %v3171
        %v3242 = vadd.f32 %v2920, %v3176
        %v3243 = vadd.f32 %v2921, %v3179
        %v3244 = vadd.f32 %v2922, %v3184
        %v3245 = vadd.f32 %v2923, %v3187
        %v3246 = vadd.f32 %v2924, %v3192
        %v3247 = vadd.f32 %v2925, %v3195
        %v3248 = vadd.f32 %v2926, %v3200
        %v3249 = vadd.f32 %v2927, %v3203
        %v3250 = vadd.f32 %v2928, %v3208
        %v3251 = vadd.f32 %v2929, %v3211
        %v3252 = vadd.f32 %v2930, %v3216
        %v3253 = vadd.f32 %v2931, %v3219
        %v3254 = vld [vmem:[%s3] sm:$0x1]
        %v3256 = vlaneseq
        %v3257 = vshrl.u32 %v3256, 7
        %v3258 = vsub.s32 0, %v3257
        %v3259 = vrot.slane %v3254, %v3258
        %v3261 = vadd.f32 %v3222, %v3259
        %v3262 = vadd.f32 %v3223, %v3259
        %v3263 = vadd.f32 %v3224, %v3259
        %v3264 = vadd.f32 %v3225, %v3259
        %v3265 = vadd.f32 %v3226, %v3259
        %v3266 = vadd.f32 %v3227, %v3259
        %v3267 = vadd.f32 %v3228, %v3259
        %v3268 = vadd.f32 %v3229, %v3259
        %v3269 = vadd.f32 %v3230, %v3259
        %v3270 = vadd.f32 %v3231, %v3259
        %v3271 = vadd.f32 %v3232, %v3259
        %v3272 = vadd.f32 %v3233, %v3259
        %v3273 = vadd.f32 %v3234, %v3259
        %v3274 = vadd.f32 %v3235, %v3259
        %v3275 = vadd.f32 %v3236, %v3259
        %v3276 = vadd.f32 %v3237, %v3259
        %v3277 = vadd.f32 %v3238, %v3259
        %v3278 = vadd.f32 %v3239, %v3259
        %v3279 = vadd.f32 %v3240, %v3259
        %v3280 = vadd.f32 %v3241, %v3259
        %v3281 = vadd.f32 %v3242, %v3259
        %v3282 = vadd.f32 %v3243, %v3259
        %v3283 = vadd.f32 %v3244, %v3259
        %v3284 = vadd.f32 %v3245, %v3259
        %v3285 = vadd.f32 %v3246, %v3259
        %v3286 = vadd.f32 %v3247, %v3259
        %v3287 = vadd.f32 %v3248, %v3259
        %v3288 = vadd.f32 %v3249, %v3259
        %v3289 = vadd.f32 %v3250, %v3259
        %v3290 = vadd.f32 %v3251, %v3259
        %v3291 = vadd.f32 %v3252, %v3259
        %v3292 = vadd.f32 %v3253, %v3259
        %v3293 = vmul.f32 %v3261, 0.5
        %v3294 = vmul.f32 %v3262, 0.5
        %v3295 = vmul.f32 %v3263, 0.5
        %v3296 = vmul.f32 %v3264, 0.5
        %v3297 = vmul.f32 %v3265, 0.5
        %v3298 = vmul.f32 %v3266, 0.5
        %v3299 = vmul.f32 %v3267, 0.5
        %v3300 = vmul.f32 %v3268, 0.5
        %v3301 = vmul.f32 %v3269, 0.5
        %v3302 = vmul.f32 %v3270, 0.5
        %v3303 = vmul.f32 %v3271, 0.5
        %v3304 = vmul.f32 %v3272, 0.5
        %v3305 = vmul.f32 %v3273, 0.5
        %v3306 = vmul.f32 %v3274, 0.5
        %v3307 = vmul.f32 %v3275, 0.5
        %v3308 = vmul.f32 %v3276, 0.5
        %v3309 = vmul.f32 %v3277, 0.5
        %v3310 = vmul.f32 %v3278, 0.5
        %v3311 = vmul.f32 %v3279, 0.5
        %v3312 = vmul.f32 %v3280, 0.5
        %v3313 = vmul.f32 %v3281, 0.5
        %v3314 = vmul.f32 %v3282, 0.5
        %v3315 = vmul.f32 %v3283, 0.5
        %v3316 = vmul.f32 %v3284, 0.5
        %v3317 = vmul.f32 %v3285, 0.5
        %v3318 = vmul.f32 %v3286, 0.5
        %v3319 = vmul.f32 %v3287, 0.5
        %v3320 = vmul.f32 %v3288, 0.5
        %v3321 = vmul.f32 %v3289, 0.5
        %v3322 = vmul.f32 %v3290, 0.5
        %v3323 = vmul.f32 %v3291, 0.5
        %v3324 = vmul.f32 %v3292, 0.5
        %v3325 = vtanh.pop %v3293
        %v3326 = vtanh.pop %v3294
        %v3327 = vtanh.pop %v3295
        %v3328 = vtanh.pop %v3296
        %v3329 = vtanh.pop %v3297
        %v3330 = vtanh.pop %v3298
        %v3331 = vtanh.pop %v3299
        %v3332 = vtanh.pop %v3300
        %v3333 = vtanh.pop %v3301
        %v3334 = vtanh.pop %v3302
        %v3335 = vtanh.pop %v3303
        %v3336 = vtanh.pop %v3304
        %v3337 = vtanh.pop %v3305
        %v3338 = vtanh.pop %v3306
        %v3339 = vtanh.pop %v3307
        %v3340 = vtanh.pop %v3308
        %v3341 = vtanh.pop %v3309
        %v3342 = vtanh.pop %v3310
        %v3343 = vtanh.pop %v3311
        %v3344 = vtanh.pop %v3312
        %v3345 = vtanh.pop %v3313
        %v3346 = vtanh.pop %v3314
        %v3347 = vtanh.pop %v3315
        %v3348 = vtanh.pop %v3316
        %v3349 = vtanh.pop %v3317
        %v3350 = vtanh.pop %v3318
        %v3351 = vtanh.pop %v3319
        %v3352 = vtanh.pop %v3320
        %v3353 = vtanh.pop %v3321
        %v3354 = vtanh.pop %v3322
        %v3355 = vtanh.pop %v3323
        %v3356 = vtanh.pop %v3324
        %v3357 = vmul.f32 %v3325, 0.5
        %v3358 = vmul.f32 %v3326, 0.5
        %v3359 = vmul.f32 %v3327, 0.5
        %v3360 = vmul.f32 %v3328, 0.5
        %v3361 = vmul.f32 %v3329, 0.5
        %v3362 = vmul.f32 %v3330, 0.5
        %v3363 = vmul.f32 %v3331, 0.5
        %v3364 = vmul.f32 %v3332, 0.5
        %v3365 = vmul.f32 %v3333, 0.5
        %v3366 = vmul.f32 %v3334, 0.5
        %v3367 = vmul.f32 %v3335, 0.5
        %v3368 = vmul.f32 %v3336, 0.5
        %v3369 = vmul.f32 %v3337, 0.5
        %v3370 = vmul.f32 %v3338, 0.5
        %v3371 = vmul.f32 %v3339, 0.5
        %v3372 = vmul.f32 %v3340, 0.5
        %v3373 = vmul.f32 %v3341, 0.5
        %v3374 = vmul.f32 %v3342, 0.5
        %v3375 = vmul.f32 %v3343, 0.5
        %v3376 = vmul.f32 %v3344, 0.5
        %v3377 = vmul.f32 %v3345, 0.5
        %v3378 = vmul.f32 %v3346, 0.5
        %v3379 = vmul.f32 %v3347, 0.5
        %v3380 = vmul.f32 %v3348, 0.5
        %v3381 = vmul.f32 %v3349, 0.5
        %v3382 = vmul.f32 %v3350, 0.5
        %v3383 = vmul.f32 %v3351, 0.5
        %v3384 = vmul.f32 %v3352, 0.5
        %v3385 = vmul.f32 %v3353, 0.5
        %v3386 = vmul.f32 %v3354, 0.5
        %v3387 = vmul.f32 %v3355, 0.5
        %v3388 = vmul.f32 %v3356, 0.5
        %v3389 = vadd.f32 %v3357, 0.5
        %v3390 = vadd.f32 %v3358, 0.5
        %v3391 = vadd.f32 %v3359, 0.5
        %v3392 = vadd.f32 %v3360, 0.5
        %v3393 = vadd.f32 %v3361, 0.5
        %v3394 = vadd.f32 %v3362, 0.5
        %v3395 = vadd.f32 %v3363, 0.5
        %v3396 = vadd.f32 %v3364, 0.5
        %v3397 = vadd.f32 %v3365, 0.5
        %v3398 = vadd.f32 %v3366, 0.5
        %v3399 = vadd.f32 %v3367, 0.5
        %v3400 = vadd.f32 %v3368, 0.5
        %v3401 = vadd.f32 %v3369, 0.5
        %v3402 = vadd.f32 %v3370, 0.5
        %v3403 = vadd.f32 %v3371, 0.5
        %v3404 = vadd.f32 %v3372, 0.5
        %v3405 = vadd.f32 %v3373, 0.5
        %v3406 = vadd.f32 %v3374, 0.5
        %v3407 = vadd.f32 %v3375, 0.5
        %v3408 = vadd.f32 %v3376, 0.5
        %v3409 = vadd.f32 %v3377, 0.5
        %v3410 = vadd.f32 %v3378, 0.5
        %v3411 = vadd.f32 %v3379, 0.5
        %v3412 = vadd.f32 %v3380, 0.5
        %v3413 = vadd.f32 %v3381, 0.5
        %v3414 = vadd.f32 %v3382, 0.5
        %v3415 = vadd.f32 %v3383, 0.5
        %v3416 = vadd.f32 %v3384, 0.5
        %v3417 = vadd.f32 %v3385, 0.5
        %v3418 = vadd.f32 %v3386, 0.5
        %v3419 = vadd.f32 %v3387, 0.5
        %v3420 = vadd.f32 %v3388, 0.5
        %v3421 = vld [vmem:[%s267] sm:$0xff]
        %v3422 = vld [vmem:[%s267 + $0x8] sm:$0xff]
        %v3423 = vld [vmem:[%s267 + $0x10] sm:$0xff]
        %v3424 = vld [vmem:[%s267 + $0x18] sm:$0xff]
        %v3425 = vld [vmem:[%s267 + $0x20] sm:$0xff]
        %v3426 = vld [vmem:[%s267 + $0x28] sm:$0xff]
        %v3427 = vld [vmem:[%s267 + $0x30] sm:$0xff]
        %v3428 = vld [vmem:[%s267 + $0x38] sm:$0xff]
        %v3429 = vld [vmem:[%s267 + $0x40] sm:$0xff]
        %v3430 = vld [vmem:[%s267 + $0x48] sm:$0xff]
        %v3431 = vld [vmem:[%s267 + $0x50] sm:$0xff]
        %v3432 = vld [vmem:[%s267 + $0x58] sm:$0xff]
        %v3433 = vld [vmem:[%s267 + $0x60] sm:$0xff]
        %v3434 = vld [vmem:[%s267 + $0x68] sm:$0xff]
        %v3435 = vld [vmem:[%s267 + $0x70] sm:$0xff]
        %v3436 = vld [vmem:[%s267 + $0x78] sm:$0xff]
        %v3437 = vld [vmem:[%s267 + $0x80] sm:$0xff]
        %v3438 = vld [vmem:[%s267 + $0x88] sm:$0xff]
        %v3439 = vld [vmem:[%s267 + $0x90] sm:$0xff]
        %v3440 = vld [vmem:[%s267 + $0x98] sm:$0xff]
        %v3441 = vld [vmem:[%s267 + $0xa0] sm:$0xff]
        %v3442 = vld [vmem:[%s267 + $0xa8] sm:$0xff]
        %v3443 = vld [vmem:[%s267 + $0xb0] sm:$0xff]
        %v3444 = vld [vmem:[%s267 + $0xb8] sm:$0xff]
        %v3445 = vld [vmem:[%s267 + $0xc0] sm:$0xff]
        %v3446 = vld [vmem:[%s267 + $0xc8] sm:$0xff]
        %v3447 = vld [vmem:[%s267 + $0xd0] sm:$0xff]
        %v3448 = vld [vmem:[%s267 + $0xd8] sm:$0xff]
        %v3449 = vld [vmem:[%s267 + $0xe0] sm:$0xff]
        %v3450 = vld [vmem:[%s267 + $0xe8] sm:$0xff]
        %v3451 = vld [vmem:[%s267 + $0xf0] sm:$0xff]
        %v3452 = vld [vmem:[%s267 + $0xf8] sm:$0xff]
        %3485 = vrot.lane.b32.xlu0 %v3389, 64
        %v3486 = vpop.permute.xlu0 %3485
        %3487 = vrot.lane.b32.xlu0 %v3390, 64
        %v3488 = vpop.permute.xlu0 %3487
        %3489 = vrot.lane.b32.xlu0 %v3391, 64
        %v3490 = vpop.permute.xlu0 %3489
        %3491 = vrot.lane.b32.xlu0 %v3392, 64
        %v3492 = vpop.permute.xlu0 %3491
        %3493 = vrot.lane.b32.xlu0 %v3393, 64
        %v3494 = vpop.permute.xlu0 %3493
        %3495 = vrot.lane.b32.xlu0 %v3394, 64
        %v3496 = vpop.permute.xlu0 %3495
        %3497 = vrot.lane.b32.xlu0 %v3395, 64
        %v3498 = vpop.permute.xlu0 %3497
        %3499 = vrot.lane.b32.xlu0 %v3396, 64
        %v3500 = vpop.permute.xlu0 %3499
        %3501 = vrot.lane.b32.xlu0 %v3397, 64
        %v3502 = vpop.permute.xlu0 %3501
        %3503 = vrot.lane.b32.xlu0 %v3398, 64
        %v3504 = vpop.permute.xlu0 %3503
        %3505 = vrot.lane.b32.xlu0 %v3399, 64
        %v3506 = vpop.permute.xlu0 %3505
        %3507 = vrot.lane.b32.xlu0 %v3400, 64
        %v3508 = vpop.permute.xlu0 %3507
        %3509 = vrot.lane.b32.xlu0 %v3401, 64
        %v3510 = vpop.permute.xlu0 %3509
        %3511 = vrot.lane.b32.xlu0 %v3402, 64
        %v3512 = vpop.permute.xlu0 %3511
        %3513 = vrot.lane.b32.xlu0 %v3403, 64
        %v3514 = vpop.permute.xlu0 %3513
        %3515 = vrot.lane.b32.xlu0 %v3404, 64
        %v3516 = vpop.permute.xlu0 %3515
        %3517 = vrot.lane.b32.xlu0 %v3405, 64
        %v3518 = vpop.permute.xlu0 %3517
        %3519 = vrot.lane.b32.xlu0 %v3406, 64
        %v3520 = vpop.permute.xlu0 %3519
        %3521 = vrot.lane.b32.xlu0 %v3407, 64
        %v3522 = vpop.permute.xlu0 %3521
        %3523 = vrot.lane.b32.xlu0 %v3408, 64
        %v3524 = vpop.permute.xlu0 %3523
        %3525 = vrot.lane.b32.xlu0 %v3409, 64
        %v3526 = vpop.permute.xlu0 %3525
        %3527 = vrot.lane.b32.xlu0 %v3410, 64
        %v3528 = vpop.permute.xlu0 %3527
        %3529 = vrot.lane.b32.xlu0 %v3411, 64
        %v3530 = vpop.permute.xlu0 %3529
        %3531 = vrot.lane.b32.xlu0 %v3412, 64
        %v3532 = vpop.permute.xlu0 %3531
        %3533 = vrot.lane.b32.xlu0 %v3413, 64
        %v3534 = vpop.permute.xlu0 %3533
        %3535 = vrot.lane.b32.xlu0 %v3414, 64
        %v3536 = vpop.permute.xlu0 %3535
        %3537 = vrot.lane.b32.xlu0 %v3415, 64
        %v3538 = vpop.permute.xlu0 %3537
        %3539 = vrot.lane.b32.xlu0 %v3416, 64
        %v3540 = vpop.permute.xlu0 %3539
        %3541 = vrot.lane.b32.xlu0 %v3417, 64
        %v3542 = vpop.permute.xlu0 %3541
        %3543 = vrot.lane.b32.xlu0 %v3418, 64
        %v3544 = vpop.permute.xlu0 %3543
        %3545 = vrot.lane.b32.xlu0 %v3419, 64
        %v3546 = vpop.permute.xlu0 %3545
        %3547 = vrot.lane.b32.xlu0 %v3420, 64
        %v3548 = vpop.permute.xlu0 %3547
        %v3581 = vmul.f32 %v3421, %v3486
        %v3582 = vmul.f32 %v3422, %v3488
        %v3583 = vmul.f32 %v3423, %v3490
        %v3584 = vmul.f32 %v3424, %v3492
        %v3585 = vmul.f32 %v3425, %v3494
        %v3586 = vmul.f32 %v3426, %v3496
        %v3587 = vmul.f32 %v3427, %v3498
        %v3588 = vmul.f32 %v3428, %v3500
        %v3589 = vmul.f32 %v3429, %v3502
        %v3590 = vmul.f32 %v3430, %v3504
        %v3591 = vmul.f32 %v3431, %v3506
        %v3592 = vmul.f32 %v3432, %v3508
        %v3593 = vmul.f32 %v3433, %v3510
        %v3594 = vmul.f32 %v3434, %v3512
        %v3595 = vmul.f32 %v3435, %v3514
        %v3596 = vmul.f32 %v3436, %v3516
        %v3597 = vmul.f32 %v3437, %v3518
        %v3598 = vmul.f32 %v3438, %v3520
        %v3599 = vmul.f32 %v3439, %v3522
        %v3600 = vmul.f32 %v3440, %v3524
        %v3601 = vmul.f32 %v3441, %v3526
        %v3602 = vmul.f32 %v3442, %v3528
        %v3603 = vmul.f32 %v3443, %v3530
        %v3604 = vmul.f32 %v3444, %v3532
        %v3605 = vmul.f32 %v3445, %v3534
        %v3606 = vmul.f32 %v3446, %v3536
        %v3607 = vmul.f32 %v3447, %v3538
        %v3608 = vmul.f32 %v3448, %v3540
        %v3609 = vmul.f32 %v3449, %v3542
        %v3610 = vmul.f32 %v3450, %v3544
        %v3611 = vmul.f32 %v3451, %v3546
        %v3612 = vmul.f32 %v3452, %v3548
        %v3613 = vmax.f32 %v3261, 0.0
        %v3614 = vmax.f32 %v3262, 0.0
        %v3615 = vmax.f32 %v3263, 0.0
        %v3616 = vmax.f32 %v3264, 0.0
        %v3617 = vmax.f32 %v3265, 0.0
        %v3618 = vmax.f32 %v3266, 0.0
        %v3619 = vmax.f32 %v3267, 0.0
        %v3620 = vmax.f32 %v3268, 0.0
        %v3621 = vmax.f32 %v3269, 0.0
        %v3622 = vmax.f32 %v3270, 0.0
        %v3623 = vmax.f32 %v3271, 0.0
        %v3624 = vmax.f32 %v3272, 0.0
        %v3625 = vmax.f32 %v3273, 0.0
        %v3626 = vmax.f32 %v3274, 0.0
        %v3627 = vmax.f32 %v3275, 0.0
        %v3628 = vmax.f32 %v3276, 0.0
        %v3629 = vmax.f32 %v3277, 0.0
        %v3630 = vmax.f32 %v3278, 0.0
        %v3631 = vmax.f32 %v3279, 0.0
        %v3632 = vmax.f32 %v3280, 0.0
        %v3633 = vmax.f32 %v3281, 0.0
        %v3634 = vmax.f32 %v3282, 0.0
        %v3635 = vmax.f32 %v3283, 0.0
        %v3636 = vmax.f32 %v3284, 0.0
        %v3637 = vmax.f32 %v3285, 0.0
        %v3638 = vmax.f32 %v3286, 0.0
        %v3639 = vmax.f32 %v3287, 0.0
        %v3640 = vmax.f32 %v3288, 0.0
        %v3641 = vmax.f32 %v3289, 0.0
        %v3642 = vmax.f32 %v3290, 0.0
        %v3643 = vmax.f32 %v3291, 0.0
        %v3644 = vmax.f32 %v3292, 0.0
        %3677 = vrot.lane.b32.xlu0 %v3613, 32
        %v3678 = vpop.permute.xlu0 %3677
        %3679 = vrot.lane.b32.xlu0 %v3614, 32
        %v3680 = vpop.permute.xlu0 %3679
        %3681 = vrot.lane.b32.xlu0 %v3615, 32
        %v3682 = vpop.permute.xlu0 %3681
        %3683 = vrot.lane.b32.xlu0 %v3616, 32
        %v3684 = vpop.permute.xlu0 %3683
        %3685 = vrot.lane.b32.xlu0 %v3617, 32
        %v3686 = vpop.permute.xlu0 %3685
        %3687 = vrot.lane.b32.xlu0 %v3618, 32
        %v3688 = vpop.permute.xlu0 %3687
        %3689 = vrot.lane.b32.xlu0 %v3619, 32
        %v3690 = vpop.permute.xlu0 %3689
        %3691 = vrot.lane.b32.xlu0 %v3620, 32
        %v3692 = vpop.permute.xlu0 %3691
        %3693 = vrot.lane.b32.xlu0 %v3621, 32
        %v3694 = vpop.permute.xlu0 %3693
        %3695 = vrot.lane.b32.xlu0 %v3622, 32
        %v3696 = vpop.permute.xlu0 %3695
        %3697 = vrot.lane.b32.xlu0 %v3623, 32
        %v3698 = vpop.permute.xlu0 %3697
        %3699 = vrot.lane.b32.xlu0 %v3624, 32
        %v3700 = vpop.permute.xlu0 %3699
        %3701 = vrot.lane.b32.xlu0 %v3625, 32
        %v3702 = vpop.permute.xlu0 %3701
        %3703 = vrot.lane.b32.xlu0 %v3626, 32
        %v3704 = vpop.permute.xlu0 %3703
        %3705 = vrot.lane.b32.xlu0 %v3627, 32
        %v3706 = vpop.permute.xlu0 %3705
        %3707 = vrot.lane.b32.xlu0 %v3628, 32
        %v3708 = vpop.permute.xlu0 %3707
        %3709 = vrot.lane.b32.xlu0 %v3629, 32
        %v3710 = vpop.permute.xlu0 %3709
        %3711 = vrot.lane.b32.xlu0 %v3630, 32
        %v3712 = vpop.permute.xlu0 %3711
        %3713 = vrot.lane.b32.xlu0 %v3631, 32
        %v3714 = vpop.permute.xlu0 %3713
        %3715 = vrot.lane.b32.xlu0 %v3632, 32
        %v3716 = vpop.permute.xlu0 %3715
        %3717 = vrot.lane.b32.xlu0 %v3633, 32
        %v3718 = vpop.permute.xlu0 %3717
        %3719 = vrot.lane.b32.xlu0 %v3634, 32
        %v3720 = vpop.permute.xlu0 %3719
        %3721 = vrot.lane.b32.xlu0 %v3635, 32
        %v3722 = vpop.permute.xlu0 %3721
        %3723 = vrot.lane.b32.xlu0 %v3636, 32
        %v3724 = vpop.permute.xlu0 %3723
        %3725 = vrot.lane.b32.xlu0 %v3637, 32
        %v3726 = vpop.permute.xlu0 %3725
        %3727 = vrot.lane.b32.xlu0 %v3638, 32
        %v3728 = vpop.permute.xlu0 %3727
        %3729 = vrot.lane.b32.xlu0 %v3639, 32
        %v3730 = vpop.permute.xlu0 %3729
        %3731 = vrot.lane.b32.xlu0 %v3640, 32
        %v3732 = vpop.permute.xlu0 %3731
        %3733 = vrot.lane.b32.xlu0 %v3641, 32
        %v3734 = vpop.permute.xlu0 %3733
        %3735 = vrot.lane.b32.xlu0 %v3642, 32
        %v3736 = vpop.permute.xlu0 %3735
        %3737 = vrot.lane.b32.xlu0 %v3643, 32
        %v3738 = vpop.permute.xlu0 %3737
        %3739 = vrot.lane.b32.xlu0 %v3644, 32
        %v3740 = vpop.permute.xlu0 %3739
        %v3773 = vmul.f32 %v3389, %v3678
        %v3774 = vmul.f32 %v3390, %v3680
        %v3775 = vmul.f32 %v3391, %v3682
        %v3776 = vmul.f32 %v3392, %v3684
        %v3777 = vmul.f32 %v3393, %v3686
        %v3778 = vmul.f32 %v3394, %v3688
        %v3779 = vmul.f32 %v3395, %v3690
        %v3780 = vmul.f32 %v3396, %v3692
        %v3781 = vmul.f32 %v3397, %v3694
        %v3782 = vmul.f32 %v3398, %v3696
        %v3783 = vmul.f32 %v3399, %v3698
        %v3784 = vmul.f32 %v3400, %v3700
        %v3785 = vmul.f32 %v3401, %v3702
        %v3786 = vmul.f32 %v3402, %v3704
        %v3787 = vmul.f32 %v3403, %v3706
        %v3788 = vmul.f32 %v3404, %v3708
        %v3789 = vmul.f32 %v3405, %v3710
        %v3790 = vmul.f32 %v3406, %v3712
        %v3791 = vmul.f32 %v3407, %v3714
        %v3792 = vmul.f32 %v3408, %v3716
        %v3793 = vmul.f32 %v3409, %v3718
        %v3794 = vmul.f32 %v3410, %v3720
        %v3795 = vmul.f32 %v3411, %v3722
        %v3796 = vmul.f32 %v3412, %v3724
        %v3797 = vmul.f32 %v3413, %v3726
        %v3798 = vmul.f32 %v3414, %v3728
        %v3799 = vmul.f32 %v3415, %v3730
        %v3800 = vmul.f32 %v3416, %v3732
        %v3801 = vmul.f32 %v3417, %v3734
        %v3802 = vmul.f32 %v3418, %v3736
        %v3803 = vmul.f32 %v3419, %v3738
        %v3804 = vmul.f32 %v3420, %v3740
        %3837 = vrot.lane.b32.xlu0 %v3773, 96
        %v3838 = vpop.permute.xlu0 %3837
        %3839 = vrot.lane.b32.xlu0 %v3774, 96
        %v3840 = vpop.permute.xlu0 %3839
        %3841 = vrot.lane.b32.xlu0 %v3775, 96
        %v3842 = vpop.permute.xlu0 %3841
        %3843 = vrot.lane.b32.xlu0 %v3776, 96
        %v3844 = vpop.permute.xlu0 %3843
        %3845 = vrot.lane.b32.xlu0 %v3777, 96
        %v3846 = vpop.permute.xlu0 %3845
        %3847 = vrot.lane.b32.xlu0 %v3778, 96
        %v3848 = vpop.permute.xlu0 %3847
        %3849 = vrot.lane.b32.xlu0 %v3779, 96
        %v3850 = vpop.permute.xlu0 %3849
        %3851 = vrot.lane.b32.xlu0 %v3780, 96
        %v3852 = vpop.permute.xlu0 %3851
        %3853 = vrot.lane.b32.xlu0 %v3781, 96
        %v3854 = vpop.permute.xlu0 %3853
        %3855 = vrot.lane.b32.xlu0 %v3782, 96
        %v3856 = vpop.permute.xlu0 %3855
        %3857 = vrot.lane.b32.xlu0 %v3783, 96
        %v3858 = vpop.permute.xlu0 %3857
        %3859 = vrot.lane.b32.xlu0 %v3784, 96
        %v3860 = vpop.permute.xlu0 %3859
        %3861 = vrot.lane.b32.xlu0 %v3785, 96
        %v3862 = vpop.permute.xlu0 %3861
        %3863 = vrot.lane.b32.xlu0 %v3786, 96
        %v3864 = vpop.permute.xlu0 %3863
        %3865 = vrot.lane.b32.xlu0 %v3787, 96
        %v3866 = vpop.permute.xlu0 %3865
        %3867 = vrot.lane.b32.xlu0 %v3788, 96
        %v3868 = vpop.permute.xlu0 %3867
        %3869 = vrot.lane.b32.xlu0 %v3789, 96
        %v3870 = vpop.permute.xlu0 %3869
        %3871 = vrot.lane.b32.xlu0 %v3790, 96
        %v3872 = vpop.permute.xlu0 %3871
        %3873 = vrot.lane.b32.xlu0 %v3791, 96
        %v3874 = vpop.permute.xlu0 %3873
        %3875 = vrot.lane.b32.xlu0 %v3792, 96
        %v3876 = vpop.permute.xlu0 %3875
        %3877 = vrot.lane.b32.xlu0 %v3793, 96
        %v3878 = vpop.permute.xlu0 %3877
        %3879 = vrot.lane.b32.xlu0 %v3794, 96
        %v3880 = vpop.permute.xlu0 %3879
        %3881 = vrot.lane.b32.xlu0 %v3795, 96
        %v3882 = vpop.permute.xlu0 %3881
        %3883 = vrot.lane.b32.xlu0 %v3796, 96
        %v3884 = vpop.permute.xlu0 %3883
        %3885 = vrot.lane.b32.xlu0 %v3797, 96
        %v3886 = vpop.permute.xlu0 %3885
        %3887 = vrot.lane.b32.xlu0 %v3798, 96
        %v3888 = vpop.permute.xlu0 %3887
        %3889 = vrot.lane.b32.xlu0 %v3799, 96
        %v3890 = vpop.permute.xlu0 %3889
        %3891 = vrot.lane.b32.xlu0 %v3800, 96
        %v3892 = vpop.permute.xlu0 %3891
        %3893 = vrot.lane.b32.xlu0 %v3801, 96
        %v3894 = vpop.permute.xlu0 %3893
        %3895 = vrot.lane.b32.xlu0 %v3802, 96
        %v3896 = vpop.permute.xlu0 %3895
        %3897 = vrot.lane.b32.xlu0 %v3803, 96
        %v3898 = vpop.permute.xlu0 %3897
        %3899 = vrot.lane.b32.xlu0 %v3804, 96
        %v3900 = vpop.permute.xlu0 %3899
        %v3933 = vadd.f32 %v3581, %v3838
        %v3934 = vadd.f32 %v3582, %v3840
        %v3935 = vadd.f32 %v3583, %v3842
        %v3936 = vadd.f32 %v3584, %v3844
        %v3937 = vadd.f32 %v3585, %v3846
        %v3938 = vadd.f32 %v3586, %v3848
        %v3939 = vadd.f32 %v3587, %v3850
        %v3940 = vadd.f32 %v3588, %v3852
        %v3941 = vadd.f32 %v3589, %v3854
        %v3942 = vadd.f32 %v3590, %v3856
        %v3943 = vadd.f32 %v3591, %v3858
        %v3944 = vadd.f32 %v3592, %v3860
        %v3945 = vadd.f32 %v3593, %v3862
        %v3946 = vadd.f32 %v3594, %v3864
        %v3947 = vadd.f32 %v3595, %v3866
        %v3948 = vadd.f32 %v3596, %v3868
        %v3949 = vadd.f32 %v3597, %v3870
        %v3950 = vadd.f32 %v3598, %v3872
        %v3951 = vadd.f32 %v3599, %v3874
        %v3952 = vadd.f32 %v3600, %v3876
        %v3953 = vadd.f32 %v3601, %v3878
        %v3954 = vadd.f32 %v3602, %v3880
        %v3955 = vadd.f32 %v3603, %v3882
        %v3956 = vadd.f32 %v3604, %v3884
        %v3957 = vadd.f32 %v3605, %v3886
        %v3958 = vadd.f32 %v3606, %v3888
        %v3959 = vadd.f32 %v3607, %v3890
        %v3960 = vadd.f32 %v3608, %v3892
        %v3961 = vadd.f32 %v3609, %v3894
        %v3962 = vadd.f32 %v3610, %v3896
        %v3963 = vadd.f32 %v3611, %v3898
        %v3964 = vadd.f32 %v3612, %v3900
        %v3965 = vmax.f32 %v3933, 0.0
        %v3966 = vmax.f32 %v3934, 0.0
        %v3967 = vmax.f32 %v3935, 0.0
        %v3968 = vmax.f32 %v3936, 0.0
        %v3969 = vmax.f32 %v3937, 0.0
        %v3970 = vmax.f32 %v3938, 0.0
        %v3971 = vmax.f32 %v3939, 0.0
        %v3972 = vmax.f32 %v3940, 0.0
        %v3973 = vmax.f32 %v3941, 0.0
        %v3974 = vmax.f32 %v3942, 0.0
        %v3975 = vmax.f32 %v3943, 0.0
        %v3976 = vmax.f32 %v3944, 0.0
        %v3977 = vmax.f32 %v3945, 0.0
        %v3978 = vmax.f32 %v3946, 0.0
        %v3979 = vmax.f32 %v3947, 0.0
        %v3980 = vmax.f32 %v3948, 0.0
        %v3981 = vmax.f32 %v3949, 0.0
        %v3982 = vmax.f32 %v3950, 0.0
        %v3983 = vmax.f32 %v3951, 0.0
        %v3984 = vmax.f32 %v3952, 0.0
        %v3985 = vmax.f32 %v3953, 0.0
        %v3986 = vmax.f32 %v3954, 0.0
        %v3987 = vmax.f32 %v3955, 0.0
        %v3988 = vmax.f32 %v3956, 0.0
        %v3989 = vmax.f32 %v3957, 0.0
        %v3990 = vmax.f32 %v3958, 0.0
        %v3991 = vmax.f32 %v3959, 0.0
        %v3992 = vmax.f32 %v3960, 0.0
        %v3993 = vmax.f32 %v3961, 0.0
        %v3994 = vmax.f32 %v3962, 0.0
        %v3995 = vmax.f32 %v3963, 0.0
        %v3996 = vmax.f32 %v3964, 0.0
        %4029 = vrot.lane.b32.xlu0 %v3965, 96
        %v4030 = vpop.permute.xlu0 %4029
        %4031 = vrot.lane.b32.xlu0 %v3966, 96
        %v4032 = vpop.permute.xlu0 %4031
        %4033 = vrot.lane.b32.xlu0 %v3967, 96
        %v4034 = vpop.permute.xlu0 %4033
        %4035 = vrot.lane.b32.xlu0 %v3968, 96
        %v4036 = vpop.permute.xlu0 %4035
        %4037 = vrot.lane.b32.xlu0 %v3969, 96
        %v4038 = vpop.permute.xlu0 %4037
        %4039 = vrot.lane.b32.xlu0 %v3970, 96
        %v4040 = vpop.permute.xlu0 %4039
        %4041 = vrot.lane.b32.xlu0 %v3971, 96
        %v4042 = vpop.permute.xlu0 %4041
        %4043 = vrot.lane.b32.xlu0 %v3972, 96
        %v4044 = vpop.permute.xlu0 %4043
        %4045 = vrot.lane.b32.xlu0 %v3973, 96
        %v4046 = vpop.permute.xlu0 %4045
        %4047 = vrot.lane.b32.xlu0 %v3974, 96
        %v4048 = vpop.permute.xlu0 %4047
        %4049 = vrot.lane.b32.xlu0 %v3975, 96
        %v4050 = vpop.permute.xlu0 %4049
        %4051 = vrot.lane.b32.xlu0 %v3976, 96
        %v4052 = vpop.permute.xlu0 %4051
        %4053 = vrot.lane.b32.xlu0 %v3977, 96
        %v4054 = vpop.permute.xlu0 %4053
        %4055 = vrot.lane.b32.xlu0 %v3978, 96
        %v4056 = vpop.permute.xlu0 %4055
        %4057 = vrot.lane.b32.xlu0 %v3979, 96
        %v4058 = vpop.permute.xlu0 %4057
        %4059 = vrot.lane.b32.xlu0 %v3980, 96
        %v4060 = vpop.permute.xlu0 %4059
        %4061 = vrot.lane.b32.xlu0 %v3981, 96
        %v4062 = vpop.permute.xlu0 %4061
        %4063 = vrot.lane.b32.xlu0 %v3982, 96
        %v4064 = vpop.permute.xlu0 %4063
        %4065 = vrot.lane.b32.xlu0 %v3983, 96
        %v4066 = vpop.permute.xlu0 %4065
        %4067 = vrot.lane.b32.xlu0 %v3984, 96
        %v4068 = vpop.permute.xlu0 %4067
        %4069 = vrot.lane.b32.xlu0 %v3985, 96
        %v4070 = vpop.permute.xlu0 %4069
        %4071 = vrot.lane.b32.xlu0 %v3986, 96
        %v4072 = vpop.permute.xlu0 %4071
        %4073 = vrot.lane.b32.xlu0 %v3987, 96
        %v4074 = vpop.permute.xlu0 %4073
        %4075 = vrot.lane.b32.xlu0 %v3988, 96
        %v4076 = vpop.permute.xlu0 %4075
        %4077 = vrot.lane.b32.xlu0 %v3989, 96
        %v4078 = vpop.permute.xlu0 %4077
        %4079 = vrot.lane.b32.xlu0 %v3990, 96
        %v4080 = vpop.permute.xlu0 %4079
        %4081 = vrot.lane.b32.xlu0 %v3991, 96
        %v4082 = vpop.permute.xlu0 %4081
        %4083 = vrot.lane.b32.xlu0 %v3992, 96
        %v4084 = vpop.permute.xlu0 %4083
        %4085 = vrot.lane.b32.xlu0 %v3993, 96
        %v4086 = vpop.permute.xlu0 %4085
        %4087 = vrot.lane.b32.xlu0 %v3994, 96
        %v4088 = vpop.permute.xlu0 %4087
        %4089 = vrot.lane.b32.xlu0 %v3995, 96
        %v4090 = vpop.permute.xlu0 %4089
        %4091 = vrot.lane.b32.xlu0 %v3996, 96
        %v4092 = vpop.permute.xlu0 %4091
        %v4125 = vmul.f32 %v3389, %v4030
        %v4126 = vmul.f32 %v3390, %v4032
        %v4127 = vmul.f32 %v3391, %v4034
        %v4128 = vmul.f32 %v3392, %v4036
        %v4129 = vmul.f32 %v3393, %v4038
        %v4130 = vmul.f32 %v3394, %v4040
        %v4131 = vmul.f32 %v3395, %v4042
        %v4132 = vmul.f32 %v3396, %v4044
        %v4133 = vmul.f32 %v3397, %v4046
        %v4134 = vmul.f32 %v3398, %v4048
        %v4135 = vmul.f32 %v3399, %v4050
        %v4136 = vmul.f32 %v3400, %v4052
        %v4137 = vmul.f32 %v3401, %v4054
        %v4138 = vmul.f32 %v3402, %v4056
        %v4139 = vmul.f32 %v3403, %v4058
        %v4140 = vmul.f32 %v3404, %v4060
        %v4141 = vmul.f32 %v3405, %v4062
        %v4142 = vmul.f32 %v3406, %v4064
        %v4143 = vmul.f32 %v3407, %v4066
        %v4144 = vmul.f32 %v3408, %v4068
        %v4145 = vmul.f32 %v3409, %v4070
        %v4146 = vmul.f32 %v3410, %v4072
        %v4147 = vmul.f32 %v3411, %v4074
        %v4148 = vmul.f32 %v3412, %v4076
        %v4149 = vmul.f32 %v3413, %v4078
        %v4150 = vmul.f32 %v3414, %v4080
        %v4151 = vmul.f32 %v3415, %v4082
        %v4152 = vmul.f32 %v3416, %v4084
        %v4153 = vmul.f32 %v3417, %v4086
        %v4154 = vmul.f32 %v3418, %v4088
        %v4155 = vmul.f32 %v3419, %v4090
        %v4156 = vmul.f32 %v3420, %v4092
        %vm4157 = vcmask 261120
        %4158 = vst.msk [vmem:[%s300] sm:$0xff] %vm4157, %v3933
        %4159 = vst.msk [vmem:[%s300 + $0x8] sm:$0xff] %vm4157, %v3934
        %4160 = vst.msk [vmem:[%s300 + $0x10] sm:$0xff] %vm4157, %v3935
        %4161 = vst.msk [vmem:[%s300 + $0x18] sm:$0xff] %vm4157, %v3936
        %4162 = vst.msk [vmem:[%s300 + $0x20] sm:$0xff] %vm4157, %v3937
        %4163 = vst.msk [vmem:[%s300 + $0x28] sm:$0xff] %vm4157, %v3938
        %4164 = vst.msk [vmem:[%s300 + $0x30] sm:$0xff] %vm4157, %v3939
        %4165 = vst.msk [vmem:[%s300 + $0x38] sm:$0xff] %vm4157, %v3940
        %4166 = vst.msk [vmem:[%s300 + $0x40] sm:$0xff] %vm4157, %v3941
        %4167 = vst.msk [vmem:[%s300 + $0x48] sm:$0xff] %vm4157, %v3942
        %4168 = vst.msk [vmem:[%s300 + $0x50] sm:$0xff] %vm4157, %v3943
        %4169 = vst.msk [vmem:[%s300 + $0x58] sm:$0xff] %vm4157, %v3944
        %4170 = vst.msk [vmem:[%s300 + $0x60] sm:$0xff] %vm4157, %v3945
        %4171 = vst.msk [vmem:[%s300 + $0x68] sm:$0xff] %vm4157, %v3946
        %4172 = vst.msk [vmem:[%s300 + $0x70] sm:$0xff] %vm4157, %v3947
        %4173 = vst.msk [vmem:[%s300 + $0x78] sm:$0xff] %vm4157, %v3948
        %4174 = vst.msk [vmem:[%s300 + $0x80] sm:$0xff] %vm4157, %v3949
        %4175 = vst.msk [vmem:[%s300 + $0x88] sm:$0xff] %vm4157, %v3950
        %4176 = vst.msk [vmem:[%s300 + $0x90] sm:$0xff] %vm4157, %v3951
        %4177 = vst.msk [vmem:[%s300 + $0x98] sm:$0xff] %vm4157, %v3952
        %4178 = vst.msk [vmem:[%s300 + $0xa0] sm:$0xff] %vm4157, %v3953
        %4179 = vst.msk [vmem:[%s300 + $0xa8] sm:$0xff] %vm4157, %v3954
        %4180 = vst.msk [vmem:[%s300 + $0xb0] sm:$0xff] %vm4157, %v3955
        %4181 = vst.msk [vmem:[%s300 + $0xb8] sm:$0xff] %vm4157, %v3956
        %4182 = vst.msk [vmem:[%s300 + $0xc0] sm:$0xff] %vm4157, %v3957
        %4183 = vst.msk [vmem:[%s300 + $0xc8] sm:$0xff] %vm4157, %v3958
        %4184 = vst.msk [vmem:[%s300 + $0xd0] sm:$0xff] %vm4157, %v3959
        %4185 = vst.msk [vmem:[%s300 + $0xd8] sm:$0xff] %vm4157, %v3960
        %4186 = vst.msk [vmem:[%s300 + $0xe0] sm:$0xff] %vm4157, %v3961
        %4187 = vst.msk [vmem:[%s300 + $0xe8] sm:$0xff] %vm4157, %v3962
        %4188 = vst.msk [vmem:[%s300 + $0xf0] sm:$0xff] %vm4157, %v3963
        %4189 = vst.msk [vmem:[%s300 + $0xf8] sm:$0xff] %vm4157, %v3964
        %4222 = vrot.lane.b32.xlu0 %v4125, 32
        %v4223 = vpop.permute.xlu0 %4222
        %4224 = vrot.lane.b32.xlu0 %v4126, 32
        %v4225 = vpop.permute.xlu0 %4224
        %4226 = vrot.lane.b32.xlu0 %v4127, 32
        %v4227 = vpop.permute.xlu0 %4226
        %4228 = vrot.lane.b32.xlu0 %v4128, 32
        %v4229 = vpop.permute.xlu0 %4228
        %4230 = vrot.lane.b32.xlu0 %v4129, 32
        %v4231 = vpop.permute.xlu0 %4230
        %4232 = vrot.lane.b32.xlu0 %v4130, 32
        %v4233 = vpop.permute.xlu0 %4232
        %4234 = vrot.lane.b32.xlu0 %v4131, 32
        %v4235 = vpop.permute.xlu0 %4234
        %4236 = vrot.lane.b32.xlu0 %v4132, 32
        %v4237 = vpop.permute.xlu0 %4236
        %4238 = vrot.lane.b32.xlu0 %v4133, 32
        %v4239 = vpop.permute.xlu0 %4238
        %4240 = vrot.lane.b32.xlu0 %v4134, 32
        %v4241 = vpop.permute.xlu0 %4240
        %4242 = vrot.lane.b32.xlu0 %v4135, 32
        %v4243 = vpop.permute.xlu0 %4242
        %4244 = vrot.lane.b32.xlu0 %v4136, 32
        %v4245 = vpop.permute.xlu0 %4244
        %4246 = vrot.lane.b32.xlu0 %v4137, 32
        %v4247 = vpop.permute.xlu0 %4246
        %4248 = vrot.lane.b32.xlu0 %v4138, 32
        %v4249 = vpop.permute.xlu0 %4248
        %4250 = vrot.lane.b32.xlu0 %v4139, 32
        %v4251 = vpop.permute.xlu0 %4250
        %4252 = vrot.lane.b32.xlu0 %v4140, 32
        %v4253 = vpop.permute.xlu0 %4252
        %4254 = vrot.lane.b32.xlu0 %v4141, 32
        %v4255 = vpop.permute.xlu0 %4254
        %4256 = vrot.lane.b32.xlu0 %v4142, 32
        %v4257 = vpop.permute.xlu0 %4256
        %4258 = vrot.lane.b32.xlu0 %v4143, 32
        %v4259 = vpop.permute.xlu0 %4258
        %4260 = vrot.lane.b32.xlu0 %v4144, 32
        %v4261 = vpop.permute.xlu0 %4260
        %4262 = vrot.lane.b32.xlu0 %v4145, 32
        %v4263 = vpop.permute.xlu0 %4262
        %4264 = vrot.lane.b32.xlu0 %v4146, 32
        %v4265 = vpop.permute.xlu0 %4264
        %4266 = vrot.lane.b32.xlu0 %v4147, 32
        %v4267 = vpop.permute.xlu0 %4266
        %4268 = vrot.lane.b32.xlu0 %v4148, 32
        %v4269 = vpop.permute.xlu0 %4268
        %4270 = vrot.lane.b32.xlu0 %v4149, 32
        %v4271 = vpop.permute.xlu0 %4270
        %4272 = vrot.lane.b32.xlu0 %v4150, 32
        %v4273 = vpop.permute.xlu0 %4272
        %4274 = vrot.lane.b32.xlu0 %v4151, 32
        %v4275 = vpop.permute.xlu0 %4274
        %4276 = vrot.lane.b32.xlu0 %v4152, 32
        %v4277 = vpop.permute.xlu0 %4276
        %4278 = vrot.lane.b32.xlu0 %v4153, 32
        %v4279 = vpop.permute.xlu0 %4278
        %4280 = vrot.lane.b32.xlu0 %v4154, 32
        %v4281 = vpop.permute.xlu0 %4280
        %4282 = vrot.lane.b32.xlu0 %v4155, 32
        %v4283 = vpop.permute.xlu0 %4282
        %4284 = vrot.lane.b32.xlu0 %v4156, 32
        %v4285 = vpop.permute.xlu0 %4284
        %4318 = vst.msk [vmem:[%s307] sm:$0xff] %vm4157, %v4223
        %4319 = vst.msk [vmem:[%s307 + $0x8] sm:$0xff] %vm4157, %v4225
        %4320 = vst.msk [vmem:[%s307 + $0x10] sm:$0xff] %vm4157, %v4227
        %4321 = vst.msk [vmem:[%s307 + $0x18] sm:$0xff] %vm4157, %v4229
        %4322 = vst.msk [vmem:[%s307 + $0x20] sm:$0xff] %vm4157, %v4231
        %4323 = vst.msk [vmem:[%s307 + $0x28] sm:$0xff] %vm4157, %v4233
        %4324 = vst.msk [vmem:[%s307 + $0x30] sm:$0xff] %vm4157, %v4235
        %4325 = vst.msk [vmem:[%s307 + $0x38] sm:$0xff] %vm4157, %v4237
        %4326 = vst.msk [vmem:[%s307 + $0x40] sm:$0xff] %vm4157, %v4239
        %4327 = vst.msk [vmem:[%s307 + $0x48] sm:$0xff] %vm4157, %v4241
        %4328 = vst.msk [vmem:[%s307 + $0x50] sm:$0xff] %vm4157, %v4243
        %4329 = vst.msk [vmem:[%s307 + $0x58] sm:$0xff] %vm4157, %v4245
        %4330 = vst.msk [vmem:[%s307 + $0x60] sm:$0xff] %vm4157, %v4247
        %4331 = vst.msk [vmem:[%s307 + $0x68] sm:$0xff] %vm4157, %v4249
        %4332 = vst.msk [vmem:[%s307 + $0x70] sm:$0xff] %vm4157, %v4251
        %4333 = vst.msk [vmem:[%s307 + $0x78] sm:$0xff] %vm4157, %v4253
        %4334 = vst.msk [vmem:[%s307 + $0x80] sm:$0xff] %vm4157, %v4255
        %4335 = vst.msk [vmem:[%s307 + $0x88] sm:$0xff] %vm4157, %v4257
        %4336 = vst.msk [vmem:[%s307 + $0x90] sm:$0xff] %vm4157, %v4259
        %4337 = vst.msk [vmem:[%s307 + $0x98] sm:$0xff] %vm4157, %v4261
        %4338 = vst.msk [vmem:[%s307 + $0xa0] sm:$0xff] %vm4157, %v4263
        %4339 = vst.msk [vmem:[%s307 + $0xa8] sm:$0xff] %vm4157, %v4265
        %4340 = vst.msk [vmem:[%s307 + $0xb0] sm:$0xff] %vm4157, %v4267
        %4341 = vst.msk [vmem:[%s307 + $0xb8] sm:$0xff] %vm4157, %v4269
        %4342 = vst.msk [vmem:[%s307 + $0xc0] sm:$0xff] %vm4157, %v4271
        %4343 = vst.msk [vmem:[%s307 + $0xc8] sm:$0xff] %vm4157, %v4273
        %4344 = vst.msk [vmem:[%s307 + $0xd0] sm:$0xff] %vm4157, %v4275
        %4345 = vst.msk [vmem:[%s307 + $0xd8] sm:$0xff] %vm4157, %v4277
        %4346 = vst.msk [vmem:[%s307 + $0xe0] sm:$0xff] %vm4157, %v4279
        %4347 = vst.msk [vmem:[%s307 + $0xe8] sm:$0xff] %vm4157, %v4281
        %4348 = vst.msk [vmem:[%s307 + $0xf0] sm:$0xff] %vm4157, %v4283
        %4349 = vst.msk [vmem:[%s307 + $0xf8] sm:$0xff] %vm4157, %v4285
        %s4350 = sand.u32 %s131, 1
        %s4351 = scalar_lea.sflag [#allocation5], %s4350
        %s4352 = sand.u32 %s131, 1
        %s4353 = smul.addr %s4352, 256
        %s4354 = scalar_lea.vmem [#allocation9], %s4353
        %s4355 = sand.u32 %s157, 1
        %s4356 = scalar_lea.sflag [#allocation11], %s4355
        %s4357 = sand.u32 %s157, 1
        %s4358 = smul.addr %s4357, 256
        %s4359 = scalar_lea.vmem [#allocation10], %s4358
        // Predicated region
        $region49: #{tpu_custom_call.1} parent=35 // pred_check
          %p4360 = pneg %p141
        $region50: #{tpu_custom_call.1} parent=35 // pred_check_branch
          %4362 = sbr.rel (%p4360) target = $region52
        $region51: #{tpu_custom_call.1} parent=35 // pred_region
          %s4364 = ssub.s32 4096, 4096
          %4365 = vsyncadd %s4351, %s4364
          %s4366 = smul.addr %s29, 32
          %s4367 = smul.addr %s4366, 128
          %s4368 = scalar_lea.hbm %s4, %s4367
          %s4369 = sshll.u32 %s4354, 4
          %s4370 = int_to_ptr.vmem [resolvable:$true] %s4369
          %4375 = dma.vmem_to_hbm [thread:$0]  %s4370, 4096, %s4368, %s4351, 128, 128, 8
        $region52: #{tpu_custom_call.1} parent=35 // pred_fallthru
          _
        // Predicated region
        $region53: #{tpu_custom_call.1} parent=35 // pred_check
          %p4376 = pneg %p167
        $region54: #{tpu_custom_call.1} parent=35 // pred_check_branch
          %4378 = sbr.rel (%p4376) target = $region56
        $region55: #{tpu_custom_call.1} parent=35 // pred_region
          %s4380 = ssub.s32 4096, 4096
          %4381 = vsyncadd %s4356, %s4380
          %s4382 = smul.addr %s29, 32
          %s4383 = smul.addr %s4382, 128
          %s4384 = scalar_lea.hbm %s5, %s4383
          %s4385 = sshll.u32 %s4359, 4
          %s4386 = int_to_ptr.vmem [resolvable:$true] %s4385
          %4391 = dma.vmem_to_hbm [thread:$0]  %s4386, 4096, %s4384, %s4356, 128, 128, 8
        $region56: #{tpu_custom_call.1} parent=35 // pred_fallthru
          _
      $region36: #{tpu_custom_call.1} parent=5 // pred_fallthru
        _
      %p4392 = scmp.le.s32.totalorder 2, %s24
      // Predicated region
      $region57: #{tpu_custom_call.1} parent=5 // pred_check
        %p4393 = pneg %p4392
      $region58: #{tpu_custom_call.1} parent=5 // pred_check_branch
        %4395 = sbr.rel (%p4393) target = $region60
      $region59: #{tpu_custom_call.1} parent=5 // pred_region
        %s4396 = ssub.s32 %s24, 2
        // Predicated region
        $region61: #{tpu_custom_call.1} parent=59 // pred_check
          %p4397 = pneg %p147
        $region62: #{tpu_custom_call.1} parent=59 // pred_check_branch
          %4399 = sbr.rel (%p4397) target = $region64
        $region63: #{tpu_custom_call.1} parent=59 // pred_region
          %s4400 = sand.u32 %s132, 1
          %s4401 = scalar_lea.sflag [#allocation5], %s4400
          %s4402 = sand.u32 %s132, 1
          %s4403 = smul.addr %s4402, 256
          %s4404 = scalar_lea.vmem [#allocation9], %s4403
          %4405 = dma.done %s4401, 4096
        $region64: #{tpu_custom_call.1} parent=59 // pred_fallthru
          _
        // Predicated region
        $region65: #{tpu_custom_call.1} parent=59 // pred_check
          %p4406 = pneg %p173
        $region66: #{tpu_custom_call.1} parent=59 // pred_check_branch
          %4408 = sbr.rel (%p4406) target = $region68
        $region67: #{tpu_custom_call.1} parent=59 // pred_region
          %s4409 = sand.u32 %s158, 1
          %s4410 = scalar_lea.sflag [#allocation11], %s4409
          %s4411 = sand.u32 %s158, 1
          %s4412 = smul.addr %s4411, 256
          %s4413 = scalar_lea.vmem [#allocation10], %s4412
          %4414 = dma.done %s4410, 4096
        $region68: #{tpu_custom_call.1} parent=59 // pred_fallthru
          _
      $region60: #{tpu_custom_call.1} parent=5 // pred_fallthru
        _
    $region6: #{tpu_custom_call.1} parent=1 // loop_footer
      %s28 = sadd.s32 1, %s24
    $region7: #{tpu_custom_call.1} parent=1 // loop_footer_branch
      %23 = sbr.rel target = $region3
    $region8: #{tpu_custom_call.1} parent=1 // loop_exit
      _
    %4415 = vsyncpa [#allocation4], 1
    %s4416 = scalar_lea.sflag [#allocation4], 1
    %4417 = vsyncpa %s4416, 1
    %4418 = vsyncpa [#allocation7], 1
    %s4419 = scalar_lea.sflag [#allocation7], 1
    %4420 = vsyncpa %s4419, 1
    %4421 = vsyncpa [#allocation5], 1
    %s4422 = scalar_lea.sflag [#allocation5], 1
    %4423 = vsyncpa %s4422, 1
    %4424 = vsyncpa [#allocation11], 1
    %s4425 = scalar_lea.sflag [#allocation11], 1
    %4426 = vsyncpa %s4425, 1

</llo_original>
